<compile_context>
chip_gen: v7x
topology: tpu7x:2x2x1
jax: 0.10.0
libtpu: 0.0.40
codegen_flags: <defaults>
</compile_context>

<pallas_src>
import math
import functools

import numpy as np
import jax
import jax.numpy as jnp
from jax import lax
from jax.experimental import pallas as pl
from jax.experimental.pallas import tpu as pltpu

# ---- small, kernel-friendly config (same structure as the torch Config) ----
D_MODEL = 32
N_HEADS = 4
D_HEAD = 8
D_MLP = 128
D_VOCAB = 100
N_CTX = 16
N_LAYERS = 2
LN_EPS = 1e-5
INIT_RANGE = 0.02
IGNORE = -100000.0          # matches the torch IGNORE buffer

TOK_PAD = 128               # token one-hot columns padded to a full 128-lane group
EMB_ROWS = TOK_PAD + N_CTX  # combined [W_E ; W_pos] table rows
QKV_W = 3 * N_HEADS * D_HEAD          # 96 "real" qkv output columns
QKV_PAD = 128                          # padded to 128 lanes (lane-dense matmul result)
VOCAB_PAD = 128                        # unembed padded to 128 lanes (lane-dense store)

_BF16 = jnp.bfloat16

if hasattr(pl, "reciprocal"):
    def _recip(x):
        return pl.reciprocal(x, approx=True)   # EUP slot, ~free; fine at rtol=1e-2
else:                                          # very old jax fallback
    def _recip(x):
        return 1.0 / x


def _compiler_params():
    cp = getattr(pltpu, "CompilerParams", None)
    if cp is None:                              # older jax naming
        cp = getattr(pltpu, "TPUCompilerParams")
    return cp(dimension_semantics=("parallel",))


# ---------------------------------------------------------------- in-kernel helpers
def _layernorm(x, w, b):
    mu = jnp.mean(x, axis=-1, keepdims=True)
    var = jnp.mean((x - mu) ** 2, axis=-1, keepdims=True)   # unbiased=False (matches torch)
    return (x - mu) * lax.rsqrt(var + LN_EPS) * w + b


def _gelu_new(x):
    return 0.5 * x * (1.0 + jnp.tanh(math.sqrt(2.0 / math.pi) * (x + 0.044715 * x * x * x)))


# ---------------------------------------------------------------- fused forward kernel
def fused_forward_kernel(tok_ref, wep_ref,
                         ln1w_ref, ln1b_ref, wqkv_ref, bqkv_ref, wo_ref, bo_ref,
                         ln2w_ref, ln2b_ref, win_ref, bin_ref, wout_ref, bout_ref,
                         lnfw_ref, lnfb_ref, wu_ref, bu_ref,
                         o_ref, *, seq):
    # ---- in-kernel token + positional embedding: a single "two-hot" matmul ----
    # Row r of the block is position r of this batch element; its one-hot hits
    # column tok[r] (token row of W_EP) and column TOK_PAD + r (position row of W_EP).
    tok = tok_ref[...]                                                   # (S, 1) int32
    col = lax.broadcasted_iota(jnp.int32, (seq, EMB_ROWS), 1)
    row = lax.broadcasted_iota(jnp.int32, (seq, EMB_ROWS), 0)
    two_hot = jnp.logical_or(col == tok, col == row + TOK_PAD).astype(jnp.float32)
    x = jnp.dot(two_hot, wep_ref[...], preferred_element_type=jnp.float32)  # (S, D)

    # Additive causal mask bias, built once (iota compare only, no integer division).
    r = lax.broadcasted_iota(jnp.int32, (seq, seq), 0)
    c = lax.broadcasted_iota(jnp.int32, (seq, seq), 1)
    causal_bias = jnp.where(c <= r, 0.0, IGNORE).astype(jnp.float32)

    scale = 1.0 / math.sqrt(D_HEAD)
    k_off = N_HEADS * D_HEAD
    v_off = 2 * N_HEADS * D_HEAD

    for l in range(N_LAYERS):                    # static layer loop
        # ---- ln1 + multi-head causal attention ----
        n1 = _layernorm(x, ln1w_ref[l], ln1b_ref[l])
        # Fused Q/K/V projection: one bf16 matmul with a 128-lane (padded) result.
        qkv = jnp.dot(n1.astype(_BF16), wqkv_ref[l],
                      preferred_element_type=jnp.float32) + bqkv_ref[l]   # (S, 128) f32

        attn_out = bo_ref[l]                     # (1, D) bias, broadcasts over rows
        for h in range(N_HEADS):                 # static head loop (tiny (S,8) slices)
            q_h = qkv[:, h * D_HEAD:(h + 1) * D_HEAD]
            k_h = qkv[:, k_off + h * D_HEAD:k_off + (h + 1) * D_HEAD]
            v_h = qkv[:, v_off + h * D_HEAD:v_off + (h + 1) * D_HEAD]
            # q @ k^T without an explicit transpose (contract last dims), bf16 on MXU.
            s = lax.dot_general(q_h.astype(_BF16), k_h.astype(_BF16),
                                (((1,), (1,)), ((), ())),
                                preferred_element_type=jnp.float32) * scale + causal_bias
            # Numerically safe softmax (row-max subtraction) + EUP reciprocal.
            m = jnp.max(s, axis=-1, keepdims=True)
            e = jnp.exp(s - m)
            p = e * _recip(jnp.sum(e, axis=-1, keepdims=True))
            z_h = jnp.dot(p.astype(_BF16), v_h.astype(_BF16),
                          preferred_element_type=jnp.float32)             # (S, Dh)
            # Per-head O-projection accumulate (no lane-shift concatenation).
            attn_out = attn_out + jnp.dot(z_h.astype(_BF16), wo_ref[l, h],
                                          preferred_element_type=jnp.float32)
        x = x + attn_out

        # ---- ln2 + MLP ----
        n2 = _layernorm(x, ln2w_ref[l], ln2b_ref[l])
        pre = jnp.dot(n2.astype(_BF16), win_ref[l],
                      preferred_element_type=jnp.float32) + bin_ref[l]
        post = _gelu_new(pre)
        x = x + jnp.dot(post.astype(_BF16), wout_ref[l],
                        preferred_element_type=jnp.float32) + bout_ref[l]

    # ---- final LayerNorm + unembed (lane-dense 128-wide padded vocab output) ----
    nf = _layernorm(x, lnfw_ref[...], lnfb_ref[...])
    o_ref[...] = jnp.dot(nf.astype(_BF16), wu_ref[...],
                         preferred_element_type=jnp.float32) + bu_ref[...]


# ---------------------------------------------------------------- forward (Pallas)
@jax.jit
def forward(tokens, kp):
    B, S = tokens.shape
    tok_col = tokens.reshape(B * S, 1).astype(jnp.int32)

    weights = (kp["W_EP"],
               kp["ln1_w"], kp["ln1_b"], kp["w_qkv"], kp["b_qkv"], kp["w_o"], kp["b_o"],
               kp["ln2_w"], kp["ln2_b"], kp["w_in"], kp["b_in"], kp["w_out"], kp["b_out"],
               kp["lnf_w"], kp["lnf_b"], kp["W_U"], kp["b_U"])

    def full_spec(a):
        # Whole array resident in VMEM every grid step (index map is constant).
        return pl.BlockSpec(a.shape, lambda b, nd=a.ndim: (0,) * nd)

    logits_pad = pl.pallas_call(
        functools.partial(fused_forward_kernel, seq=S),
        out_shape=jax.ShapeDtypeStruct((B * S, VOCAB_PAD), jnp.float32),
        grid=(B,),                                              # per-batch blocks;
        in_specs=[pl.BlockSpec((S, 1), lambda b: (b, 0))]        # sharded over TCs on v7x
                 + [full_spec(a) for a in weights],
        out_specs=pl.BlockSpec((S, VOCAB_PAD), lambda b: (b, 0)),
        compiler_params=_compiler_params(),
    )(tok_col, *weights)
    return logits_pad[:, :D_VOCAB].reshape(B, S, D_VOCAB)


# ---------------------------------------------------------------- parameter init (torch-faithful)
def init_params(key):
    def normal(k, shape):
        return (INIT_RANGE * jax.random.normal(k, shape)).astype(jnp.float32)

    keys = iter(jax.random.split(key, 6 * N_LAYERS + 4))
    p = {
        "W_E": normal(next(keys), (D_VOCAB, D_MODEL)),
        "W_pos": normal(next(keys), (N_CTX, D_MODEL)),
        "W_U": normal(next(keys), (D_MODEL, D_VOCAB)),
        "b_U": jnp.zeros((D_VOCAB,), jnp.float32),
        "lnf_w": jnp.ones((D_MODEL,), jnp.float32),
        "lnf_b": jnp.zeros((D_MODEL,), jnp.float32),
        "blocks": [],
    }
    for _ in range(N_LAYERS):
        p["blocks"].append({
            "ln1_w": jnp.ones((D_MODEL,), jnp.float32),
            "ln1_b": jnp.zeros((D_MODEL,), jnp.float32),
            "W_Q": normal(next(keys), (N_HEADS, D_MODEL, D_HEAD)),
            "W_K": normal(next(keys), (N_HEADS, D_MODEL, D_HEAD)),
            "W_V": normal(next(keys), (N_HEADS, D_MODEL, D_HEAD)),
            "W_O": normal(next(keys), (N_HEADS, D_HEAD, D_MODEL)),
            "b_Q": jnp.zeros((N_HEADS, D_HEAD), jnp.float32),
            "b_K": jnp.zeros((N_HEADS, D_HEAD), jnp.float32),
            "b_V": jnp.zeros((N_HEADS, D_HEAD), jnp.float32),
            "b_O": jnp.zeros((D_MODEL,), jnp.float32),
            "ln2_w": jnp.ones((D_MODEL,), jnp.float32),
            "ln2_b": jnp.zeros((D_MODEL,), jnp.float32),
            "W_in": normal(next(keys), (D_MODEL, D_MLP)),
            "b_in": jnp.zeros((D_MLP,), jnp.float32),
            "W_out": normal(next(keys), (D_MLP, D_MODEL)),
            "b_out": jnp.zeros((D_MODEL,), jnp.float32),
        })
    return p


def pack_kernel_params(p):
    """Re-layout the torch-shaped master params into kernel-friendly (bf16 weight) slabs."""
    wep = jnp.zeros((EMB_ROWS, D_MODEL), jnp.float32)
    wep = wep.at[:D_VOCAB].set(p["W_E"]).at[TOK_PAD:TOK_PAD + N_CTX].set(p["W_pos"])

    def stack(fn):
        return jnp.stack([fn(b) for b in p["blocks"]], axis=0)

    def qkv_w(b):   # (H, D, Dh) x3 -> (D, 3*H*Dh) padded to 128 cols: [q | k | v | 0]
        ws = [jnp.transpose(b[k], (1, 0, 2)).reshape(D_MODEL, N_HEADS * D_HEAD)
              for k in ("W_Q", "W_K", "W_V")]
        return jnp.pad(jnp.concatenate(ws, axis=-1), ((0, 0), (0, QKV_PAD - QKV_W)))

    def qkv_b(b):
        bs = [b[k].reshape(1, N_HEADS * D_HEAD) for k in ("b_Q", "b_K", "b_V")]
        return jnp.pad(jnp.concatenate(bs, axis=-1), ((0, 0), (0, QKV_PAD - QKV_W)))

    return {
        "W_EP": wep,                                               # f32 (144, 32)
        "ln1_w": stack(lambda b: b["ln1_w"].reshape(1, D_MODEL)),
        "ln1_b": stack(lambda b: b["ln1_b"].reshape(1, D_MODEL)),
        "w_qkv": stack(qkv_w).astype(_BF16),                       # (L, 32, 128) bf16
        "b_qkv": stack(qkv_b),                                     # (L, 1, 128) f32
        "w_o": stack(lambda b: b["W_O"]).astype(_BF16),            # (L, H, 8, 32) bf16
        "b_o": stack(lambda b: b["b_O"].reshape(1, D_MODEL)),
        "ln2_w": stack(lambda b: b["ln2_w"].reshape(1, D_MODEL)),
        "ln2_b": stack(lambda b: b["ln2_b"].reshape(1, D_MODEL)),
        "w_in": stack(lambda b: b["W_in"]).astype(_BF16),          # (L, 32, 128) bf16
        "b_in": stack(lambda b: b["b_in"].reshape(1, D_MLP)),
        "w_out": stack(lambda b: b["W_out"]).astype(_BF16),        # (L, 128, 32) bf16
        "b_out": stack(lambda b: b["b_out"].reshape(1, D_MODEL)),
        "lnf_w": p["lnf_w"].reshape(1, D_MODEL),
        "lnf_b": p["lnf_b"].reshape(1, D_MODEL),
        "W_U": jnp.pad(p["W_U"], ((0, 0), (0, VOCAB_PAD - D_VOCAB))).astype(_BF16),
        "b_U": jnp.pad(p["b_U"], (0, VOCAB_PAD - D_VOCAB)).reshape(1, VOCAB_PAD),
    }


# ---------------------------------------------------------------- pure-JAX f32 reference
def forward_ref(tokens, p):
    B, S = tokens.shape

    def ln(x, w, b):
        mu = x.mean(-1, keepdims=True)
        var = ((x - mu) ** 2).mean(-1, keepdims=True)
        return (x - mu) / jnp.sqrt(var + LN_EPS) * w + b

    resid = p["W_E"][tokens] + p["W_pos"][:S][None, :, :]
    causal = jnp.tril(jnp.ones((S, S), dtype=bool))
    for blk in p["blocks"]:
        n1 = ln(resid, blk["ln1_w"], blk["ln1_b"])
        q = jnp.einsum("bpd,hde->bphe", n1, blk["W_Q"]) + blk["b_Q"]
        k = jnp.einsum("bpd,hde->bphe", n1, blk["W_K"]) + blk["b_K"]
        v = jnp.einsum("bpd,hde->bphe", n1, blk["W_V"]) + blk["b_V"]
        scores = jnp.einsum("bqhe,bkhe->bhqk", q, k) / math.sqrt(D_HEAD)
        scores = jnp.where(causal[None, None], scores, IGNORE)
        pattern = jax.nn.softmax(scores, axis=-1)
        z = jnp.einsum("bhqk,bkhe->bqhe", pattern, v)
        attn_out = jnp.einsum("bqhe,hed->bqd", z, blk["W_O"]) + blk["b_O"]
        resid = resid + attn_out
        n2 = ln(resid, blk["ln2_w"], blk["ln2_b"])
        mlp_out = _gelu_new(n2 @ blk["W_in"] + blk["b_in"]) @ blk["W_out"] + blk["b_out"]
        resid = resid + mlp_out
    nf = ln(resid, p["lnf_w"], p["lnf_b"])
    return nf @ p["W_U"] + p["b_U"]


# ---------------------------------------------------------------- main
if __name__ == "__main__":
    key = jax.random.PRNGKey(0)
    params = init_params(key)
    kparams = pack_kernel_params(params)

    batch, seq = 2, 8
    tokens = jax.random.randint(jax.random.fold_in(key, 12345), (batch, seq), 0, D_VOCAB,
                                dtype=jnp.int32)

    logits = forward(tokens, kparams)
    jax.block_until_ready(logits)
    assert logits.shape == (batch, seq, D_VOCAB)

    # Re-verify the bf16-operand kernel against the pure-f32 reference.
    ref = forward_ref(tokens, params)
    np.testing.assert_allclose(np.asarray(logits), np.asarray(ref), rtol=1e-2, atol=1e-2)

    print("KERNEL_OK")
</pallas_src>

<mosaic_0001>
module attributes {stable_mosaic.version = 11 : i64} {
  func.func @fused_forward_kernel(%arg0: i32, %arg1: memref<8x1xi32, #tpu.memory_space<vmem>>, %arg2: memref<144x32xf32, #tpu.memory_space<vmem>>, %arg3: memref<2x1x32xf32, #tpu.memory_space<vmem>>, %arg4: memref<2x1x32xf32, #tpu.memory_space<vmem>>, %arg5: memref<2x32x128xbf16, #tpu.memory_space<vmem>>, %arg6: memref<2x1x128xf32, #tpu.memory_space<vmem>>, %arg7: memref<2x4x8x32xbf16, #tpu.memory_space<vmem>>, %arg8: memref<2x1x32xf32, #tpu.memory_space<vmem>>, %arg9: memref<2x1x32xf32, #tpu.memory_space<vmem>>, %arg10: memref<2x1x32xf32, #tpu.memory_space<vmem>>, %arg11: memref<2x32x128xbf16, #tpu.memory_space<vmem>>, %arg12: memref<2x1x128xf32, #tpu.memory_space<vmem>>, %arg13: memref<2x128x32xbf16, #tpu.memory_space<vmem>>, %arg14: memref<2x1x32xf32, #tpu.memory_space<vmem>>, %arg15: memref<1x32xf32, #tpu.memory_space<vmem>>, %arg16: memref<1x32xf32, #tpu.memory_space<vmem>>, %arg17: memref<32x128xbf16, #tpu.memory_space<vmem>>, %arg18: memref<1x128xf32, #tpu.memory_space<vmem>>, %arg19: memref<8x128xf32, #tpu.memory_space<vmem>>) attributes {dimension_semantics = [#tpu.dimension_semantics<parallel>], iteration_bounds = array<i64: 2>, scalar_prefetch = 0 : i64, scratch_operands = 0 : i64, tpu.core_type = #tpu.core_type<tc>, window_params = [{transform_indices = @transform_0, window_bounds = array<i64: 8, 1>}, {pipeline_mode = #tpu.pipeline_mode<synchronous>, transform_indices = @transform_1, window_bounds = array<i64: 144, 32>}, {pipeline_mode = #tpu.pipeline_mode<synchronous>, transform_indices = @transform_2, window_bounds = array<i64: 2, 1, 32>}, {pipeline_mode = #tpu.pipeline_mode<synchronous>, transform_indices = @transform_3, window_bounds = array<i64: 2, 1, 32>}, {pipeline_mode = #tpu.pipeline_mode<synchronous>, transform_indices = @transform_4, window_bounds = array<i64: 2, 32, 128>}, {pipeline_mode = #tpu.pipeline_mode<synchronous>, transform_indices = @transform_5, window_bounds = array<i64: 2, 1, 128>}, {pipeline_mode = #tpu.pipeline_mode<synchronous>, transform_indices = @transform_6, window_bounds = array<i64: 2, 4, 8, 32>}, {pipeline_mode = #tpu.pipeline_mode<synchronous>, transform_indices = @transform_7, window_bounds = array<i64: 2, 1, 32>}, {pipeline_mode = #tpu.pipeline_mode<synchronous>, transform_indices = @transform_8, window_bounds = array<i64: 2, 1, 32>}, {pipeline_mode = #tpu.pipeline_mode<synchronous>, transform_indices = @transform_9, window_bounds = array<i64: 2, 1, 32>}, {pipeline_mode = #tpu.pipeline_mode<synchronous>, transform_indices = @transform_10, window_bounds = array<i64: 2, 32, 128>}, {pipeline_mode = #tpu.pipeline_mode<synchronous>, transform_indices = @transform_11, window_bounds = array<i64: 2, 1, 128>}, {pipeline_mode = #tpu.pipeline_mode<synchronous>, transform_indices = @transform_12, window_bounds = array<i64: 2, 128, 32>}, {pipeline_mode = #tpu.pipeline_mode<synchronous>, transform_indices = @transform_13, window_bounds = array<i64: 2, 1, 32>}, {pipeline_mode = #tpu.pipeline_mode<synchronous>, transform_indices = @transform_14, window_bounds = array<i64: 1, 32>}, {pipeline_mode = #tpu.pipeline_mode<synchronous>, transform_indices = @transform_15, window_bounds = array<i64: 1, 32>}, {pipeline_mode = #tpu.pipeline_mode<synchronous>, transform_indices = @transform_16, window_bounds = array<i64: 32, 128>}, {pipeline_mode = #tpu.pipeline_mode<synchronous>, transform_indices = @transform_17, window_bounds = array<i64: 1, 128>}, {transform_indices = @transform_18, window_bounds = array<i64: 8, 128>}]} {
    %c0 = arith.constant 0 : index
    %c0_0 = arith.constant 0 : index
    %0 = vector.load %arg1[%c0, %c0_0] : memref<8x1xi32, #tpu.memory_space<vmem>>, vector<8x1xi32>
    %1 = tpu.iota {dimensions = array<i32: 1>} : vector<8x144xi32>
    %2 = tpu.iota {dimensions = array<i32: 0>} : vector<8x144xi32>
    %3 = vector.broadcast %0 : vector<8x1xi32> to vector<8x144xi32>
    %4 = arith.cmpi eq, %1, %3 : vector<8x144xi32>
    %c128_i32 = arith.constant 128 : i32
    %5 = vector.broadcast %c128_i32 : i32 to vector<8x144xi32>
    %6 = arith.addi %2, %5 : vector<8x144xi32>
    %7 = arith.cmpi eq, %1, %6 : vector<8x144xi32>
    %8 = arith.ori %4, %7 : vector<8x144xi1>
    %9 = arith.extui %8 : vector<8x144xi1> to vector<8x144xi32>
    %10 = arith.sitofp %9 : vector<8x144xi32> to vector<8x144xf32>
    %c0_1 = arith.constant 0 : index
    %c0_2 = arith.constant 0 : index
    %11 = vector.load %arg2[%c0_1, %c0_2] : memref<144x32xf32, #tpu.memory_space<vmem>>, vector<144x32xf32>
    %cst = arith.constant dense<0.000000e+00> : vector<8x32xf32>
    %12 = tpu.matmul %10, %11, %cst {dimension_numbers = #tpu.dot_dimension_numbers<[1], [0], [0], [1], [0, 0, 1, 1], [], []>} : vector<8x144xf32>, vector<144x32xf32>, vector<8x32xf32> -> vector<8x32xf32>
    %13 = tpu.iota {dimensions = array<i32: 0>} : vector<8x8xi32>
    %14 = tpu.iota {dimensions = array<i32: 1>} : vector<8x8xi32>
    %15 = arith.cmpi sle, %14, %13 : vector<8x8xi32>
    %cst_3 = arith.constant 0.000000e+00 : f32
    %cst_4 = arith.constant -1.000000e+05 : f32
    %16 = vector.broadcast %cst_3 : f32 to vector<8x8xf32>
    %17 = vector.broadcast %cst_4 : f32 to vector<8x8xf32>
    %18 = arith.select %15, %16, %17 : vector<8x8xi1>, vector<8x8xf32>
    %c0_5 = arith.constant 0 : index
    %c0_6 = arith.constant 0 : index
    %c0_7 = arith.constant 0 : index
    %19 = vector.load %arg3[%c0_5, %c0_6, %c0_7] : memref<2x1x32xf32, #tpu.memory_space<vmem>>, vector<1x1x32xf32>
    %20 = vector.shape_cast %19 : vector<1x1x32xf32> to vector<1x32xf32>
    %c0_8 = arith.constant 0 : index
    %c0_9 = arith.constant 0 : index
    %c0_10 = arith.constant 0 : index
    %21 = vector.load %arg4[%c0_8, %c0_9, %c0_10] : memref<2x1x32xf32, #tpu.memory_space<vmem>>, vector<1x1x32xf32>
    %22 = vector.shape_cast %21 : vector<1x1x32xf32> to vector<1x32xf32>
    %cst_11 = arith.constant dense<0.000000e+00> : vector<8xf32>
    %23 = vector.multi_reduction <add>, %12, %cst_11 [1] : vector<8x32xf32> to vector<8xf32>
    %24 = vector.shape_cast %23 : vector<8xf32> to vector<8x1xf32>
    %cst_12 = arith.constant 3.200000e+01 : f32
    %25 = vector.broadcast %cst_12 : f32 to vector<8x1xf32>
    %26 = arith.divf %24, %25 : vector<8x1xf32>
    %27 = vector.broadcast %26 : vector<8x1xf32> to vector<8x32xf32>
    %28 = arith.subf %12, %27 : vector<8x32xf32>
    %29 = arith.mulf %28, %28 : vector<8x32xf32>
    %cst_13 = arith.constant dense<0.000000e+00> : vector<8xf32>
    %30 = vector.multi_reduction <add>, %29, %cst_13 [1] : vector<8x32xf32> to vector<8xf32>
    %31 = vector.shape_cast %30 : vector<8xf32> to vector<8x1xf32>
    %cst_14 = arith.constant 3.200000e+01 : f32
    %32 = vector.broadcast %cst_14 : f32 to vector<8x1xf32>
    %33 = arith.divf %31, %32 : vector<8x1xf32>
    %34 = vector.broadcast %26 : vector<8x1xf32> to vector<8x32xf32>
    %35 = arith.subf %12, %34 : vector<8x32xf32>
    %cst_15 = arith.constant 9.99999974E-6 : f32
    %36 = vector.broadcast %cst_15 : f32 to vector<8x1xf32>
    %37 = arith.addf %33, %36 : vector<8x1xf32>
    %38 = math.rsqrt %37 : vector<8x1xf32>
    %39 = vector.broadcast %38 : vector<8x1xf32> to vector<8x32xf32>
    %40 = arith.mulf %35, %39 : vector<8x32xf32>
    %41 = vector.broadcast %20 : vector<1x32xf32> to vector<8x32xf32>
    %42 = arith.mulf %40, %41 : vector<8x32xf32>
    %43 = vector.broadcast %22 : vector<1x32xf32> to vector<8x32xf32>
    %44 = arith.addf %42, %43 : vector<8x32xf32>
    %45 = arith.truncf %44 : vector<8x32xf32> to vector<8x32xbf16>
    %c0_16 = arith.constant 0 : index
    %c0_17 = arith.constant 0 : index
    %c0_18 = arith.constant 0 : index
    %46 = vector.load %arg5[%c0_16, %c0_17, %c0_18] : memref<2x32x128xbf16, #tpu.memory_space<vmem>>, vector<1x32x128xbf16>
    %47 = vector.shape_cast %46 : vector<1x32x128xbf16> to vector<32x128xbf16>
    %cst_19 = arith.constant dense<0.000000e+00> : vector<8x128xf32>
    %48 = tpu.matmul %45, %47, %cst_19 {dimension_numbers = #tpu.dot_dimension_numbers<[1], [0], [0], [1], [0, 0, 1, 1], [], []>} : vector<8x32xbf16>, vector<32x128xbf16>, vector<8x128xf32> -> vector<8x128xf32>
    %c0_20 = arith.constant 0 : index
    %c0_21 = arith.constant 0 : index
    %c0_22 = arith.constant 0 : index
    %49 = vector.load %arg6[%c0_20, %c0_21, %c0_22] : memref<2x1x128xf32, #tpu.memory_space<vmem>>, vector<1x1x128xf32>
    %50 = vector.shape_cast %49 : vector<1x1x128xf32> to vector<1x128xf32>
    %51 = vector.broadcast %50 : vector<1x128xf32> to vector<8x128xf32>
    %52 = arith.addf %48, %51 : vector<8x128xf32>
    %c0_23 = arith.constant 0 : index
    %c0_24 = arith.constant 0 : index
    %c0_25 = arith.constant 0 : index
    %53 = vector.load %arg8[%c0_23, %c0_24, %c0_25] : memref<2x1x32xf32, #tpu.memory_space<vmem>>, vector<1x1x32xf32>
    %54 = vector.shape_cast %53 : vector<1x1x32xf32> to vector<1x32xf32>
    %55 = vector.extract_strided_slice %52 {offsets = [0, 0], sizes = [8, 8], strides = [1, 1]} : vector<8x128xf32> to vector<8x8xf32>
    %56 = vector.extract_strided_slice %52 {offsets = [0, 32], sizes = [8, 8], strides = [1, 1]} : vector<8x128xf32> to vector<8x8xf32>
    %57 = vector.extract_strided_slice %52 {offsets = [0, 64], sizes = [8, 8], strides = [1, 1]} : vector<8x128xf32> to vector<8x8xf32>
    %58 = arith.truncf %55 : vector<8x8xf32> to vector<8x8xbf16>
    %59 = arith.truncf %56 : vector<8x8xf32> to vector<8x8xbf16>
    %cst_26 = arith.constant dense<0.000000e+00> : vector<8x8xf32>
    %60 = tpu.matmul %58, %59, %cst_26 {dimension_numbers = #tpu.dot_dimension_numbers<[1], [1], [0], [0], [0, 0, 1, 0], [], []>} : vector<8x8xbf16>, vector<8x8xbf16>, vector<8x8xf32> -> vector<8x8xf32>
    %cst_27 = arith.constant 0.353553385 : f32
    %61 = vector.broadcast %cst_27 : f32 to vector<8x8xf32>
    %62 = arith.mulf %60, %61 : vector<8x8xf32>
    %63 = arith.addf %62, %18 : vector<8x8xf32>
    %cst_28 = arith.constant dense<0xFF800000> : vector<8xf32>
    %64 = vector.multi_reduction <maximumf>, %63, %cst_28 [1] : vector<8x8xf32> to vector<8xf32>
    %65 = vector.shape_cast %64 : vector<8xf32> to vector<8x1xf32>
    %66 = vector.broadcast %65 : vector<8x1xf32> to vector<8x8xf32>
    %67 = arith.subf %63, %66 : vector<8x8xf32>
    %68 = math.exp %67 : vector<8x8xf32>
    %cst_29 = arith.constant dense<0.000000e+00> : vector<8xf32>
    %69 = vector.multi_reduction <add>, %68, %cst_29 [1] : vector<8x8xf32> to vector<8xf32>
    %70 = vector.shape_cast %69 : vector<8xf32> to vector<8x1xf32>
    %71 = tpu.reciprocal %70 {approx = true} : vector<8x1xf32> -> vector<8x1xf32>
    %72 = vector.broadcast %71 : vector<8x1xf32> to vector<8x8xf32>
    %73 = arith.mulf %68, %72 : vector<8x8xf32>
    %74 = arith.truncf %73 : vector<8x8xf32> to vector<8x8xbf16>
    %75 = arith.truncf %57 : vector<8x8xf32> to vector<8x8xbf16>
    %cst_30 = arith.constant dense<0.000000e+00> : vector<8x8xf32>
    %76 = tpu.matmul %74, %75, %cst_30 {dimension_numbers = #tpu.dot_dimension_numbers<[1], [0], [0], [1], [0, 0, 1, 1], [], []>} : vector<8x8xbf16>, vector<8x8xbf16>, vector<8x8xf32> -> vector<8x8xf32>
    %77 = arith.truncf %76 : vector<8x8xf32> to vector<8x8xbf16>
    %c0_31 = arith.constant 0 : index
    %c0_32 = arith.constant 0 : index
    %c0_33 = arith.constant 0 : index
    %c0_34 = arith.constant 0 : index
    %78 = vector.load %arg7[%c0_31, %c0_32, %c0_33, %c0_34] : memref<2x4x8x32xbf16, #tpu.memory_space<vmem>>, vector<1x1x8x32xbf16>
    %79 = vector.shape_cast %78 : vector<1x1x8x32xbf16> to vector<8x32xbf16>
    %cst_35 = arith.constant dense<0.000000e+00> : vector<8x32xf32>
    %80 = tpu.matmul %77, %79, %cst_35 {dimension_numbers = #tpu.dot_dimension_numbers<[1], [0], [0], [1], [0, 0, 1, 1], [], []>} : vector<8x8xbf16>, vector<8x32xbf16>, vector<8x32xf32> -> vector<8x32xf32>
    %81 = vector.broadcast %54 : vector<1x32xf32> to vector<8x32xf32>
    %82 = arith.addf %81, %80 : vector<8x32xf32>
    %83 = vector.extract_strided_slice %52 {offsets = [0, 8], sizes = [8, 8], strides = [1, 1]} : vector<8x128xf32> to vector<8x8xf32>
    %84 = vector.extract_strided_slice %52 {offsets = [0, 40], sizes = [8, 8], strides = [1, 1]} : vector<8x128xf32> to vector<8x8xf32>
    %85 = vector.extract_strided_slice %52 {offsets = [0, 72], sizes = [8, 8], strides = [1, 1]} : vector<8x128xf32> to vector<8x8xf32>
    %86 = arith.truncf %83 : vector<8x8xf32> to vector<8x8xbf16>
    %87 = arith.truncf %84 : vector<8x8xf32> to vector<8x8xbf16>
    %cst_36 = arith.constant dense<0.000000e+00> : vector<8x8xf32>
    %88 = tpu.matmul %86, %87, %cst_36 {dimension_numbers = #tpu.dot_dimension_numbers<[1], [1], [0], [0], [0, 0, 1, 0], [], []>} : vector<8x8xbf16>, vector<8x8xbf16>, vector<8x8xf32> -> vector<8x8xf32>
    %cst_37 = arith.constant 0.353553385 : f32
    %89 = vector.broadcast %cst_37 : f32 to vector<8x8xf32>
    %90 = arith.mulf %88, %89 : vector<8x8xf32>
    %91 = arith.addf %90, %18 : vector<8x8xf32>
    %cst_38 = arith.constant dense<0xFF800000> : vector<8xf32>
    %92 = vector.multi_reduction <maximumf>, %91, %cst_38 [1] : vector<8x8xf32> to vector<8xf32>
    %93 = vector.shape_cast %92 : vector<8xf32> to vector<8x1xf32>
    %94 = vector.broadcast %93 : vector<8x1xf32> to vector<8x8xf32>
    %95 = arith.subf %91, %94 : vector<8x8xf32>
    %96 = math.exp %95 : vector<8x8xf32>
    %cst_39 = arith.constant dense<0.000000e+00> : vector<8xf32>
    %97 = vector.multi_reduction <add>, %96, %cst_39 [1] : vector<8x8xf32> to vector<8xf32>
    %98 = vector.shape_cast %97 : vector<8xf32> to vector<8x1xf32>
    %99 = tpu.reciprocal %98 {approx = true} : vector<8x1xf32> -> vector<8x1xf32>
    %100 = vector.broadcast %99 : vector<8x1xf32> to vector<8x8xf32>
    %101 = arith.mulf %96, %100 : vector<8x8xf32>
    %102 = arith.truncf %101 : vector<8x8xf32> to vector<8x8xbf16>
    %103 = arith.truncf %85 : vector<8x8xf32> to vector<8x8xbf16>
    %cst_40 = arith.constant dense<0.000000e+00> : vector<8x8xf32>
    %104 = tpu.matmul %102, %103, %cst_40 {dimension_numbers = #tpu.dot_dimension_numbers<[1], [0], [0], [1], [0, 0, 1, 1], [], []>} : vector<8x8xbf16>, vector<8x8xbf16>, vector<8x8xf32> -> vector<8x8xf32>
    %105 = arith.truncf %104 : vector<8x8xf32> to vector<8x8xbf16>
    %c0_41 = arith.constant 0 : index
    %c1 = arith.constant 1 : index
    %c0_42 = arith.constant 0 : index
    %c0_43 = arith.constant 0 : index
    %106 = vector.load %arg7[%c0_41, %c1, %c0_42, %c0_43] : memref<2x4x8x32xbf16, #tpu.memory_space<vmem>>, vector<1x1x8x32xbf16>
    %107 = vector.shape_cast %106 : vector<1x1x8x32xbf16> to vector<8x32xbf16>
    %cst_44 = arith.constant dense<0.000000e+00> : vector<8x32xf32>
    %108 = tpu.matmul %105, %107, %cst_44 {dimension_numbers = #tpu.dot_dimension_numbers<[1], [0], [0], [1], [0, 0, 1, 1], [], []>} : vector<8x8xbf16>, vector<8x32xbf16>, vector<8x32xf32> -> vector<8x32xf32>
    %109 = arith.addf %82, %108 : vector<8x32xf32>
    %110 = vector.extract_strided_slice %52 {offsets = [0, 16], sizes = [8, 8], strides = [1, 1]} : vector<8x128xf32> to vector<8x8xf32>
    %111 = vector.extract_strided_slice %52 {offsets = [0, 48], sizes = [8, 8], strides = [1, 1]} : vector<8x128xf32> to vector<8x8xf32>
    %112 = vector.extract_strided_slice %52 {offsets = [0, 80], sizes = [8, 8], strides = [1, 1]} : vector<8x128xf32> to vector<8x8xf32>
    %113 = arith.truncf %110 : vector<8x8xf32> to vector<8x8xbf16>
    %114 = arith.truncf %111 : vector<8x8xf32> to vector<8x8xbf16>
    %cst_45 = arith.constant dense<0.000000e+00> : vector<8x8xf32>
    %115 = tpu.matmul %113, %114, %cst_45 {dimension_numbers = #tpu.dot_dimension_numbers<[1], [1], [0], [0], [0, 0, 1, 0], [], []>} : vector<8x8xbf16>, vector<8x8xbf16>, vector<8x8xf32> -> vector<8x8xf32>
    %cst_46 = arith.constant 0.353553385 : f32
    %116 = vector.broadcast %cst_46 : f32 to vector<8x8xf32>
    %117 = arith.mulf %115, %116 : vector<8x8xf32>
    %118 = arith.addf %117, %18 : vector<8x8xf32>
    %cst_47 = arith.constant dense<0xFF800000> : vector<8xf32>
    %119 = vector.multi_reduction <maximumf>, %118, %cst_47 [1] : vector<8x8xf32> to vector<8xf32>
    %120 = vector.shape_cast %119 : vector<8xf32> to vector<8x1xf32>
    %121 = vector.broadcast %120 : vector<8x1xf32> to vector<8x8xf32>
    %122 = arith.subf %118, %121 : vector<8x8xf32>
    %123 = math.exp %122 : vector<8x8xf32>
    %cst_48 = arith.constant dense<0.000000e+00> : vector<8xf32>
    %124 = vector.multi_reduction <add>, %123, %cst_48 [1] : vector<8x8xf32> to vector<8xf32>
    %125 = vector.shape_cast %124 : vector<8xf32> to vector<8x1xf32>
    %126 = tpu.reciprocal %125 {approx = true} : vector<8x1xf32> -> vector<8x1xf32>
    %127 = vector.broadcast %126 : vector<8x1xf32> to vector<8x8xf32>
    %128 = arith.mulf %123, %127 : vector<8x8xf32>
    %129 = arith.truncf %128 : vector<8x8xf32> to vector<8x8xbf16>
    %130 = arith.truncf %112 : vector<8x8xf32> to vector<8x8xbf16>
    %cst_49 = arith.constant dense<0.000000e+00> : vector<8x8xf32>
    %131 = tpu.matmul %129, %130, %cst_49 {dimension_numbers = #tpu.dot_dimension_numbers<[1], [0], [0], [1], [0, 0, 1, 1], [], []>} : vector<8x8xbf16>, vector<8x8xbf16>, vector<8x8xf32> -> vector<8x8xf32>
    %132 = arith.truncf %131 : vector<8x8xf32> to vector<8x8xbf16>
    %c0_50 = arith.constant 0 : index
    %c2 = arith.constant 2 : index
    %c0_51 = arith.constant 0 : index
    %c0_52 = arith.constant 0 : index
    %133 = vector.load %arg7[%c0_50, %c2, %c0_51, %c0_52] : memref<2x4x8x32xbf16, #tpu.memory_space<vmem>>, vector<1x1x8x32xbf16>
    %134 = vector.shape_cast %133 : vector<1x1x8x32xbf16> to vector<8x32xbf16>
    %cst_53 = arith.constant dense<0.000000e+00> : vector<8x32xf32>
    %135 = tpu.matmul %132, %134, %cst_53 {dimension_numbers = #tpu.dot_dimension_numbers<[1], [0], [0], [1], [0, 0, 1, 1], [], []>} : vector<8x8xbf16>, vector<8x32xbf16>, vector<8x32xf32> -> vector<8x32xf32>
    %136 = arith.addf %109, %135 : vector<8x32xf32>
    %137 = vector.extract_strided_slice %52 {offsets = [0, 24], sizes = [8, 8], strides = [1, 1]} : vector<8x128xf32> to vector<8x8xf32>
    %138 = vector.extract_strided_slice %52 {offsets = [0, 56], sizes = [8, 8], strides = [1, 1]} : vector<8x128xf32> to vector<8x8xf32>
    %139 = vector.extract_strided_slice %52 {offsets = [0, 88], sizes = [8, 8], strides = [1, 1]} : vector<8x128xf32> to vector<8x8xf32>
    %140 = arith.truncf %137 : vector<8x8xf32> to vector<8x8xbf16>
    %141 = arith.truncf %138 : vector<8x8xf32> to vector<8x8xbf16>
    %cst_54 = arith.constant dense<0.000000e+00> : vector<8x8xf32>
    %142 = tpu.matmul %140, %141, %cst_54 {dimension_numbers = #tpu.dot_dimension_numbers<[1], [1], [0], [0], [0, 0, 1, 0], [], []>} : vector<8x8xbf16>, vector<8x8xbf16>, vector<8x8xf32> -> vector<8x8xf32>
    %cst_55 = arith.constant 0.353553385 : f32
    %143 = vector.broadcast %cst_55 : f32 to vector<8x8xf32>
    %144 = arith.mulf %142, %143 : vector<8x8xf32>
    %145 = arith.addf %144, %18 : vector<8x8xf32>
    %cst_56 = arith.constant dense<0xFF800000> : vector<8xf32>
    %146 = vector.multi_reduction <maximumf>, %145, %cst_56 [1] : vector<8x8xf32> to vector<8xf32>
    %147 = vector.shape_cast %146 : vector<8xf32> to vector<8x1xf32>
    %148 = vector.broadcast %147 : vector<8x1xf32> to vector<8x8xf32>
    %149 = arith.subf %145, %148 : vector<8x8xf32>
    %150 = math.exp %149 : vector<8x8xf32>
    %cst_57 = arith.constant dense<0.000000e+00> : vector<8xf32>
    %151 = vector.multi_reduction <add>, %150, %cst_57 [1] : vector<8x8xf32> to vector<8xf32>
    %152 = vector.shape_cast %151 : vector<8xf32> to vector<8x1xf32>
    %153 = tpu.reciprocal %152 {approx = true} : vector<8x1xf32> -> vector<8x1xf32>
    %154 = vector.broadcast %153 : vector<8x1xf32> to vector<8x8xf32>
    %155 = arith.mulf %150, %154 : vector<8x8xf32>
    %156 = arith.truncf %155 : vector<8x8xf32> to vector<8x8xbf16>
    %157 = arith.truncf %139 : vector<8x8xf32> to vector<8x8xbf16>
    %cst_58 = arith.constant dense<0.000000e+00> : vector<8x8xf32>
    %158 = tpu.matmul %156, %157, %cst_58 {dimension_numbers = #tpu.dot_dimension_numbers<[1], [0], [0], [1], [0, 0, 1, 1], [], []>} : vector<8x8xbf16>, vector<8x8xbf16>, vector<8x8xf32> -> vector<8x8xf32>
    %159 = arith.truncf %158 : vector<8x8xf32> to vector<8x8xbf16>
    %c0_59 = arith.constant 0 : index
    %c3 = arith.constant 3 : index
    %c0_60 = arith.constant 0 : index
    %c0_61 = arith.constant 0 : index
    %160 = vector.load %arg7[%c0_59, %c3, %c0_60, %c0_61] : memref<2x4x8x32xbf16, #tpu.memory_space<vmem>>, vector<1x1x8x32xbf16>
    %161 = vector.shape_cast %160 : vector<1x1x8x32xbf16> to vector<8x32xbf16>
    %cst_62 = arith.constant dense<0.000000e+00> : vector<8x32xf32>
    %162 = tpu.matmul %159, %161, %cst_62 {dimension_numbers = #tpu.dot_dimension_numbers<[1], [0], [0], [1], [0, 0, 1, 1], [], []>} : vector<8x8xbf16>, vector<8x32xbf16>, vector<8x32xf32> -> vector<8x32xf32>
    %163 = arith.addf %136, %162 : vector<8x32xf32>
    %164 = arith.addf %12, %163 : vector<8x32xf32>
    %c0_63 = arith.constant 0 : index
    %c0_64 = arith.constant 0 : index
    %c0_65 = arith.constant 0 : index
    %165 = vector.load %arg9[%c0_63, %c0_64, %c0_65] : memref<2x1x32xf32, #tpu.memory_space<vmem>>, vector<1x1x32xf32>
    %166 = vector.shape_cast %165 : vector<1x1x32xf32> to vector<1x32xf32>
    %c0_66 = arith.constant 0 : index
    %c0_67 = arith.constant 0 : index
    %c0_68 = arith.constant 0 : index
    %167 = vector.load %arg10[%c0_66, %c0_67, %c0_68] : memref<2x1x32xf32, #tpu.memory_space<vmem>>, vector<1x1x32xf32>
    %168 = vector.shape_cast %167 : vector<1x1x32xf32> to vector<1x32xf32>
    %cst_69 = arith.constant dense<0.000000e+00> : vector<8xf32>
    %169 = vector.multi_reduction <add>, %164, %cst_69 [1] : vector<8x32xf32> to vector<8xf32>
    %170 = vector.shape_cast %169 : vector<8xf32> to vector<8x1xf32>
    %cst_70 = arith.constant 3.200000e+01 : f32
    %171 = vector.broadcast %cst_70 : f32 to vector<8x1xf32>
    %172 = arith.divf %170, %171 : vector<8x1xf32>
    %173 = vector.broadcast %172 : vector<8x1xf32> to vector<8x32xf32>
    %174 = arith.subf %164, %173 : vector<8x32xf32>
    %175 = arith.mulf %174, %174 : vector<8x32xf32>
    %cst_71 = arith.constant dense<0.000000e+00> : vector<8xf32>
    %176 = vector.multi_reduction <add>, %175, %cst_71 [1] : vector<8x32xf32> to vector<8xf32>
    %177 = vector.shape_cast %176 : vector<8xf32> to vector<8x1xf32>
    %cst_72 = arith.constant 3.200000e+01 : f32
    %178 = vector.broadcast %cst_72 : f32 to vector<8x1xf32>
    %179 = arith.divf %177, %178 : vector<8x1xf32>
    %180 = vector.broadcast %172 : vector<8x1xf32> to vector<8x32xf32>
    %181 = arith.subf %164, %180 : vector<8x32xf32>
    %cst_73 = arith.constant 9.99999974E-6 : f32
    %182 = vector.broadcast %cst_73 : f32 to vector<8x1xf32>
    %183 = arith.addf %179, %182 : vector<8x1xf32>
    %184 = math.rsqrt %183 : vector<8x1xf32>
    %185 = vector.broadcast %184 : vector<8x1xf32> to vector<8x32xf32>
    %186 = arith.mulf %181, %185 : vector<8x32xf32>
    %187 = vector.broadcast %166 : vector<1x32xf32> to vector<8x32xf32>
    %188 = arith.mulf %186, %187 : vector<8x32xf32>
    %189 = vector.broadcast %168 : vector<1x32xf32> to vector<8x32xf32>
    %190 = arith.addf %188, %189 : vector<8x32xf32>
    %191 = arith.truncf %190 : vector<8x32xf32> to vector<8x32xbf16>
    %c0_74 = arith.constant 0 : index
    %c0_75 = arith.constant 0 : index
    %c0_76 = arith.constant 0 : index
    %192 = vector.load %arg11[%c0_74, %c0_75, %c0_76] : memref<2x32x128xbf16, #tpu.memory_space<vmem>>, vector<1x32x128xbf16>
    %193 = vector.shape_cast %192 : vector<1x32x128xbf16> to vector<32x128xbf16>
    %cst_77 = arith.constant dense<0.000000e+00> : vector<8x128xf32>
    %194 = tpu.matmul %191, %193, %cst_77 {dimension_numbers = #tpu.dot_dimension_numbers<[1], [0], [0], [1], [0, 0, 1, 1], [], []>} : vector<8x32xbf16>, vector<32x128xbf16>, vector<8x128xf32> -> vector<8x128xf32>
    %c0_78 = arith.constant 0 : index
    %c0_79 = arith.constant 0 : index
    %c0_80 = arith.constant 0 : index
    %195 = vector.load %arg12[%c0_78, %c0_79, %c0_80] : memref<2x1x128xf32, #tpu.memory_space<vmem>>, vector<1x1x128xf32>
    %196 = vector.shape_cast %195 : vector<1x1x128xf32> to vector<1x128xf32>
    %197 = vector.broadcast %196 : vector<1x128xf32> to vector<8x128xf32>
    %198 = arith.addf %194, %197 : vector<8x128xf32>
    %cst_81 = arith.constant 5.000000e-01 : f32
    %199 = vector.broadcast %cst_81 : f32 to vector<8x128xf32>
    %200 = arith.mulf %199, %198 : vector<8x128xf32>
    %cst_82 = arith.constant 4.471500e-02 : f32
    %201 = vector.broadcast %cst_82 : f32 to vector<8x128xf32>
    %202 = arith.mulf %201, %198 : vector<8x128xf32>
    %203 = arith.mulf %202, %198 : vector<8x128xf32>
    %204 = arith.mulf %203, %198 : vector<8x128xf32>
    %205 = arith.addf %198, %204 : vector<8x128xf32>
    %cst_83 = arith.constant 0.797884583 : f32
    %206 = vector.broadcast %cst_83 : f32 to vector<8x128xf32>
    %207 = arith.mulf %206, %205 : vector<8x128xf32>
    %208 = math.tanh %207 : vector<8x128xf32>
    %cst_84 = arith.constant 1.000000e+00 : f32
    %209 = vector.broadcast %cst_84 : f32 to vector<8x128xf32>
    %210 = arith.addf %209, %208 : vector<8x128xf32>
    %211 = arith.mulf %200, %210 : vector<8x128xf32>
    %212 = arith.truncf %211 : vector<8x128xf32> to vector<8x128xbf16>
    %c0_85 = arith.constant 0 : index
    %c0_86 = arith.constant 0 : index
    %c0_87 = arith.constant 0 : index
    %213 = vector.load %arg13[%c0_85, %c0_86, %c0_87] : memref<2x128x32xbf16, #tpu.memory_space<vmem>>, vector<1x128x32xbf16>
    %214 = vector.shape_cast %213 : vector<1x128x32xbf16> to vector<128x32xbf16>
    %cst_88 = arith.constant dense<0.000000e+00> : vector<8x32xf32>
    %215 = tpu.matmul %212, %214, %cst_88 {dimension_numbers = #tpu.dot_dimension_numbers<[1], [0], [0], [1], [0, 0, 1, 1], [], []>} : vector<8x128xbf16>, vector<128x32xbf16>, vector<8x32xf32> -> vector<8x32xf32>
    %216 = arith.addf %164, %215 : vector<8x32xf32>
    %c0_89 = arith.constant 0 : index
    %c0_90 = arith.constant 0 : index
    %c0_91 = arith.constant 0 : index
    %217 = vector.load %arg14[%c0_89, %c0_90, %c0_91] : memref<2x1x32xf32, #tpu.memory_space<vmem>>, vector<1x1x32xf32>
    %218 = vector.shape_cast %217 : vector<1x1x32xf32> to vector<1x32xf32>
    %219 = vector.broadcast %218 : vector<1x32xf32> to vector<8x32xf32>
    %220 = arith.addf %216, %219 : vector<8x32xf32>
    %c1_92 = arith.constant 1 : index
    %c0_93 = arith.constant 0 : index
    %c0_94 = arith.constant 0 : index
    %221 = vector.load %arg3[%c1_92, %c0_93, %c0_94] : memref<2x1x32xf32, #tpu.memory_space<vmem>>, vector<1x1x32xf32>
    %222 = vector.shape_cast %221 : vector<1x1x32xf32> to vector<1x32xf32>
    %c1_95 = arith.constant 1 : index
    %c0_96 = arith.constant 0 : index
    %c0_97 = arith.constant 0 : index
    %223 = vector.load %arg4[%c1_95, %c0_96, %c0_97] : memref<2x1x32xf32, #tpu.memory_space<vmem>>, vector<1x1x32xf32>
    %224 = vector.shape_cast %223 : vector<1x1x32xf32> to vector<1x32xf32>
    %cst_98 = arith.constant dense<0.000000e+00> : vector<8xf32>
    %225 = vector.multi_reduction <add>, %220, %cst_98 [1] : vector<8x32xf32> to vector<8xf32>
    %226 = vector.shape_cast %225 : vector<8xf32> to vector<8x1xf32>
    %cst_99 = arith.constant 3.200000e+01 : f32
    %227 = vector.broadcast %cst_99 : f32 to vector<8x1xf32>
    %228 = arith.divf %226, %227 : vector<8x1xf32>
    %229 = vector.broadcast %228 : vector<8x1xf32> to vector<8x32xf32>
    %230 = arith.subf %220, %229 : vector<8x32xf32>
    %231 = arith.mulf %230, %230 : vector<8x32xf32>
    %cst_100 = arith.constant dense<0.000000e+00> : vector<8xf32>
    %232 = vector.multi_reduction <add>, %231, %cst_100 [1] : vector<8x32xf32> to vector<8xf32>
    %233 = vector.shape_cast %232 : vector<8xf32> to vector<8x1xf32>
    %cst_101 = arith.constant 3.200000e+01 : f32
    %234 = vector.broadcast %cst_101 : f32 to vector<8x1xf32>
    %235 = arith.divf %233, %234 : vector<8x1xf32>
    %236 = vector.broadcast %228 : vector<8x1xf32> to vector<8x32xf32>
    %237 = arith.subf %220, %236 : vector<8x32xf32>
    %cst_102 = arith.constant 9.99999974E-6 : f32
    %238 = vector.broadcast %cst_102 : f32 to vector<8x1xf32>
    %239 = arith.addf %235, %238 : vector<8x1xf32>
    %240 = math.rsqrt %239 : vector<8x1xf32>
    %241 = vector.broadcast %240 : vector<8x1xf32> to vector<8x32xf32>
    %242 = arith.mulf %237, %241 : vector<8x32xf32>
    %243 = vector.broadcast %222 : vector<1x32xf32> to vector<8x32xf32>
    %244 = arith.mulf %242, %243 : vector<8x32xf32>
    %245 = vector.broadcast %224 : vector<1x32xf32> to vector<8x32xf32>
    %246 = arith.addf %244, %245 : vector<8x32xf32>
    %247 = arith.truncf %246 : vector<8x32xf32> to vector<8x32xbf16>
    %c1_103 = arith.constant 1 : index
    %c0_104 = arith.constant 0 : index
    %c0_105 = arith.constant 0 : index
    %248 = vector.load %arg5[%c1_103, %c0_104, %c0_105] : memref<2x32x128xbf16, #tpu.memory_space<vmem>>, vector<1x32x128xbf16>
    %249 = vector.shape_cast %248 : vector<1x32x128xbf16> to vector<32x128xbf16>
    %cst_106 = arith.constant dense<0.000000e+00> : vector<8x128xf32>
    %250 = tpu.matmul %247, %249, %cst_106 {dimension_numbers = #tpu.dot_dimension_numbers<[1], [0], [0], [1], [0, 0, 1, 1], [], []>} : vector<8x32xbf16>, vector<32x128xbf16>, vector<8x128xf32> -> vector<8x128xf32>
    %c1_107 = arith.constant 1 : index
    %c0_108 = arith.constant 0 : index
    %c0_109 = arith.constant 0 : index
    %251 = vector.load %arg6[%c1_107, %c0_108, %c0_109] : memref<2x1x128xf32, #tpu.memory_space<vmem>>, vector<1x1x128xf32>
    %252 = vector.shape_cast %251 : vector<1x1x128xf32> to vector<1x128xf32>
    %253 = vector.broadcast %252 : vector<1x128xf32> to vector<8x128xf32>
    %254 = arith.addf %250, %253 : vector<8x128xf32>
    %c1_110 = arith.constant 1 : index
    %c0_111 = arith.constant 0 : index
    %c0_112 = arith.constant 0 : index
    %255 = vector.load %arg8[%c1_110, %c0_111, %c0_112] : memref<2x1x32xf32, #tpu.memory_space<vmem>>, vector<1x1x32xf32>
    %256 = vector.shape_cast %255 : vector<1x1x32xf32> to vector<1x32xf32>
    %257 = vector.extract_strided_slice %254 {offsets = [0, 0], sizes = [8, 8], strides = [1, 1]} : vector<8x128xf32> to vector<8x8xf32>
    %258 = vector.extract_strided_slice %254 {offsets = [0, 32], sizes = [8, 8], strides = [1, 1]} : vector<8x128xf32> to vector<8x8xf32>
    %259 = vector.extract_strided_slice %254 {offsets = [0, 64], sizes = [8, 8], strides = [1, 1]} : vector<8x128xf32> to vector<8x8xf32>
    %260 = arith.truncf %257 : vector<8x8xf32> to vector<8x8xbf16>
    %261 = arith.truncf %258 : vector<8x8xf32> to vector<8x8xbf16>
    %cst_113 = arith.constant dense<0.000000e+00> : vector<8x8xf32>
    %262 = tpu.matmul %260, %261, %cst_113 {dimension_numbers = #tpu.dot_dimension_numbers<[1], [1], [0], [0], [0, 0, 1, 0], [], []>} : vector<8x8xbf16>, vector<8x8xbf16>, vector<8x8xf32> -> vector<8x8xf32>
    %cst_114 = arith.constant 0.353553385 : f32
    %263 = vector.broadcast %cst_114 : f32 to vector<8x8xf32>
    %264 = arith.mulf %262, %263 : vector<8x8xf32>
    %265 = arith.addf %264, %18 : vector<8x8xf32>
    %cst_115 = arith.constant dense<0xFF800000> : vector<8xf32>
    %266 = vector.multi_reduction <maximumf>, %265, %cst_115 [1] : vector<8x8xf32> to vector<8xf32>
    %267 = vector.shape_cast %266 : vector<8xf32> to vector<8x1xf32>
    %268 = vector.broadcast %267 : vector<8x1xf32> to vector<8x8xf32>
    %269 = arith.subf %265, %268 : vector<8x8xf32>
    %270 = math.exp %269 : vector<8x8xf32>
    %cst_116 = arith.constant dense<0.000000e+00> : vector<8xf32>
    %271 = vector.multi_reduction <add>, %270, %cst_116 [1] : vector<8x8xf32> to vector<8xf32>
    %272 = vector.shape_cast %271 : vector<8xf32> to vector<8x1xf32>
    %273 = tpu.reciprocal %272 {approx = true} : vector<8x1xf32> -> vector<8x1xf32>
    %274 = vector.broadcast %273 : vector<8x1xf32> to vector<8x8xf32>
    %275 = arith.mulf %270, %274 : vector<8x8xf32>
    %276 = arith.truncf %275 : vector<8x8xf32> to vector<8x8xbf16>
    %277 = arith.truncf %259 : vector<8x8xf32> to vector<8x8xbf16>
    %cst_117 = arith.constant dense<0.000000e+00> : vector<8x8xf32>
    %278 = tpu.matmul %276, %277, %cst_117 {dimension_numbers = #tpu.dot_dimension_numbers<[1], [0], [0], [1], [0, 0, 1, 1], [], []>} : vector<8x8xbf16>, vector<8x8xbf16>, vector<8x8xf32> -> vector<8x8xf32>
    %279 = arith.truncf %278 : vector<8x8xf32> to vector<8x8xbf16>
    %c1_118 = arith.constant 1 : index
    %c0_119 = arith.constant 0 : index
    %c0_120 = arith.constant 0 : index
    %c0_121 = arith.constant 0 : index
    %280 = vector.load %arg7[%c1_118, %c0_119, %c0_120, %c0_121] : memref<2x4x8x32xbf16, #tpu.memory_space<vmem>>, vector<1x1x8x32xbf16>
    %281 = vector.shape_cast %280 : vector<1x1x8x32xbf16> to vector<8x32xbf16>
    %cst_122 = arith.constant dense<0.000000e+00> : vector<8x32xf32>
    %282 = tpu.matmul %279, %281, %cst_122 {dimension_numbers = #tpu.dot_dimension_numbers<[1], [0], [0], [1], [0, 0, 1, 1], [], []>} : vector<8x8xbf16>, vector<8x32xbf16>, vector<8x32xf32> -> vector<8x32xf32>
    %283 = vector.broadcast %256 : vector<1x32xf32> to vector<8x32xf32>
    %284 = arith.addf %283, %282 : vector<8x32xf32>
    %285 = vector.extract_strided_slice %254 {offsets = [0, 8], sizes = [8, 8], strides = [1, 1]} : vector<8x128xf32> to vector<8x8xf32>
    %286 = vector.extract_strided_slice %254 {offsets = [0, 40], sizes = [8, 8], strides = [1, 1]} : vector<8x128xf32> to vector<8x8xf32>
    %287 = vector.extract_strided_slice %254 {offsets = [0, 72], sizes = [8, 8], strides = [1, 1]} : vector<8x128xf32> to vector<8x8xf32>
    %288 = arith.truncf %285 : vector<8x8xf32> to vector<8x8xbf16>
    %289 = arith.truncf %286 : vector<8x8xf32> to vector<8x8xbf16>
    %cst_123 = arith.constant dense<0.000000e+00> : vector<8x8xf32>
    %290 = tpu.matmul %288, %289, %cst_123 {dimension_numbers = #tpu.dot_dimension_numbers<[1], [1], [0], [0], [0, 0, 1, 0], [], []>} : vector<8x8xbf16>, vector<8x8xbf16>, vector<8x8xf32> -> vector<8x8xf32>
    %cst_124 = arith.constant 0.353553385 : f32
    %291 = vector.broadcast %cst_124 : f32 to vector<8x8xf32>
    %292 = arith.mulf %290, %291 : vector<8x8xf32>
    %293 = arith.addf %292, %18 : vector<8x8xf32>
    %cst_125 = arith.constant dense<0xFF800000> : vector<8xf32>
    %294 = vector.multi_reduction <maximumf>, %293, %cst_125 [1] : vector<8x8xf32> to vector<8xf32>
    %295 = vector.shape_cast %294 : vector<8xf32> to vector<8x1xf32>
    %296 = vector.broadcast %295 : vector<8x1xf32> to vector<8x8xf32>
    %297 = arith.subf %293, %296 : vector<8x8xf32>
    %298 = math.exp %297 : vector<8x8xf32>
    %cst_126 = arith.constant dense<0.000000e+00> : vector<8xf32>
    %299 = vector.multi_reduction <add>, %298, %cst_126 [1] : vector<8x8xf32> to vector<8xf32>
    %300 = vector.shape_cast %299 : vector<8xf32> to vector<8x1xf32>
    %301 = tpu.reciprocal %300 {approx = true} : vector<8x1xf32> -> vector<8x1xf32>
    %302 = vector.broadcast %301 : vector<8x1xf32> to vector<8x8xf32>
    %303 = arith.mulf %298, %302 : vector<8x8xf32>
    %304 = arith.truncf %303 : vector<8x8xf32> to vector<8x8xbf16>
    %305 = arith.truncf %287 : vector<8x8xf32> to vector<8x8xbf16>
    %cst_127 = arith.constant dense<0.000000e+00> : vector<8x8xf32>
    %306 = tpu.matmul %304, %305, %cst_127 {dimension_numbers = #tpu.dot_dimension_numbers<[1], [0], [0], [1], [0, 0, 1, 1], [], []>} : vector<8x8xbf16>, vector<8x8xbf16>, vector<8x8xf32> -> vector<8x8xf32>
    %307 = arith.truncf %306 : vector<8x8xf32> to vector<8x8xbf16>
    %c1_128 = arith.constant 1 : index
    %c1_129 = arith.constant 1 : index
    %c0_130 = arith.constant 0 : index
    %c0_131 = arith.constant 0 : index
    %308 = vector.load %arg7[%c1_128, %c1_129, %c0_130, %c0_131] : memref<2x4x8x32xbf16, #tpu.memory_space<vmem>>, vector<1x1x8x32xbf16>
    %309 = vector.shape_cast %308 : vector<1x1x8x32xbf16> to vector<8x32xbf16>
    %cst_132 = arith.constant dense<0.000000e+00> : vector<8x32xf32>
    %310 = tpu.matmul %307, %309, %cst_132 {dimension_numbers = #tpu.dot_dimension_numbers<[1], [0], [0], [1], [0, 0, 1, 1], [], []>} : vector<8x8xbf16>, vector<8x32xbf16>, vector<8x32xf32> -> vector<8x32xf32>
    %311 = arith.addf %284, %310 : vector<8x32xf32>
    %312 = vector.extract_strided_slice %254 {offsets = [0, 16], sizes = [8, 8], strides = [1, 1]} : vector<8x128xf32> to vector<8x8xf32>
    %313 = vector.extract_strided_slice %254 {offsets = [0, 48], sizes = [8, 8], strides = [1, 1]} : vector<8x128xf32> to vector<8x8xf32>
    %314 = vector.extract_strided_slice %254 {offsets = [0, 80], sizes = [8, 8], strides = [1, 1]} : vector<8x128xf32> to vector<8x8xf32>
    %315 = arith.truncf %312 : vector<8x8xf32> to vector<8x8xbf16>
    %316 = arith.truncf %313 : vector<8x8xf32> to vector<8x8xbf16>
    %cst_133 = arith.constant dense<0.000000e+00> : vector<8x8xf32>
    %317 = tpu.matmul %315, %316, %cst_133 {dimension_numbers = #tpu.dot_dimension_numbers<[1], [1], [0], [0], [0, 0, 1, 0], [], []>} : vector<8x8xbf16>, vector<8x8xbf16>, vector<8x8xf32> -> vector<8x8xf32>
    %cst_134 = arith.constant 0.353553385 : f32
    %318 = vector.broadcast %cst_134 : f32 to vector<8x8xf32>
    %319 = arith.mulf %317, %318 : vector<8x8xf32>
    %320 = arith.addf %319, %18 : vector<8x8xf32>
    %cst_135 = arith.constant dense<0xFF800000> : vector<8xf32>
    %321 = vector.multi_reduction <maximumf>, %320, %cst_135 [1] : vector<8x8xf32> to vector<8xf32>
    %322 = vector.shape_cast %321 : vector<8xf32> to vector<8x1xf32>
    %323 = vector.broadcast %322 : vector<8x1xf32> to vector<8x8xf32>
    %324 = arith.subf %320, %323 : vector<8x8xf32>
    %325 = math.exp %324 : vector<8x8xf32>
    %cst_136 = arith.constant dense<0.000000e+00> : vector<8xf32>
    %326 = vector.multi_reduction <add>, %325, %cst_136 [1] : vector<8x8xf32> to vector<8xf32>
    %327 = vector.shape_cast %326 : vector<8xf32> to vector<8x1xf32>
    %328 = tpu.reciprocal %327 {approx = true} : vector<8x1xf32> -> vector<8x1xf32>
    %329 = vector.broadcast %328 : vector<8x1xf32> to vector<8x8xf32>
    %330 = arith.mulf %325, %329 : vector<8x8xf32>
    %331 = arith.truncf %330 : vector<8x8xf32> to vector<8x8xbf16>
    %332 = arith.truncf %314 : vector<8x8xf32> to vector<8x8xbf16>
    %cst_137 = arith.constant dense<0.000000e+00> : vector<8x8xf32>
    %333 = tpu.matmul %331, %332, %cst_137 {dimension_numbers = #tpu.dot_dimension_numbers<[1], [0], [0], [1], [0, 0, 1, 1], [], []>} : vector<8x8xbf16>, vector<8x8xbf16>, vector<8x8xf32> -> vector<8x8xf32>
    %334 = arith.truncf %333 : vector<8x8xf32> to vector<8x8xbf16>
    %c1_138 = arith.constant 1 : index
    %c2_139 = arith.constant 2 : index
    %c0_140 = arith.constant 0 : index
    %c0_141 = arith.constant 0 : index
    %335 = vector.load %arg7[%c1_138, %c2_139, %c0_140, %c0_141] : memref<2x4x8x32xbf16, #tpu.memory_space<vmem>>, vector<1x1x8x32xbf16>
    %336 = vector.shape_cast %335 : vector<1x1x8x32xbf16> to vector<8x32xbf16>
    %cst_142 = arith.constant dense<0.000000e+00> : vector<8x32xf32>
    %337 = tpu.matmul %334, %336, %cst_142 {dimension_numbers = #tpu.dot_dimension_numbers<[1], [0], [0], [1], [0, 0, 1, 1], [], []>} : vector<8x8xbf16>, vector<8x32xbf16>, vector<8x32xf32> -> vector<8x32xf32>
    %338 = arith.addf %311, %337 : vector<8x32xf32>
    %339 = vector.extract_strided_slice %254 {offsets = [0, 24], sizes = [8, 8], strides = [1, 1]} : vector<8x128xf32> to vector<8x8xf32>
    %340 = vector.extract_strided_slice %254 {offsets = [0, 56], sizes = [8, 8], strides = [1, 1]} : vector<8x128xf32> to vector<8x8xf32>
    %341 = vector.extract_strided_slice %254 {offsets = [0, 88], sizes = [8, 8], strides = [1, 1]} : vector<8x128xf32> to vector<8x8xf32>
    %342 = arith.truncf %339 : vector<8x8xf32> to vector<8x8xbf16>
    %343 = arith.truncf %340 : vector<8x8xf32> to vector<8x8xbf16>
    %cst_143 = arith.constant dense<0.000000e+00> : vector<8x8xf32>
    %344 = tpu.matmul %342, %343, %cst_143 {dimension_numbers = #tpu.dot_dimension_numbers<[1], [1], [0], [0], [0, 0, 1, 0], [], []>} : vector<8x8xbf16>, vector<8x8xbf16>, vector<8x8xf32> -> vector<8x8xf32>
    %cst_144 = arith.constant 0.353553385 : f32
    %345 = vector.broadcast %cst_144 : f32 to vector<8x8xf32>
    %346 = arith.mulf %344, %345 : vector<8x8xf32>
    %347 = arith.addf %346, %18 : vector<8x8xf32>
    %cst_145 = arith.constant dense<0xFF800000> : vector<8xf32>
    %348 = vector.multi_reduction <maximumf>, %347, %cst_145 [1] : vector<8x8xf32> to vector<8xf32>
    %349 = vector.shape_cast %348 : vector<8xf32> to vector<8x1xf32>
    %350 = vector.broadcast %349 : vector<8x1xf32> to vector<8x8xf32>
    %351 = arith.subf %347, %350 : vector<8x8xf32>
    %352 = math.exp %351 : vector<8x8xf32>
    %cst_146 = arith.constant dense<0.000000e+00> : vector<8xf32>
    %353 = vector.multi_reduction <add>, %352, %cst_146 [1] : vector<8x8xf32> to vector<8xf32>
    %354 = vector.shape_cast %353 : vector<8xf32> to vector<8x1xf32>
    %355 = tpu.reciprocal %354 {approx = true} : vector<8x1xf32> -> vector<8x1xf32>
    %356 = vector.broadcast %355 : vector<8x1xf32> to vector<8x8xf32>
    %357 = arith.mulf %352, %356 : vector<8x8xf32>
    %358 = arith.truncf %357 : vector<8x8xf32> to vector<8x8xbf16>
    %359 = arith.truncf %341 : vector<8x8xf32> to vector<8x8xbf16>
    %cst_147 = arith.constant dense<0.000000e+00> : vector<8x8xf32>
    %360 = tpu.matmul %358, %359, %cst_147 {dimension_numbers = #tpu.dot_dimension_numbers<[1], [0], [0], [1], [0, 0, 1, 1], [], []>} : vector<8x8xbf16>, vector<8x8xbf16>, vector<8x8xf32> -> vector<8x8xf32>
    %361 = arith.truncf %360 : vector<8x8xf32> to vector<8x8xbf16>
    %c1_148 = arith.constant 1 : index
    %c3_149 = arith.constant 3 : index
    %c0_150 = arith.constant 0 : index
    %c0_151 = arith.constant 0 : index
    %362 = vector.load %arg7[%c1_148, %c3_149, %c0_150, %c0_151] : memref<2x4x8x32xbf16, #tpu.memory_space<vmem>>, vector<1x1x8x32xbf16>
    %363 = vector.shape_cast %362 : vector<1x1x8x32xbf16> to vector<8x32xbf16>
    %cst_152 = arith.constant dense<0.000000e+00> : vector<8x32xf32>
    %364 = tpu.matmul %361, %363, %cst_152 {dimension_numbers = #tpu.dot_dimension_numbers<[1], [0], [0], [1], [0, 0, 1, 1], [], []>} : vector<8x8xbf16>, vector<8x32xbf16>, vector<8x32xf32> -> vector<8x32xf32>
    %365 = arith.addf %338, %364 : vector<8x32xf32>
    %366 = arith.addf %220, %365 : vector<8x32xf32>
    %c1_153 = arith.constant 1 : index
    %c0_154 = arith.constant 0 : index
    %c0_155 = arith.constant 0 : index
    %367 = vector.load %arg9[%c1_153, %c0_154, %c0_155] : memref<2x1x32xf32, #tpu.memory_space<vmem>>, vector<1x1x32xf32>
    %368 = vector.shape_cast %367 : vector<1x1x32xf32> to vector<1x32xf32>
    %c1_156 = arith.constant 1 : index
    %c0_157 = arith.constant 0 : index
    %c0_158 = arith.constant 0 : index
    %369 = vector.load %arg10[%c1_156, %c0_157, %c0_158] : memref<2x1x32xf32, #tpu.memory_space<vmem>>, vector<1x1x32xf32>
    %370 = vector.shape_cast %369 : vector<1x1x32xf32> to vector<1x32xf32>
    %cst_159 = arith.constant dense<0.000000e+00> : vector<8xf32>
    %371 = vector.multi_reduction <add>, %366, %cst_159 [1] : vector<8x32xf32> to vector<8xf32>
    %372 = vector.shape_cast %371 : vector<8xf32> to vector<8x1xf32>
    %cst_160 = arith.constant 3.200000e+01 : f32
    %373 = vector.broadcast %cst_160 : f32 to vector<8x1xf32>
    %374 = arith.divf %372, %373 : vector<8x1xf32>
    %375 = vector.broadcast %374 : vector<8x1xf32> to vector<8x32xf32>
    %376 = arith.subf %366, %375 : vector<8x32xf32>
    %377 = arith.mulf %376, %376 : vector<8x32xf32>
    %cst_161 = arith.constant dense<0.000000e+00> : vector<8xf32>
    %378 = vector.multi_reduction <add>, %377, %cst_161 [1] : vector<8x32xf32> to vector<8xf32>
    %379 = vector.shape_cast %378 : vector<8xf32> to vector<8x1xf32>
    %cst_162 = arith.constant 3.200000e+01 : f32
    %380 = vector.broadcast %cst_162 : f32 to vector<8x1xf32>
    %381 = arith.divf %379, %380 : vector<8x1xf32>
    %382 = vector.broadcast %374 : vector<8x1xf32> to vector<8x32xf32>
    %383 = arith.subf %366, %382 : vector<8x32xf32>
    %cst_163 = arith.constant 9.99999974E-6 : f32
    %384 = vector.broadcast %cst_163 : f32 to vector<8x1xf32>
    %385 = arith.addf %381, %384 : vector<8x1xf32>
    %386 = math.rsqrt %385 : vector<8x1xf32>
    %387 = vector.broadcast %386 : vector<8x1xf32> to vector<8x32xf32>
    %388 = arith.mulf %383, %387 : vector<8x32xf32>
    %389 = vector.broadcast %368 : vector<1x32xf32> to vector<8x32xf32>
    %390 = arith.mulf %388, %389 : vector<8x32xf32>
    %391 = vector.broadcast %370 : vector<1x32xf32> to vector<8x32xf32>
    %392 = arith.addf %390, %391 : vector<8x32xf32>
    %393 = arith.truncf %392 : vector<8x32xf32> to vector<8x32xbf16>
    %c1_164 = arith.constant 1 : index
    %c0_165 = arith.constant 0 : index
    %c0_166 = arith.constant 0 : index
    %394 = vector.load %arg11[%c1_164, %c0_165, %c0_166] : memref<2x32x128xbf16, #tpu.memory_space<vmem>>, vector<1x32x128xbf16>
    %395 = vector.shape_cast %394 : vector<1x32x128xbf16> to vector<32x128xbf16>
    %cst_167 = arith.constant dense<0.000000e+00> : vector<8x128xf32>
    %396 = tpu.matmul %393, %395, %cst_167 {dimension_numbers = #tpu.dot_dimension_numbers<[1], [0], [0], [1], [0, 0, 1, 1], [], []>} : vector<8x32xbf16>, vector<32x128xbf16>, vector<8x128xf32> -> vector<8x128xf32>
    %c1_168 = arith.constant 1 : index
    %c0_169 = arith.constant 0 : index
    %c0_170 = arith.constant 0 : index
    %397 = vector.load %arg12[%c1_168, %c0_169, %c0_170] : memref<2x1x128xf32, #tpu.memory_space<vmem>>, vector<1x1x128xf32>
    %398 = vector.shape_cast %397 : vector<1x1x128xf32> to vector<1x128xf32>
    %399 = vector.broadcast %398 : vector<1x128xf32> to vector<8x128xf32>
    %400 = arith.addf %396, %399 : vector<8x128xf32>
    %cst_171 = arith.constant 5.000000e-01 : f32
    %401 = vector.broadcast %cst_171 : f32 to vector<8x128xf32>
    %402 = arith.mulf %401, %400 : vector<8x128xf32>
    %cst_172 = arith.constant 4.471500e-02 : f32
    %403 = vector.broadcast %cst_172 : f32 to vector<8x128xf32>
    %404 = arith.mulf %403, %400 : vector<8x128xf32>
    %405 = arith.mulf %404, %400 : vector<8x128xf32>
    %406 = arith.mulf %405, %400 : vector<8x128xf32>
    %407 = arith.addf %400, %406 : vector<8x128xf32>
    %cst_173 = arith.constant 0.797884583 : f32
    %408 = vector.broadcast %cst_173 : f32 to vector<8x128xf32>
    %409 = arith.mulf %408, %407 : vector<8x128xf32>
    %410 = math.tanh %409 : vector<8x128xf32>
    %cst_174 = arith.constant 1.000000e+00 : f32
    %411 = vector.broadcast %cst_174 : f32 to vector<8x128xf32>
    %412 = arith.addf %411, %410 : vector<8x128xf32>
    %413 = arith.mulf %402, %412 : vector<8x128xf32>
    %414 = arith.truncf %413 : vector<8x128xf32> to vector<8x128xbf16>
    %c1_175 = arith.constant 1 : index
    %c0_176 = arith.constant 0 : index
    %c0_177 = arith.constant 0 : index
    %415 = vector.load %arg13[%c1_175, %c0_176, %c0_177] : memref<2x128x32xbf16, #tpu.memory_space<vmem>>, vector<1x128x32xbf16>
    %416 = vector.shape_cast %415 : vector<1x128x32xbf16> to vector<128x32xbf16>
    %cst_178 = arith.constant dense<0.000000e+00> : vector<8x32xf32>
    %417 = tpu.matmul %414, %416, %cst_178 {dimension_numbers = #tpu.dot_dimension_numbers<[1], [0], [0], [1], [0, 0, 1, 1], [], []>} : vector<8x128xbf16>, vector<128x32xbf16>, vector<8x32xf32> -> vector<8x32xf32>
    %418 = arith.addf %366, %417 : vector<8x32xf32>
    %c1_179 = arith.constant 1 : index
    %c0_180 = arith.constant 0 : index
    %c0_181 = arith.constant 0 : index
    %419 = vector.load %arg14[%c1_179, %c0_180, %c0_181] : memref<2x1x32xf32, #tpu.memory_space<vmem>>, vector<1x1x32xf32>
    %420 = vector.shape_cast %419 : vector<1x1x32xf32> to vector<1x32xf32>
    %421 = vector.broadcast %420 : vector<1x32xf32> to vector<8x32xf32>
    %422 = arith.addf %418, %421 : vector<8x32xf32>
    %c0_182 = arith.constant 0 : index
    %c0_183 = arith.constant 0 : index
    %423 = vector.load %arg15[%c0_182, %c0_183] : memref<1x32xf32, #tpu.memory_space<vmem>>, vector<1x32xf32>
    %c0_184 = arith.constant 0 : index
    %c0_185 = arith.constant 0 : index
    %424 = vector.load %arg16[%c0_184, %c0_185] : memref<1x32xf32, #tpu.memory_space<vmem>>, vector<1x32xf32>
    %cst_186 = arith.constant dense<0.000000e+00> : vector<8xf32>
    %425 = vector.multi_reduction <add>, %422, %cst_186 [1] : vector<8x32xf32> to vector<8xf32>
    %426 = vector.shape_cast %425 : vector<8xf32> to vector<8x1xf32>
    %cst_187 = arith.constant 3.200000e+01 : f32
    %427 = vector.broadcast %cst_187 : f32 to vector<8x1xf32>
    %428 = arith.divf %426, %427 : vector<8x1xf32>
    %429 = vector.broadcast %428 : vector<8x1xf32> to vector<8x32xf32>
    %430 = arith.subf %422, %429 : vector<8x32xf32>
    %431 = arith.mulf %430, %430 : vector<8x32xf32>
    %cst_188 = arith.constant dense<0.000000e+00> : vector<8xf32>
    %432 = vector.multi_reduction <add>, %431, %cst_188 [1] : vector<8x32xf32> to vector<8xf32>
    %433 = vector.shape_cast %432 : vector<8xf32> to vector<8x1xf32>
    %cst_189 = arith.constant 3.200000e+01 : f32
    %434 = vector.broadcast %cst_189 : f32 to vector<8x1xf32>
    %435 = arith.divf %433, %434 : vector<8x1xf32>
    %436 = vector.broadcast %428 : vector<8x1xf32> to vector<8x32xf32>
    %437 = arith.subf %422, %436 : vector<8x32xf32>
    %cst_190 = arith.constant 9.99999974E-6 : f32
    %438 = vector.broadcast %cst_190 : f32 to vector<8x1xf32>
    %439 = arith.addf %435, %438 : vector<8x1xf32>
    %440 = math.rsqrt %439 : vector<8x1xf32>
    %441 = vector.broadcast %440 : vector<8x1xf32> to vector<8x32xf32>
    %442 = arith.mulf %437, %441 : vector<8x32xf32>
    %443 = vector.broadcast %423 : vector<1x32xf32> to vector<8x32xf32>
    %444 = arith.mulf %442, %443 : vector<8x32xf32>
    %445 = vector.broadcast %424 : vector<1x32xf32> to vector<8x32xf32>
    %446 = arith.addf %444, %445 : vector<8x32xf32>
    %447 = arith.truncf %446 : vector<8x32xf32> to vector<8x32xbf16>
    %c0_191 = arith.constant 0 : index
    %c0_192 = arith.constant 0 : index
    %448 = vector.load %arg17[%c0_191, %c0_192] : memref<32x128xbf16, #tpu.memory_space<vmem>>, vector<32x128xbf16>
    %cst_193 = arith.constant dense<0.000000e+00> : vector<8x128xf32>
    %449 = tpu.matmul %447, %448, %cst_193 {dimension_numbers = #tpu.dot_dimension_numbers<[1], [0], [0], [1], [0, 0, 1, 1], [], []>} : vector<8x32xbf16>, vector<32x128xbf16>, vector<8x128xf32> -> vector<8x128xf32>
    %c0_194 = arith.constant 0 : index
    %c0_195 = arith.constant 0 : index
    %450 = vector.load %arg18[%c0_194, %c0_195] : memref<1x128xf32, #tpu.memory_space<vmem>>, vector<1x128xf32>
    %451 = vector.broadcast %450 : vector<1x128xf32> to vector<8x128xf32>
    %452 = arith.addf %449, %451 : vector<8x128xf32>
    %c0_196 = arith.constant 0 : index
    %c0_197 = arith.constant 0 : index
    %453 = vector.load %arg19[%c0_196, %c0_197] : memref<8x128xf32, #tpu.memory_space<vmem>>, vector<8x128xf32>
    tpu.vector_store %arg19[%c0_196, %c0_197], %452 {strides = array<i32>} : memref<8x128xf32, #tpu.memory_space<vmem>>, vector<8x128xf32>,
    return
  }
  func.func @transform_0(%arg0: i32) -> (i32, i32) {
    %c0_i32 = arith.constant 0 : i32
    %c0_i32_0 = arith.constant 0 : i32
    return %arg0, %c0_i32 : i32, i32
  }
  func.func @transform_1(%arg0: i32) -> (i32, i32) {
    %c0_i32 = arith.constant 0 : i32
    %c0_i32_0 = arith.constant 0 : i32
    %c0_i32_1 = arith.constant 0 : i32
    return %c0_i32, %c0_i32_0 : i32, i32
  }
  func.func @transform_2(%arg0: i32) -> (i32, i32, i32) {
    %c0_i32 = arith.constant 0 : i32
    %c0_i32_0 = arith.constant 0 : i32
    %c0_i32_1 = arith.constant 0 : i32
    %c0_i32_2 = arith.constant 0 : i32
    return %c0_i32, %c0_i32_0, %c0_i32_1 : i32, i32, i32
  }
  func.func @transform_3(%arg0: i32) -> (i32, i32, i32) {
    %c0_i32 = arith.constant 0 : i32
    %c0_i32_0 = arith.constant 0 : i32
    %c0_i32_1 = arith.constant 0 : i32
    %c0_i32_2 = arith.constant 0 : i32
    return %c0_i32, %c0_i32_0, %c0_i32_1 : i32, i32, i32
  }
  func.func @transform_4(%arg0: i32) -> (i32, i32, i32) {
    %c0_i32 = arith.constant 0 : i32
    %c0_i32_0 = arith.constant 0 : i32
    %c0_i32_1 = arith.constant 0 : i32
    %c0_i32_2 = arith.constant 0 : i32
    return %c0_i32, %c0_i32_0, %c0_i32_1 : i32, i32, i32
  }
  func.func @transform_5(%arg0: i32) -> (i32, i32, i32) {
    %c0_i32 = arith.constant 0 : i32
    %c0_i32_0 = arith.constant 0 : i32
    %c0_i32_1 = arith.constant 0 : i32
    %c0_i32_2 = arith.constant 0 : i32
    return %c0_i32, %c0_i32_0, %c0_i32_1 : i32, i32, i32
  }
  func.func @transform_6(%arg0: i32) -> (i32, i32, i32, i32) {
    %c0_i32 = arith.constant 0 : i32
    %c0_i32_0 = arith.constant 0 : i32
    %c0_i32_1 = arith.constant 0 : i32
    %c0_i32_2 = arith.constant 0 : i32
    %c0_i32_3 = arith.constant 0 : i32
    return %c0_i32, %c0_i32_0, %c0_i32_1, %c0_i32_2 : i32, i32, i32, i32
  }
  func.func @transform_7(%arg0: i32) -> (i32, i32, i32) {
    %c0_i32 = arith.constant 0 : i32
    %c0_i32_0 = arith.constant 0 : i32
    %c0_i32_1 = arith.constant 0 : i32
    %c0_i32_2 = arith.constant 0 : i32
    return %c0_i32, %c0_i32_0, %c0_i32_1 : i32, i32, i32
  }
  func.func @transform_8(%arg0: i32) -> (i32, i32, i32) {
    %c0_i32 = arith.constant 0 : i32
    %c0_i32_0 = arith.constant 0 : i32
    %c0_i32_1 = arith.constant 0 : i32
    %c0_i32_2 = arith.constant 0 : i32
    return %c0_i32, %c0_i32_0, %c0_i32_1 : i32, i32, i32
  }
  func.func @transform_9(%arg0: i32) -> (i32, i32, i32) {
    %c0_i32 = arith.constant 0 : i32
    %c0_i32_0 = arith.constant 0 : i32
    %c0_i32_1 = arith.constant 0 : i32
    %c0_i32_2 = arith.constant 0 : i32
    return %c0_i32, %c0_i32_0, %c0_i32_1 : i32, i32, i32
  }
  func.func @transform_10(%arg0: i32) -> (i32, i32, i32) {
    %c0_i32 = arith.constant 0 : i32
    %c0_i32_0 = arith.constant 0 : i32
    %c0_i32_1 = arith.constant 0 : i32
    %c0_i32_2 = arith.constant 0 : i32
    return %c0_i32, %c0_i32_0, %c0_i32_1 : i32, i32, i32
  }
  func.func @transform_11(%arg0: i32) -> (i32, i32, i32) {
    %c0_i32 = arith.constant 0 : i32
    %c0_i32_0 = arith.constant 0 : i32
    %c0_i32_1 = arith.constant 0 : i32
    %c0_i32_2 = arith.constant 0 : i32
    return %c0_i32, %c0_i32_0, %c0_i32_1 : i32, i32, i32
  }
  func.func @transform_12(%arg0: i32) -> (i32, i32, i32) {
    %c0_i32 = arith.constant 0 : i32
    %c0_i32_0 = arith.constant 0 : i32
    %c0_i32_1 = arith.constant 0 : i32
    %c0_i32_2 = arith.constant 0 : i32
    return %c0_i32, %c0_i32_0, %c0_i32_1 : i32, i32, i32
  }
  func.func @transform_13(%arg0: i32) -> (i32, i32, i32) {
    %c0_i32 = arith.constant 0 : i32
    %c0_i32_0 = arith.constant 0 : i32
    %c0_i32_1 = arith.constant 0 : i32
    %c0_i32_2 = arith.constant 0 : i32
    return %c0_i32, %c0_i32_0, %c0_i32_1 : i32, i32, i32
  }
  func.func @transform_14(%arg0: i32) -> (i32, i32) {
    %c0_i32 = arith.constant 0 : i32
    %c0_i32_0 = arith.constant 0 : i32
    %c0_i32_1 = arith.constant 0 : i32
    return %c0_i32, %c0_i32_0 : i32, i32
  }
  func.func @transform_15(%arg0: i32) -> (i32, i32) {
    %c0_i32 = arith.constant 0 : i32
    %c0_i32_0 = arith.constant 0 : i32
    %c0_i32_1 = arith.constant 0 : i32
    return %c0_i32, %c0_i32_0 : i32, i32
  }
  func.func @transform_16(%arg0: i32) -> (i32, i32) {
    %c0_i32 = arith.constant 0 : i32
    %c0_i32_0 = arith.constant 0 : i32
    %c0_i32_1 = arith.constant 0 : i32
    return %c0_i32, %c0_i32_0 : i32, i32
  }
  func.func @transform_17(%arg0: i32) -> (i32, i32) {
    %c0_i32 = arith.constant 0 : i32
    %c0_i32_0 = arith.constant 0 : i32
    %c0_i32_1 = arith.constant 0 : i32
    return %c0_i32, %c0_i32_0 : i32, i32
  }
  func.func @transform_18(%arg0: i32) -> (i32, i32) {
    %c0_i32 = arith.constant 0 : i32
    %c0_i32_0 = arith.constant 0 : i32
    return %arg0, %c0_i32 : i32, i32
  }
}

</mosaic_0001>

<llo_original>
// kernel: forward.1
$region0: #{forward.1}
  #allocation0 [shape = 'u32[]', space=smem, size = 0x4, offset = 0x4, fixed_abs, tag = 'smem constant byte address 0x4 - core index']
  #allocation1 [shape = 'u32[144,128]{1,0:T(1,128)}', space=vmem, size = 0x12000, scoped, tag = 'internal scratch']
  %s0 = inlined_call_operand.vmem [shape: s32[16,1], index: 0, kind: input, shape index: {}]
  %s1 = inlined_call_operand.vmem [shape: f32[144,32], index: 1, kind: input, shape index: {}]
  %s2 = inlined_call_operand.vmem [shape: f32[2,1,32], index: 2, kind: input, shape index: {}]
  %s3 = inlined_call_operand.vmem [shape: f32[2,1,32], index: 3, kind: input, shape index: {}]
  %s4 = inlined_call_operand.vmem [shape: bf16[2,32,128], index: 4, kind: input, shape index: {}]
  %s5 = inlined_call_operand.vmem [shape: f32[2,1,128], index: 5, kind: input, shape index: {}]
  %s6 = inlined_call_operand.vmem [shape: bf16[2,4,8,32], index: 6, kind: input, shape index: {}]
  %s7 = inlined_call_operand.vmem [shape: f32[2,1,32], index: 7, kind: input, shape index: {}]
  %s8 = inlined_call_operand.vmem [shape: f32[2,1,32], index: 8, kind: input, shape index: {}]
  %s9 = inlined_call_operand.vmem [shape: f32[2,1,32], index: 9, kind: input, shape index: {}]
  %s10 = inlined_call_operand.vmem [shape: bf16[2,32,128], index: 10, kind: input, shape index: {}]
  %s11 = inlined_call_operand.vmem [shape: f32[2,1,128], index: 11, kind: input, shape index: {}]
  %s12 = inlined_call_operand.vmem [shape: bf16[2,128,32], index: 12, kind: input, shape index: {}]
  %s13 = inlined_call_operand.vmem [shape: f32[2,1,32], index: 13, kind: input, shape index: {}]
  %s14 = inlined_call_operand.vmem [shape: f32[1,32], index: 14, kind: input, shape index: {}]
  %s15 = inlined_call_operand.vmem [shape: f32[1,32], index: 15, kind: input, shape index: {}]
  %s16 = inlined_call_operand.vmem [shape: bf16[32,128], index: 16, kind: input, shape index: {}]
  %s17 = inlined_call_operand.vmem [shape: f32[1,128], index: 17, kind: input, shape index: {}]
  %s18 = inlined_call_operand.vmem [shape: f32[16,128], index: 18, kind: output, shape index: {}]
  %s19 = sld [smem:[#allocation0]]
  $region105: #{forward.1} parent=0
    _
  %s21 = ssub.s32 1, %s19
  %s22 = scalar_select 0, %s21, %s19
  loop: start=0, step=1, limit=4
  $region2: #{forward.1} parent=0 // loop_pre_header
    _
  $region3: #{forward.1} parent=0 // loop_header
    %s24 = sphi 0, %s28
    %p25 = scmp.ge.s32.totalorder %s24, 4
    %s34 = sphi 0, %s36
    %s37 = sphi 0, %s34
    %s38 = sphi 0, %s37
    %s54 = sphi 0, %s38
    %s58 = sphi 0, %s58
    %s60 = sphi 0, %s58
    %s61 = sphi 0, %s60
    %s75 = sphi 0, %s61
    %s79 = sphi 0, %s79
    %s81 = sphi 0, %s79
    %s82 = sphi 0, %s81
    %s96 = sphi 0, %s82
    %s100 = sphi 0, %s100
    %s102 = sphi 0, %s100
    %s103 = sphi 0, %s102
    %s117 = sphi 0, %s103
    %s121 = sphi 0, %s121
    %s123 = sphi 0, %s121
    %s124 = sphi 0, %s123
    %s138 = sphi 0, %s124
    %s142 = sphi 0, %s142
    %s144 = sphi 0, %s142
    %s145 = sphi 0, %s144
    %s159 = sphi 0, %s145
    %s163 = sphi 0, %s163
    %s165 = sphi 0, %s163
    %s166 = sphi 0, %s165
    %s180 = sphi 0, %s166
    %s184 = sphi 0, %s184
    %s186 = sphi 0, %s184
    %s187 = sphi 0, %s186
    %s201 = sphi 0, %s187
    %s205 = sphi 0, %s205
    %s207 = sphi 0, %s205
    %s208 = sphi 0, %s207
    %s222 = sphi 0, %s208
    %s226 = sphi 0, %s226
    %s228 = sphi 0, %s226
    %s229 = sphi 0, %s228
    %s243 = sphi 0, %s229
    %s247 = sphi 0, %s247
    %s249 = sphi 0, %s247
    %s250 = sphi 0, %s249
    %s264 = sphi 0, %s250
    %s268 = sphi 0, %s268
    %s270 = sphi 0, %s268
    %s271 = sphi 0, %s270
    %s285 = sphi 0, %s271
    %s289 = sphi 0, %s289
    %s291 = sphi 0, %s289
    %s292 = sphi 0, %s291
    %s306 = sphi 0, %s292
    %s310 = sphi 0, %s310
    %s312 = sphi 0, %s310
    %s313 = sphi 0, %s312
    %s327 = sphi 0, %s313
    %s331 = sphi 0, %s331
    %s333 = sphi 0, %s331
    %s334 = sphi 0, %s333
    %s348 = sphi 0, %s334
    %s352 = sphi 0, %s352
    %s354 = sphi 0, %s352
    %s355 = sphi 0, %s354
    %s369 = sphi 0, %s355
    %s373 = sphi 0, %s373
    %s375 = sphi 0, %s373
    %s376 = sphi 0, %s375
    %s390 = sphi 0, %s376
    %s394 = sphi 0, %s394
    %s396 = sphi 0, %s394
    %s397 = sphi 0, %s396
    %s411 = sphi 0, %s397
    %s417 = sphi 0, %s419
    %s420 = sphi 0, %s417
    %s421 = sphi 0, %s420
    %s437 = sphi 0, %s421
  $region4: #{forward.1} parent=0 // loop_header_branch
    %27 = sbr.rel (%p25) target = $region8
  $region5: #{forward.1} parent=0 // loop_body
    %s29 = ssub.s32 %s24, 1
    %s30 = ssub.s32 %s24, 2
    %s31 = sadd.s32 %s24, 1
    %s32 = ssub.s32 %s24, %s31
    %p33 = scmp.eq.s32.totalorder %s32, 0
    %s35 = sadd.s32 %s34, 1
    %s36 = scalar_select %p33, %s34, %s35
    %p39 = pneg %p33
    %p40 = scmp.eq.s32.totalorder %s24, 1
    %p41 = por %p39, %p40
    %p42 = scmp.ne.s32.totalorder %s34, %s37
    %p43 = scmp.eq.s32.totalorder %s24, 0
    %p44 = por %p42, %p43
    %p45 = scmp.ne.s32.totalorder %s34, %s37
    %p46 = scmp.eq.s32.totalorder %s29, 1
    %p47 = por %p45, %p46
    %p48 = scmp.ne.s32.totalorder %s37, %s38
    %p49 = scmp.eq.s32.totalorder %s29, 0
    %p50 = por %p48, %p49
    %p51 = scmp.ne.s32.totalorder %s37, %s38
    %p52 = scmp.eq.s32.totalorder %s30, 1
    %p53 = por %p51, %p52
    %p55 = scmp.ne.s32.totalorder %s38, %s54
    %p56 = scmp.eq.s32.totalorder %s30, 0
    %p57 = por %p55, %p56
    %s59 = sadd.s32 %s58, 1
    %p62 = scmp.eq.s32.totalorder %s24, 1
    %p63 = scmp.ne.s32.totalorder %s58, %s60
    %p64 = scmp.eq.s32.totalorder %s24, 0
    %p65 = por %p63, %p64
    %p66 = scmp.ne.s32.totalorder %s58, %s60
    %p67 = scmp.eq.s32.totalorder %s29, 1
    %p68 = por %p66, %p67
    %p69 = scmp.ne.s32.totalorder %s60, %s61
    %p70 = scmp.eq.s32.totalorder %s29, 0
    %p71 = por %p69, %p70
    %p72 = scmp.ne.s32.totalorder %s60, %s61
    %p73 = scmp.eq.s32.totalorder %s30, 1
    %p74 = por %p72, %p73
    %p76 = scmp.ne.s32.totalorder %s61, %s75
    %p77 = scmp.eq.s32.totalorder %s30, 0
    %p78 = por %p76, %p77
    %s80 = sadd.s32 %s79, 1
    %p83 = scmp.eq.s32.totalorder %s24, 1
    %p84 = scmp.ne.s32.totalorder %s79, %s81
    %p85 = scmp.eq.s32.totalorder %s24, 0
    %p86 = por %p84, %p85
    %p87 = scmp.ne.s32.totalorder %s79, %s81
    %p88 = scmp.eq.s32.totalorder %s29, 1
    %p89 = por %p87, %p88
    %p90 = scmp.ne.s32.totalorder %s81, %s82
    %p91 = scmp.eq.s32.totalorder %s29, 0
    %p92 = por %p90, %p91
    %p93 = scmp.ne.s32.totalorder %s81, %s82
    %p94 = scmp.eq.s32.totalorder %s30, 1
    %p95 = por %p93, %p94
    %p97 = scmp.ne.s32.totalorder %s82, %s96
    %p98 = scmp.eq.s32.totalorder %s30, 0
    %p99 = por %p97, %p98
    %s101 = sadd.s32 %s100, 1
    %p104 = scmp.eq.s32.totalorder %s24, 1
    %p105 = scmp.ne.s32.totalorder %s100, %s102
    %p106 = scmp.eq.s32.totalorder %s24, 0
    %p107 = por %p105, %p106
    %p108 = scmp.ne.s32.totalorder %s100, %s102
    %p109 = scmp.eq.s32.totalorder %s29, 1
    %p110 = por %p108, %p109
    %p111 = scmp.ne.s32.totalorder %s102, %s103
    %p112 = scmp.eq.s32.totalorder %s29, 0
    %p113 = por %p111, %p112
    %p114 = scmp.ne.s32.totalorder %s102, %s103
    %p115 = scmp.eq.s32.totalorder %s30, 1
    %p116 = por %p114, %p115
    %p118 = scmp.ne.s32.totalorder %s103, %s117
    %p119 = scmp.eq.s32.totalorder %s30, 0
    %p120 = por %p118, %p119
    %s122 = sadd.s32 %s121, 1
    %p125 = scmp.eq.s32.totalorder %s24, 1
    %p126 = scmp.ne.s32.totalorder %s121, %s123
    %p127 = scmp.eq.s32.totalorder %s24, 0
    %p128 = por %p126, %p127
    %p129 = scmp.ne.s32.totalorder %s121, %s123
    %p130 = scmp.eq.s32.totalorder %s29, 1
    %p131 = por %p129, %p130
    %p132 = scmp.ne.s32.totalorder %s123, %s124
    %p133 = scmp.eq.s32.totalorder %s29, 0
    %p134 = por %p132, %p133
    %p135 = scmp.ne.s32.totalorder %s123, %s124
    %p136 = scmp.eq.s32.totalorder %s30, 1
    %p137 = por %p135, %p136
    %p139 = scmp.ne.s32.totalorder %s124, %s138
    %p140 = scmp.eq.s32.totalorder %s30, 0
    %p141 = por %p139, %p140
    %s143 = sadd.s32 %s142, 1
    %p146 = scmp.eq.s32.totalorder %s24, 1
    %p147 = scmp.ne.s32.totalorder %s142, %s144
    %p148 = scmp.eq.s32.totalorder %s24, 0
    %p149 = por %p147, %p148
    %p150 = scmp.ne.s32.totalorder %s142, %s144
    %p151 = scmp.eq.s32.totalorder %s29, 1
    %p152 = por %p150, %p151
    %p153 = scmp.ne.s32.totalorder %s144, %s145
    %p154 = scmp.eq.s32.totalorder %s29, 0
    %p155 = por %p153, %p154
    %p156 = scmp.ne.s32.totalorder %s144, %s145
    %p157 = scmp.eq.s32.totalorder %s30, 1
    %p158 = por %p156, %p157
    %p160 = scmp.ne.s32.totalorder %s145, %s159
    %p161 = scmp.eq.s32.totalorder %s30, 0
    %p162 = por %p160, %p161
    %s164 = sadd.s32 %s163, 1
    %p167 = scmp.eq.s32.totalorder %s24, 1
    %p168 = scmp.ne.s32.totalorder %s163, %s165
    %p169 = scmp.eq.s32.totalorder %s24, 0
    %p170 = por %p168, %p169
    %p171 = scmp.ne.s32.totalorder %s163, %s165
    %p172 = scmp.eq.s32.totalorder %s29, 1
    %p173 = por %p171, %p172
    %p174 = scmp.ne.s32.totalorder %s165, %s166
    %p175 = scmp.eq.s32.totalorder %s29, 0
    %p176 = por %p174, %p175
    %p177 = scmp.ne.s32.totalorder %s165, %s166
    %p178 = scmp.eq.s32.totalorder %s30, 1
    %p179 = por %p177, %p178
    %p181 = scmp.ne.s32.totalorder %s166, %s180
    %p182 = scmp.eq.s32.totalorder %s30, 0
    %p183 = por %p181, %p182
    %s185 = sadd.s32 %s184, 1
    %p188 = scmp.eq.s32.totalorder %s24, 1
    %p189 = scmp.ne.s32.totalorder %s184, %s186
    %p190 = scmp.eq.s32.totalorder %s24, 0
    %p191 = por %p189, %p190
    %p192 = scmp.ne.s32.totalorder %s184, %s186
    %p193 = scmp.eq.s32.totalorder %s29, 1
    %p194 = por %p192, %p193
    %p195 = scmp.ne.s32.totalorder %s186, %s187
    %p196 = scmp.eq.s32.totalorder %s29, 0
    %p197 = por %p195, %p196
    %p198 = scmp.ne.s32.totalorder %s186, %s187
    %p199 = scmp.eq.s32.totalorder %s30, 1
    %p200 = por %p198, %p199
    %p202 = scmp.ne.s32.totalorder %s187, %s201
    %p203 = scmp.eq.s32.totalorder %s30, 0
    %p204 = por %p202, %p203
    %s206 = sadd.s32 %s205, 1
    %p209 = scmp.eq.s32.totalorder %s24, 1
    %p210 = scmp.ne.s32.totalorder %s205, %s207
    %p211 = scmp.eq.s32.totalorder %s24, 0
    %p212 = por %p210, %p211
    %p213 = scmp.ne.s32.totalorder %s205, %s207
    %p214 = scmp.eq.s32.totalorder %s29, 1
    %p215 = por %p213, %p214
    %p216 = scmp.ne.s32.totalorder %s207, %s208
    %p217 = scmp.eq.s32.totalorder %s29, 0
    %p218 = por %p216, %p217
    %p219 = scmp.ne.s32.totalorder %s207, %s208
    %p220 = scmp.eq.s32.totalorder %s30, 1
    %p221 = por %p219, %p220
    %p223 = scmp.ne.s32.totalorder %s208, %s222
    %p224 = scmp.eq.s32.totalorder %s30, 0
    %p225 = por %p223, %p224
    %s227 = sadd.s32 %s226, 1
    %p230 = scmp.eq.s32.totalorder %s24, 1
    %p231 = scmp.ne.s32.totalorder %s226, %s228
    %p232 = scmp.eq.s32.totalorder %s24, 0
    %p233 = por %p231, %p232
    %p234 = scmp.ne.s32.totalorder %s226, %s228
    %p235 = scmp.eq.s32.totalorder %s29, 1
    %p236 = por %p234, %p235
    %p237 = scmp.ne.s32.totalorder %s228, %s229
    %p238 = scmp.eq.s32.totalorder %s29, 0
    %p239 = por %p237, %p238
    %p240 = scmp.ne.s32.totalorder %s228, %s229
    %p241 = scmp.eq.s32.totalorder %s30, 1
    %p242 = por %p240, %p241
    %p244 = scmp.ne.s32.totalorder %s229, %s243
    %p245 = scmp.eq.s32.totalorder %s30, 0
    %p246 = por %p244, %p245
    %s248 = sadd.s32 %s247, 1
    %p251 = scmp.eq.s32.totalorder %s24, 1
    %p252 = scmp.ne.s32.totalorder %s247, %s249
    %p253 = scmp.eq.s32.totalorder %s24, 0
    %p254 = por %p252, %p253
    %p255 = scmp.ne.s32.totalorder %s247, %s249
    %p256 = scmp.eq.s32.totalorder %s29, 1
    %p257 = por %p255, %p256
    %p258 = scmp.ne.s32.totalorder %s249, %s250
    %p259 = scmp.eq.s32.totalorder %s29, 0
    %p260 = por %p258, %p259
    %p261 = scmp.ne.s32.totalorder %s249, %s250
    %p262 = scmp.eq.s32.totalorder %s30, 1
    %p263 = por %p261, %p262
    %p265 = scmp.ne.s32.totalorder %s250, %s264
    %p266 = scmp.eq.s32.totalorder %s30, 0
    %p267 = por %p265, %p266
    %s269 = sadd.s32 %s268, 1
    %p272 = scmp.eq.s32.totalorder %s24, 1
    %p273 = scmp.ne.s32.totalorder %s268, %s270
    %p274 = scmp.eq.s32.totalorder %s24, 0
    %p275 = por %p273, %p274
    %p276 = scmp.ne.s32.totalorder %s268, %s270
    %p277 = scmp.eq.s32.totalorder %s29, 1
    %p278 = por %p276, %p277
    %p279 = scmp.ne.s32.totalorder %s270, %s271
    %p280 = scmp.eq.s32.totalorder %s29, 0
    %p281 = por %p279, %p280
    %p282 = scmp.ne.s32.totalorder %s270, %s271
    %p283 = scmp.eq.s32.totalorder %s30, 1
    %p284 = por %p282, %p283
    %p286 = scmp.ne.s32.totalorder %s271, %s285
    %p287 = scmp.eq.s32.totalorder %s30, 0
    %p288 = por %p286, %p287
    %s290 = sadd.s32 %s289, 1
    %p293 = scmp.eq.s32.totalorder %s24, 1
    %p294 = scmp.ne.s32.totalorder %s289, %s291
    %p295 = scmp.eq.s32.totalorder %s24, 0
    %p296 = por %p294, %p295
    %p297 = scmp.ne.s32.totalorder %s289, %s291
    %p298 = scmp.eq.s32.totalorder %s29, 1
    %p299 = por %p297, %p298
    %p300 = scmp.ne.s32.totalorder %s291, %s292
    %p301 = scmp.eq.s32.totalorder %s29, 0
    %p302 = por %p300, %p301
    %p303 = scmp.ne.s32.totalorder %s291, %s292
    %p304 = scmp.eq.s32.totalorder %s30, 1
    %p305 = por %p303, %p304
    %p307 = scmp.ne.s32.totalorder %s292, %s306
    %p308 = scmp.eq.s32.totalorder %s30, 0
    %p309 = por %p307, %p308
    %s311 = sadd.s32 %s310, 1
    %p314 = scmp.eq.s32.totalorder %s24, 1
    %p315 = scmp.ne.s32.totalorder %s310, %s312
    %p316 = scmp.eq.s32.totalorder %s24, 0
    %p317 = por %p315, %p316
    %p318 = scmp.ne.s32.totalorder %s310, %s312
    %p319 = scmp.eq.s32.totalorder %s29, 1
    %p320 = por %p318, %p319
    %p321 = scmp.ne.s32.totalorder %s312, %s313
    %p322 = scmp.eq.s32.totalorder %s29, 0
    %p323 = por %p321, %p322
    %p324 = scmp.ne.s32.totalorder %s312, %s313
    %p325 = scmp.eq.s32.totalorder %s30, 1
    %p326 = por %p324, %p325
    %p328 = scmp.ne.s32.totalorder %s313, %s327
    %p329 = scmp.eq.s32.totalorder %s30, 0
    %p330 = por %p328, %p329
    %s332 = sadd.s32 %s331, 1
    %p335 = scmp.eq.s32.totalorder %s24, 1
    %p336 = scmp.ne.s32.totalorder %s331, %s333
    %p337 = scmp.eq.s32.totalorder %s24, 0
    %p338 = por %p336, %p337
    %p339 = scmp.ne.s32.totalorder %s331, %s333
    %p340 = scmp.eq.s32.totalorder %s29, 1
    %p341 = por %p339, %p340
    %p342 = scmp.ne.s32.totalorder %s333, %s334
    %p343 = scmp.eq.s32.totalorder %s29, 0
    %p344 = por %p342, %p343
    %p345 = scmp.ne.s32.totalorder %s333, %s334
    %p346 = scmp.eq.s32.totalorder %s30, 1
    %p347 = por %p345, %p346
    %p349 = scmp.ne.s32.totalorder %s334, %s348
    %p350 = scmp.eq.s32.totalorder %s30, 0
    %p351 = por %p349, %p350
    %s353 = sadd.s32 %s352, 1
    %p356 = scmp.eq.s32.totalorder %s24, 1
    %p357 = scmp.ne.s32.totalorder %s352, %s354
    %p358 = scmp.eq.s32.totalorder %s24, 0
    %p359 = por %p357, %p358
    %p360 = scmp.ne.s32.totalorder %s352, %s354
    %p361 = scmp.eq.s32.totalorder %s29, 1
    %p362 = por %p360, %p361
    %p363 = scmp.ne.s32.totalorder %s354, %s355
    %p364 = scmp.eq.s32.totalorder %s29, 0
    %p365 = por %p363, %p364
    %p366 = scmp.ne.s32.totalorder %s354, %s355
    %p367 = scmp.eq.s32.totalorder %s30, 1
    %p368 = por %p366, %p367
    %p370 = scmp.ne.s32.totalorder %s355, %s369
    %p371 = scmp.eq.s32.totalorder %s30, 0
    %p372 = por %p370, %p371
    %s374 = sadd.s32 %s373, 1
    %p377 = scmp.eq.s32.totalorder %s24, 1
    %p378 = scmp.ne.s32.totalorder %s373, %s375
    %p379 = scmp.eq.s32.totalorder %s24, 0
    %p380 = por %p378, %p379
    %p381 = scmp.ne.s32.totalorder %s373, %s375
    %p382 = scmp.eq.s32.totalorder %s29, 1
    %p383 = por %p381, %p382
    %p384 = scmp.ne.s32.totalorder %s375, %s376
    %p385 = scmp.eq.s32.totalorder %s29, 0
    %p386 = por %p384, %p385
    %p387 = scmp.ne.s32.totalorder %s375, %s376
    %p388 = scmp.eq.s32.totalorder %s30, 1
    %p389 = por %p387, %p388
    %p391 = scmp.ne.s32.totalorder %s376, %s390
    %p392 = scmp.eq.s32.totalorder %s30, 0
    %p393 = por %p391, %p392
    %s395 = sadd.s32 %s394, 1
    %p398 = scmp.eq.s32.totalorder %s24, 1
    %p399 = scmp.ne.s32.totalorder %s394, %s396
    %p400 = scmp.eq.s32.totalorder %s24, 0
    %p401 = por %p399, %p400
    %p402 = scmp.ne.s32.totalorder %s394, %s396
    %p403 = scmp.eq.s32.totalorder %s29, 1
    %p404 = por %p402, %p403
    %p405 = scmp.ne.s32.totalorder %s396, %s397
    %p406 = scmp.eq.s32.totalorder %s29, 0
    %p407 = por %p405, %p406
    %p408 = scmp.ne.s32.totalorder %s396, %s397
    %p409 = scmp.eq.s32.totalorder %s30, 1
    %p410 = por %p408, %p409
    %p412 = scmp.ne.s32.totalorder %s397, %s411
    %p413 = scmp.eq.s32.totalorder %s30, 0
    %p414 = por %p412, %p413
    %s415 = ssub.s32 %s24, %s31
    %p416 = scmp.eq.s32.totalorder %s415, 0
    %s418 = sadd.s32 %s417, 1
    %s419 = scalar_select %p416, %s417, %s418
    %p422 = pneg %p416
    %p423 = scmp.eq.s32.totalorder %s24, 1
    %p424 = por %p422, %p423
    %p425 = scmp.ne.s32.totalorder %s417, %s420
    %p426 = scmp.eq.s32.totalorder %s24, 0
    %p427 = por %p425, %p426
    %p428 = scmp.ne.s32.totalorder %s417, %s420
    %p429 = scmp.eq.s32.totalorder %s29, 1
    %p430 = por %p428, %p429
    %p431 = scmp.ne.s32.totalorder %s420, %s421
    %p432 = scmp.eq.s32.totalorder %s29, 0
    %p433 = por %p431, %p432
    %p434 = scmp.ne.s32.totalorder %s420, %s421
    %p435 = scmp.eq.s32.totalorder %s30, 1
    %p436 = por %p434, %p435
    %p438 = scmp.ne.s32.totalorder %s421, %s437
    %p439 = scmp.eq.s32.totalorder %s30, 0
    %p440 = por %p438, %p439
    %p441 = scmp.le.s32.totalorder 1, %s24
    %p442 = scmp.lt.s32.totalorder %s24, 3
    %p443 = pnand %p441, %p442
    %p444 = pneg %p443
    // Predicated region
    $region9: #{forward.1} parent=5 // pred_check
      _
    $region10: #{forward.1} parent=5 // pred_check_branch
      %446 = sbr.rel (%p443) target = $region12
    $region11: #{forward.1} parent=5 // pred_region
      %s447 = ssub.s32 %s24, 1
      // Predicated region
      $region13: #{forward.1} parent=11 // pred_check
        %p448 = pneg %p71
      $region14: #{forward.1} parent=11 // pred_check_branch
        %450 = sbr.rel (%p448) target = $region16
      $region15: #{forward.1} parent=11 // pred_region
        _
      $region16: #{forward.1} parent=11 // pred_fallthru
        _
      // Predicated region
      $region17: #{forward.1} parent=11 // pred_check
        %p451 = pneg %p92
      $region18: #{forward.1} parent=11 // pred_check_branch
        %453 = sbr.rel (%p451) target = $region20
      $region19: #{forward.1} parent=11 // pred_region
        _
      $region20: #{forward.1} parent=11 // pred_fallthru
        _
      // Predicated region
      $region21: #{forward.1} parent=11 // pred_check
        %p454 = pneg %p113
      $region22: #{forward.1} parent=11 // pred_check_branch
        %456 = sbr.rel (%p454) target = $region24
      $region23: #{forward.1} parent=11 // pred_region
        _
      $region24: #{forward.1} parent=11 // pred_fallthru
        _
      // Predicated region
      $region25: #{forward.1} parent=11 // pred_check
        %p457 = pneg %p134
      $region26: #{forward.1} parent=11 // pred_check_branch
        %459 = sbr.rel (%p457) target = $region28
      $region27: #{forward.1} parent=11 // pred_region
        _
      $region28: #{forward.1} parent=11 // pred_fallthru
        _
      // Predicated region
      $region29: #{forward.1} parent=11 // pred_check
        %p460 = pneg %p155
      $region30: #{forward.1} parent=11 // pred_check_branch
        %462 = sbr.rel (%p460) target = $region32
      $region31: #{forward.1} parent=11 // pred_region
        _
      $region32: #{forward.1} parent=11 // pred_fallthru
        _
      // Predicated region
      $region33: #{forward.1} parent=11 // pred_check
        %p463 = pneg %p176
      $region34: #{forward.1} parent=11 // pred_check_branch
        %465 = sbr.rel (%p463) target = $region36
      $region35: #{forward.1} parent=11 // pred_region
        _
      $region36: #{forward.1} parent=11 // pred_fallthru
        _
      // Predicated region
      $region37: #{forward.1} parent=11 // pred_check
        %p466 = pneg %p197
      $region38: #{forward.1} parent=11 // pred_check_branch
        %468 = sbr.rel (%p466) target = $region40
      $region39: #{forward.1} parent=11 // pred_region
        _
      $region40: #{forward.1} parent=11 // pred_fallthru
        _
      // Predicated region
      $region41: #{forward.1} parent=11 // pred_check
        %p469 = pneg %p218
      $region42: #{forward.1} parent=11 // pred_check_branch
        %471 = sbr.rel (%p469) target = $region44
      $region43: #{forward.1} parent=11 // pred_region
        _
      $region44: #{forward.1} parent=11 // pred_fallthru
        _
      // Predicated region
      $region45: #{forward.1} parent=11 // pred_check
        %p472 = pneg %p239
      $region46: #{forward.1} parent=11 // pred_check_branch
        %474 = sbr.rel (%p472) target = $region48
      $region47: #{forward.1} parent=11 // pred_region
        _
      $region48: #{forward.1} parent=11 // pred_fallthru
        _
      // Predicated region
      $region49: #{forward.1} parent=11 // pred_check
        %p475 = pneg %p260
      $region50: #{forward.1} parent=11 // pred_check_branch
        %477 = sbr.rel (%p475) target = $region52
      $region51: #{forward.1} parent=11 // pred_region
        _
      $region52: #{forward.1} parent=11 // pred_fallthru
        _
      // Predicated region
      $region53: #{forward.1} parent=11 // pred_check
        %p478 = pneg %p281
      $region54: #{forward.1} parent=11 // pred_check_branch
        %480 = sbr.rel (%p478) target = $region56
      $region55: #{forward.1} parent=11 // pred_region
        _
      $region56: #{forward.1} parent=11 // pred_fallthru
        _
      // Predicated region
      $region57: #{forward.1} parent=11 // pred_check
        %p481 = pneg %p302
      $region58: #{forward.1} parent=11 // pred_check_branch
        %483 = sbr.rel (%p481) target = $region60
      $region59: #{forward.1} parent=11 // pred_region
        _
      $region60: #{forward.1} parent=11 // pred_fallthru
        _
      // Predicated region
      $region61: #{forward.1} parent=11 // pred_check
        %p484 = pneg %p323
      $region62: #{forward.1} parent=11 // pred_check_branch
        %486 = sbr.rel (%p484) target = $region64
      $region63: #{forward.1} parent=11 // pred_region
        _
      $region64: #{forward.1} parent=11 // pred_fallthru
        _
      // Predicated region
      $region65: #{forward.1} parent=11 // pred_check
        %p487 = pneg %p344
      $region66: #{forward.1} parent=11 // pred_check_branch
        %489 = sbr.rel (%p487) target = $region68
      $region67: #{forward.1} parent=11 // pred_region
        _
      $region68: #{forward.1} parent=11 // pred_fallthru
        _
      // Predicated region
      $region69: #{forward.1} parent=11 // pred_check
        %p490 = pneg %p365
      $region70: #{forward.1} parent=11 // pred_check_branch
        %492 = sbr.rel (%p490) target = $region72
      $region71: #{forward.1} parent=11 // pred_region
        _
      $region72: #{forward.1} parent=11 // pred_fallthru
        _
      // Predicated region
      $region73: #{forward.1} parent=11 // pred_check
        %p493 = pneg %p386
      $region74: #{forward.1} parent=11 // pred_check_branch
        %495 = sbr.rel (%p493) target = $region76
      $region75: #{forward.1} parent=11 // pred_region
        _
      $region76: #{forward.1} parent=11 // pred_fallthru
        _
      // Predicated region
      $region77: #{forward.1} parent=11 // pred_check
        %p496 = pneg %p407
      $region78: #{forward.1} parent=11 // pred_check_branch
        %498 = sbr.rel (%p496) target = $region80
      $region79: #{forward.1} parent=11 // pred_region
        _
      $region80: #{forward.1} parent=11 // pred_fallthru
        _
    $region12: #{forward.1} parent=5 // pred_fallthru
      _
    %p499 = scmp.lt.s32.totalorder %s24, 2
    // Predicated region
    $region81: #{forward.1} parent=5 // pred_check
      %p500 = pneg %p499
    $region82: #{forward.1} parent=5 // pred_check_branch
      %502 = sbr.rel (%p500) target = $region84
    $region83: #{forward.1} parent=5 // pred_region
      // Predicated region
      $region85: #{forward.1} parent=83 // pred_check
        %p503 = pneg %p44
      $region86: #{forward.1} parent=83 // pred_check_branch
        %505 = sbr.rel (%p503) target = $region88
      $region87: #{forward.1} parent=83 // pred_region
        %p506 = scmp.lt.s32.totalorder %s24, 1
        %s507 = scalar_select %p506, %s24, 1
        %s508 = smul.addr %s507, 8
        %s509 = scalar_lea.vmem %s0, %s508
      $region88: #{forward.1} parent=83 // pred_fallthru
        _
    $region84: #{forward.1} parent=5 // pred_fallthru
      _
    %p510 = scmp.le.s32.totalorder 1, %s24
    %p511 = scmp.lt.s32.totalorder %s24, 3
    %p512 = pnand %p510, %p511
    %p513 = pneg %p512
    // Predicated region
    $region89: #{forward.1} parent=5 // pred_check
      _
    $region90: #{forward.1} parent=5 // pred_check_branch
      %515 = sbr.rel (%p512) target = $region92
    $region91: #{forward.1} parent=5 // pred_region
      %s516 = ssub.s32 %s24, 1
      %p517 = scmp.lt.s32.totalorder %s29, 1
      %s518 = scalar_select %p517, %s29, 1
      %s519 = smul.addr %s518, 8
      %s520 = scalar_lea.vmem %s0, %s519
      %p521 = pneg %p50
      %p522 = pneg %p47
      %p523 = pneg %p71
      %p524 = pneg %p68
      %p525 = pneg %p92
      %p526 = pneg %p89
      %p527 = pneg %p113
      %p528 = pneg %p110
      %p529 = pneg %p134
      %p530 = pneg %p131
      %p531 = pneg %p155
      %p532 = pneg %p152
      %p533 = pneg %p176
      %p534 = pneg %p173
      %p535 = pneg %p197
      %p536 = pneg %p194
      %p537 = pneg %p218
      %p538 = pneg %p215
      %p539 = pneg %p239
      %p540 = pneg %p236
      %p541 = pneg %p260
      %p542 = pneg %p257
      %p543 = pneg %p281
      %p544 = pneg %p278
      %p545 = pneg %p302
      %p546 = pneg %p299
      %p547 = pneg %p323
      %p548 = pneg %p320
      %p549 = pneg %p344
      %p550 = pneg %p341
      %p551 = pneg %p365
      %p552 = pneg %p362
      %p553 = pneg %p386
      %p554 = pneg %p383
      %p555 = pneg %p407
      %p556 = pneg %p404
      %p557 = pneg %p433
      %p558 = pneg %p430
      %p559 = scmp.lt.s32.totalorder %s29, 1
      %s560 = scalar_select %p559, %s29, 1
      %s561 = smul.addr %s560, 8
      %s562 = scalar_lea.vmem %s18, %s561
      %p563 = scmp.lt.s32.totalorder %s29, 1
      %s564 = scalar_select %p563, %s29, 1
      %s565 = smul.addr %s564, 8
      %s566 = scalar_lea.vmem %s0, %s565
      %p567 = scmp.lt.s32.totalorder %s29, 1
      %s568 = scalar_select %p567, %s29, 1
      %s569 = smul.addr %s568, 8
      %s570 = scalar_lea.vmem %s18, %s569
      %v572 = vld [vmem:[%s566] sm:$0xff]
      %v573 = vlaneseq
      %v574 = vand.u32 %v573, 127
      %v575 = vadd.s32 %v574, 128
      %v576 = vlaneseq
      %v577 = vshrl.u32 %v576, 7
      %578 = vset.pattern.permute.xlu0 0
      %579 = vperm.xlu0 %578, %v572
      %v580 = vpop.permute.xlu0 %579
      %vm581 = vcmp.eq.s32.totalorder %v574, %v580
      %vm582 = vcmp.eq.s32.totalorder %v575, %v580
      %v583 = vadd.s32 %v577, 128
      %vm584 = vcmp.eq.s32.totalorder %v574, %v583
      %vm585 = vcmp.eq.s32.totalorder %v575, %v583
      %vm586 = vmor %vm581, %vm584
      %vm587 = vmor %vm582, %vm585
      %v588 = vsel %vm586, 1, 0
      %v589 = vsel %vm587, 1, 0
      %v590 = vcvt.s32.f32 %v588
      %v591 = vcvt.s32.f32 %v589
      %v592 = vld [vmem:[%s1] sm:$0xff]
      %v593 = vld [vmem:[%s1 + $0x8] sm:$0xff]
      %v594 = vld [vmem:[%s1 + $0x10] sm:$0xff]
      %v595 = vld [vmem:[%s1 + $0x18] sm:$0xff]
      %v596 = vld [vmem:[%s1 + $0x20] sm:$0xff]
      %v597 = vld [vmem:[%s1 + $0x28] sm:$0xff]
      %v598 = vld [vmem:[%s1 + $0x30] sm:$0xff]
      %v599 = vld [vmem:[%s1 + $0x38] sm:$0xff]
      %v600 = vld [vmem:[%s1 + $0x40] sm:$0xff]
      %v601 = vld [vmem:[%s1 + $0x48] sm:$0xff]
      %v602 = vld [vmem:[%s1 + $0x50] sm:$0xff]
      %v603 = vld [vmem:[%s1 + $0x58] sm:$0xff]
      %v604 = vld [vmem:[%s1 + $0x60] sm:$0xff]
      %v605 = vld [vmem:[%s1 + $0x68] sm:$0xff]
      %v606 = vld [vmem:[%s1 + $0x70] sm:$0xff]
      %v607 = vld [vmem:[%s1 + $0x78] sm:$0xff]
      %v608 = vld [vmem:[%s1 + $0x80] sm:$0xff]
      %v609 = vld [vmem:[%s1 + $0x88] sm:$0xff]
      %vm610 = vcmask 130048
      %v612 = vsel %vm610, %v591, 0
      %614 = vmatprep.subr.mxu0 0.0
      %615 = vmatpush1.msra.mxu0 %v592
      %616 = vmatprep.subr.mxu0 0.0
      %617 = vmatpush1.msra.mxu0 %v593
      %618 = vmatprep.subr.mxu0 0.0
      %619 = vmatpush1.msra.mxu0 %v594
      %620 = vmatprep.subr.mxu0 0.0
      %621 = vmatpush1.msra.mxu0 %v595
      %622 = vmatprep.subr.mxu0 0.0
      %623 = vmatpush1.msra.mxu0 %v596
      %624 = vmatprep.subr.mxu0 0.0
      %625 = vmatpush1.msra.mxu0 %v597
      %626 = vmatprep.subr.mxu0 0.0
      %627 = vmatpush1.msra.mxu0 %v598
      %628 = vmatprep.subr.mxu0 0.0
      %629 = vmatpush1.msra.mxu0 %v599
      %630 = vmatprep.subr.mxu0 0.0
      %631 = vmatpush1.msra.mxu0 %v600
      %632 = vmatprep.subr.mxu0 0.0
      %633 = vmatpush1.msra.mxu0 %v601
      %634 = vmatprep.subr.mxu0 0.0
      %635 = vmatpush1.msra.mxu0 %v602
      %636 = vmatprep.subr.mxu0 0.0
      %637 = vmatpush1.msra.mxu0 %v603
      %638 = vmatprep.subr.mxu0 0.0
      %639 = vmatpush1.msra.mxu0 %v604
      %640 = vmatprep.subr.mxu0 0.0
      %641 = vmatpush1.msra.mxu0 %v605
      %642 = vmatprep.subr.mxu0 0.0
      %643 = vmatpush1.msra.mxu0 %v606
      %644 = vmatprep.subr.mxu0 0.0
      %645 = vmatpush1.msra.mxu0 %v607
      %646 = vmatprep.subr.mxu0 0.0
      %647 = vmatpush1.msra.mxu0 %v608
      %648 = vmatprep.subr.mxu0 0.0
      %649 = vmatpush1.msra.mxu0 %v609
      %650 = vmatprep.subr.mxu0 0.0
      %651 = vmatpush1.msra.mxu0 0.0
      %652 = vmatprep.subr.mxu0 0.0
      %653 = vmatpush1.msra.mxu0 0.0
      %654 = vmatprep.subr.mxu0 0.0
      %655 = vmatpush1.msra.mxu0 0.0
      %656 = vmatprep.subr.mxu0 0.0
      %657 = vmatpush1.msra.mxu0 0.0
      %658 = vmatprep.subr.mxu0 0.0
      %659 = vmatpush1.msra.mxu0 0.0
      %660 = vmatprep.subr.mxu0 0.0
      %661 = vmatpush1.msra.mxu0 0.0
      %662 = vmatprep.subr.mxu0 0.0
      %663 = vmatpush1.msra.mxu0 0.0
      %664 = vmatprep.subr.mxu0 0.0
      %665 = vmatpush1.msra.mxu0 0.0
      %666 = vmatprep.subr.mxu0 0.0
      %667 = vmatpush1.msra.mxu0 0.0
      %668 = vmatprep.subr.mxu0 0.0
      %669 = vmatpush1.msra.mxu0 0.0
      %670 = vmatprep.subr.mxu0 0.0
      %671 = vmatpush1.msra.mxu0 0.0
      %672 = vmatprep.subr.mxu0 0.0
      %673 = vmatpush1.msra.mxu0 0.0
      %674 = vmatprep.subr.mxu0 0.0
      %675 = vmatpush1.msra.mxu0 0.0
      %676 = vmatprep.subr.mxu0 0.0
      %677 = vmatpush1.msra.mxu0 0.0
      %678 = vmatprep.mubr.f32.mxu0 %v612
      %679 = vmatmul.mubr.f32.gmra.mrb[0].mxu0 %v590
      %v680 = vpop.f32.mrb[0].mxu0
      %v681 = vadd.f32 0.0, %v680
      %v682 = vpop.f32.mrb[0].mxu0
      %683 = vdwg.mxu0
      %vm684 = vcmp.le.s32.totalorder %v574, %v577
      %v685 = vsel %vm684, 0.0, -100000.0
      %v686 = vld [vmem:[%s2] sm:$0x1]
      %v687 = vld [vmem:[%s3] sm:$0x1]
      %vm688 = vcmask 261120
      %v689 = vsel %vm688, %v681, 0.0
      %690 = vadd.xlane.f32.xlu0 %v689
      %v691 = vpop.xlane.xlu0 %690
      %v692 = vrcp.pop 32.0
      %v693 = vmul.f32 %v691, %v692
      %v694 = vsub.f32 %v681, %v693
      %v695 = vmul.f32 %v694, %v694
      %v696 = vsel %vm688, %v695, 0.0
      %697 = vadd.xlane.f32.xlu0 %v696
      %v698 = vpop.xlane.xlu0 %697
      %v699 = vmul.f32 %v698, %v692
      %v700 = vadd.f32 %v699, 1e-05
      %v701 = vrsqrt.pop %v700
      %v702 = vmul.f32 %v694, %v701
      %v704 = vlaneseq
      %v705 = vshrl.u32 %v704, 7
      %v706 = vsub.s32 0, %v705
      %v707 = vrot.slane %v686, %v706
      %v709 = vmul.f32 %v702, %v707
      %v711 = vlaneseq
      %v712 = vshrl.u32 %v711, 7
      %v713 = vsub.s32 0, %v712
      %v714 = vrot.slane %v687, %v713
      %v716 = vadd.f32 %v709, %v714
      %v717 = vpack.c.bf16 %v716, %v716
      %v718 = vld [vmem:[%s4] sm:$0xf]
      %v719 = vld [vmem:[%s4 + $0x4] sm:$0xf]
      %v720 = vld [vmem:[%s4 + $0x8] sm:$0xf]
      %v721 = vld [vmem:[%s4 + $0xc] sm:$0xf]
      %v722 = vld [vmem:[%s5] sm:$0x1]
      %v724 = vlaneseq
      %v725 = vshrl.u32 %v724, 7
      %v726 = vsub.s32 0, %v725
      %v727 = vrot.slane %v722, %v726
      %v733 = vunpack.c.l.b16 %v718
      %v734 = vunpack.c.l.b16 %v719
      %v735 = vunpack.c.l.b16 %v720
      %v736 = vunpack.c.l.b16 %v721
      %v737 = vpack.c.b16 %v734, %v733
      %v738 = vpack.c.b16 %v736, %v735
      %v742 = vsel %vm688, %v717, 0
      %744 = vmatprep.subr.bf16.mxu0 0
      %745 = vmatpush1.bf16.msra.mxu0 %v737
      %746 = vmatprep.subr.bf16.mxu0 0
      %747 = vmatpush1.bf16.msra.mxu0 %v738
      %748 = vmatprep.subr.bf16.mxu0 0
      %749 = vmatpush1.bf16.msra.mxu0 0
      %750 = vmatprep.subr.bf16.mxu0 0
      %751 = vmatpush1.bf16.msra.mxu0 0
      %752 = vmatprep.subr.bf16.mxu0 0
      %753 = vmatpush1.bf16.msra.mxu0 0
      %754 = vmatprep.subr.bf16.mxu0 0
      %755 = vmatpush1.bf16.msra.mxu0 0
      %756 = vmatprep.subr.bf16.mxu0 0
      %757 = vmatpush1.bf16.msra.mxu0 0
      %758 = vmatprep.subr.bf16.mxu0 0
      %759 = vmatpush1.bf16.msra.mxu0 0
      %760 = vmatprep.subr.bf16.mxu0 0
      %761 = vmatpush1.bf16.msra.mxu0 0
      %762 = vmatprep.subr.bf16.mxu0 0
      %763 = vmatpush1.bf16.msra.mxu0 0
      %764 = vmatprep.subr.bf16.mxu0 0
      %765 = vmatpush1.bf16.msra.mxu0 0
      %766 = vmatprep.subr.bf16.mxu0 0
      %767 = vmatpush1.bf16.msra.mxu0 0
      %768 = vmatprep.subr.bf16.mxu0 0
      %769 = vmatpush1.bf16.msra.mxu0 0
      %770 = vmatprep.subr.bf16.mxu0 0
      %771 = vmatpush1.bf16.msra.mxu0 0
      %772 = vmatprep.subr.bf16.mxu0 0
      %773 = vmatpush1.bf16.msra.mxu0 0
      %774 = vmatprep.subr.bf16.mxu0 0
      %775 = vmatpush1.bf16.msra.mxu0 0
      %776 = vmatprep.mubr.bf16.mxu0 0
      %777 = vmatmul.mubr.bf16.gmra.mrb[0].mxu0 %v742
      %v778 = vpop.f32.mrb[0].mxu0
      %v779 = vadd.f32 %v727, %v778
      %v780 = vpop.f32.mrb[0].mxu0
      %v781 = vpop.f32.mrb[0].mxu0
      %v782 = vpop.f32.mrb[0].mxu0
      %783 = vdwg.mxu0
      %v784 = vld [vmem:[%s7] sm:$0x1]
      %v785 = vpack.c.bf16 %v779, %v779
      %787 = vrot.lane.b32.xlu0 %v785, 96
      %v788 = vpop.permute.xlu0 %787
      %vm789 = vcmask 64512
      %v791 = vsel %vm789, %v785, 0
      %v794 = vsel %vm789, %v788, 0
      %796 = vmatprep.subr.bf16.mxu0 0
      %797 = vmatpush1.bf16.xpose.msra.mxu0 %v794
      %798 = vmatprep.subr.bf16.mxu0 0
      %799 = vmatpush1.bf16.xpose.msra.mxu0 0
      %800 = vmatprep.subr.bf16.mxu0 0
      %801 = vmatpush1.bf16.xpose.msra.mxu0 0
      %802 = vmatprep.subr.bf16.mxu0 0
      %803 = vmatpush1.bf16.xpose.msra.mxu0 0
      %804 = vmatprep.subr.bf16.mxu0 0
      %805 = vmatpush1.bf16.xpose.msra.mxu0 0
      %806 = vmatprep.subr.bf16.mxu0 0
      %807 = vmatpush1.bf16.xpose.msra.mxu0 0
      %808 = vmatprep.subr.bf16.mxu0 0
      %809 = vmatpush1.bf16.xpose.msra.mxu0 0
      %810 = vmatprep.subr.bf16.mxu0 0
      %811 = vmatpush1.bf16.xpose.msra.mxu0 0
      %812 = vmatprep.subr.bf16.mxu0 0
      %813 = vmatpush1.bf16.xpose.msra.mxu0 0
      %814 = vmatprep.subr.bf16.mxu0 0
      %815 = vmatpush1.bf16.xpose.msra.mxu0 0
      %816 = vmatprep.subr.bf16.mxu0 0
      %817 = vmatpush1.bf16.xpose.msra.mxu0 0
      %818 = vmatprep.subr.bf16.mxu0 0
      %819 = vmatpush1.bf16.xpose.msra.mxu0 0
      %820 = vmatprep.subr.bf16.mxu0 0
      %821 = vmatpush1.bf16.xpose.msra.mxu0 0
      %822 = vmatprep.subr.bf16.mxu0 0
      %823 = vmatpush1.bf16.xpose.msra.mxu0 0
      %824 = vmatprep.subr.bf16.mxu0 0
      %825 = vmatpush1.bf16.xpose.msra.mxu0 0
      %826 = vmatprep.subr.bf16.mxu0 0
      %827 = vmatpush1.bf16.xpose.msra.mxu0 0
      %828 = vmatprep.mubr.bf16.mxu0 0
      %829 = vmatmul.mubr.bf16.gmra.mrb[0].mxu0 %v791
      %v830 = vpop.f32.mrb[0].mxu0
      %v831 = vadd.f32 0.0, %v830
      %v832 = vpop.f32.mrb[0].mxu0
      %v833 = vpop.f32.mrb[0].mxu0
      %v834 = vpop.f32.mrb[0].mxu0
      %835 = vdwg.mxu0
      %v836 = vmul.f32 %v831, 0.35355338
      %v837 = vadd.f32 %v836, %v685
      %v838 = vsel %vm789, %v837, -inf
      %839 = vmax.xlane.f32.xlu0 %v838
      %v840 = vpop.xlane.xlu0 %839
      %v841 = vsub.f32 %v837, %v840
      %v842 = vmul.f32 %v841, 1.442695
      %v843 = vpow.pop %v842
      %v844 = vsel %vm789, %v843, 0.0
      %845 = vadd.xlane.f32.xlu0 %v844
      %v846 = vpop.xlane.xlu0 %845
      %v847 = vrcp.pop %v846
      %v848 = vmul.f32 %v843, %v847
      %v849 = vpack.c.bf16 %v848, %v848
      %850 = vrot.lane.b32.xlu0 %v785, 64
      %v851 = vpop.permute.xlu0 %850
      %v853 = vsel %vm789, %v849, 0
      %vm855 = vcmask 1043456
      %v857 = vsel %vm855, %v851, 0
      %859 = vmatprep.subr.bf16.mxu0 0
      %860 = vmatpush1.bf16.msra.mxu0 %v857
      %861 = vmatprep.subr.bf16.mxu0 0
      %862 = vmatpush1.bf16.msra.mxu0 0
      %863 = vmatprep.subr.bf16.mxu0 0
      %864 = vmatpush1.bf16.msra.mxu0 0
      %865 = vmatprep.subr.bf16.mxu0 0
      %866 = vmatpush1.bf16.msra.mxu0 0
      %867 = vmatprep.subr.bf16.mxu0 0
      %868 = vmatpush1.bf16.msra.mxu0 0
      %869 = vmatprep.subr.bf16.mxu0 0
      %870 = vmatpush1.bf16.msra.mxu0 0
      %871 = vmatprep.subr.bf16.mxu0 0
      %872 = vmatpush1.bf16.msra.mxu0 0
      %873 = vmatprep.subr.bf16.mxu0 0
      %874 = vmatpush1.bf16.msra.mxu0 0
      %875 = vmatprep.subr.bf16.mxu0 0
      %876 = vmatpush1.bf16.msra.mxu0 0
      %877 = vmatprep.subr.bf16.mxu0 0
      %878 = vmatpush1.bf16.msra.mxu0 0
      %879 = vmatprep.subr.bf16.mxu0 0
      %880 = vmatpush1.bf16.msra.mxu0 0
      %881 = vmatprep.subr.bf16.mxu0 0
      %882 = vmatpush1.bf16.msra.mxu0 0
      %883 = vmatprep.subr.bf16.mxu0 0
      %884 = vmatpush1.bf16.msra.mxu0 0
      %885 = vmatprep.subr.bf16.mxu0 0
      %886 = vmatpush1.bf16.msra.mxu0 0
      %887 = vmatprep.subr.bf16.mxu0 0
      %888 = vmatpush1.bf16.msra.mxu0 0
      %889 = vmatprep.subr.bf16.mxu0 0
      %890 = vmatpush1.bf16.msra.mxu0 0
      %891 = vmatprep.mubr.bf16.mxu0 0
      %892 = vmatmul.mubr.bf16.gmra.mrb[0].mxu0 %v853
      %v893 = vpop.f32.mrb[0].mxu0
      %v894 = vadd.f32 0.0, %v893
      %v895 = vpop.f32.mrb[0].mxu0
      %v896 = vpop.f32.mrb[0].mxu0
      %v897 = vpop.f32.mrb[0].mxu0
      %898 = vdwg.mxu0
      %v899 = vpack.c.bf16 %v894, %v894
      %v900 = vld [vmem:[%s6] sm:$0xf]
      %v902 = vsel %vm789, %v899, 0
      %v905 = vsel %vm855, %v900, 0
      %907 = vmatprep.subr.bf16.mxu0 0
      %908 = vmatpush1.bf16.msra.mxu0 %v905
      %909 = vmatprep.subr.bf16.mxu0 0
      %910 = vmatpush1.bf16.msra.mxu0 0
      %911 = vmatprep.subr.bf16.mxu0 0
      %912 = vmatpush1.bf16.msra.mxu0 0
      %913 = vmatprep.subr.bf16.mxu0 0
      %914 = vmatpush1.bf16.msra.mxu0 0
      %915 = vmatprep.subr.bf16.mxu0 0
      %916 = vmatpush1.bf16.msra.mxu0 0
      %917 = vmatprep.subr.bf16.mxu0 0
      %918 = vmatpush1.bf16.msra.mxu0 0
      %919 = vmatprep.subr.bf16.mxu0 0
      %920 = vmatpush1.bf16.msra.mxu0 0
      %921 = vmatprep.subr.bf16.mxu0 0
      %922 = vmatpush1.bf16.msra.mxu0 0
      %923 = vmatprep.subr.bf16.mxu0 0
      %924 = vmatpush1.bf16.msra.mxu0 0
      %925 = vmatprep.subr.bf16.mxu0 0
      %926 = vmatpush1.bf16.msra.mxu0 0
      %927 = vmatprep.subr.bf16.mxu0 0
      %928 = vmatpush1.bf16.msra.mxu0 0
      %929 = vmatprep.subr.bf16.mxu0 0
      %930 = vmatpush1.bf16.msra.mxu0 0
      %931 = vmatprep.subr.bf16.mxu0 0
      %932 = vmatpush1.bf16.msra.mxu0 0
      %933 = vmatprep.subr.bf16.mxu0 0
      %934 = vmatpush1.bf16.msra.mxu0 0
      %935 = vmatprep.subr.bf16.mxu0 0
      %936 = vmatpush1.bf16.msra.mxu0 0
      %937 = vmatprep.subr.bf16.mxu0 0
      %938 = vmatpush1.bf16.msra.mxu0 0
      %939 = vmatprep.mubr.bf16.mxu0 0
      %940 = vmatmul.mubr.bf16.gmra.mrb[0].mxu0 %v902
      %v941 = vpop.f32.mrb[0].mxu0
      %v942 = vadd.f32 0.0, %v941
      %v943 = vpop.f32.mrb[0].mxu0
      %v944 = vpop.f32.mrb[0].mxu0
      %v945 = vpop.f32.mrb[0].mxu0
      %946 = vdwg.mxu0
      %v948 = vlaneseq
      %v949 = vshrl.u32 %v948, 7
      %v950 = vsub.s32 0, %v949
      %v951 = vrot.slane %v784, %v950
      %v953 = vadd.f32 %v951, %v942
      %954 = vrot.lane.b32.xlu0 %v785, 120
      %v955 = vpop.permute.xlu0 %954
      %956 = vrot.lane.b32.xlu0 %v785, 88
      %v957 = vpop.permute.xlu0 %956
      %v959 = vsel %vm789, %v955, 0
      %v962 = vsel %vm789, %v957, 0
      %964 = vmatprep.subr.bf16.mxu0 0
      %965 = vmatpush1.bf16.xpose.msra.mxu0 %v962
      %966 = vmatprep.subr.bf16.mxu0 0
      %967 = vmatpush1.bf16.xpose.msra.mxu0 0
      %968 = vmatprep.subr.bf16.mxu0 0
      %969 = vmatpush1.bf16.xpose.msra.mxu0 0
      %970 = vmatprep.subr.bf16.mxu0 0
      %971 = vmatpush1.bf16.xpose.msra.mxu0 0
      %972 = vmatprep.subr.bf16.mxu0 0
      %973 = vmatpush1.bf16.xpose.msra.mxu0 0
      %974 = vmatprep.subr.bf16.mxu0 0
      %975 = vmatpush1.bf16.xpose.msra.mxu0 0
      %976 = vmatprep.subr.bf16.mxu0 0
      %977 = vmatpush1.bf16.xpose.msra.mxu0 0
      %978 = vmatprep.subr.bf16.mxu0 0
      %979 = vmatpush1.bf16.xpose.msra.mxu0 0
      %980 = vmatprep.subr.bf16.mxu0 0
      %981 = vmatpush1.bf16.xpose.msra.mxu0 0
      %982 = vmatprep.subr.bf16.mxu0 0
      %983 = vmatpush1.bf16.xpose.msra.mxu0 0
      %984 = vmatprep.subr.bf16.mxu0 0
      %985 = vmatpush1.bf16.xpose.msra.mxu0 0
      %986 = vmatprep.subr.bf16.mxu0 0
      %987 = vmatpush1.bf16.xpose.msra.mxu0 0
      %988 = vmatprep.subr.bf16.mxu0 0
      %989 = vmatpush1.bf16.xpose.msra.mxu0 0
      %990 = vmatprep.subr.bf16.mxu0 0
      %991 = vmatpush1.bf16.xpose.msra.mxu0 0
      %992 = vmatprep.subr.bf16.mxu0 0
      %993 = vmatpush1.bf16.xpose.msra.mxu0 0
      %994 = vmatprep.subr.bf16.mxu0 0
      %995 = vmatpush1.bf16.xpose.msra.mxu0 0
      %996 = vmatprep.mubr.bf16.mxu0 0
      %997 = vmatmul.mubr.bf16.gmra.mrb[0].mxu0 %v959
      %v998 = vpop.f32.mrb[0].mxu0
      %v999 = vadd.f32 0.0, %v998
      %v1000 = vpop.f32.mrb[0].mxu0
      %v1001 = vpop.f32.mrb[0].mxu0
      %v1002 = vpop.f32.mrb[0].mxu0
      %1003 = vdwg.mxu0
      %v1004 = vmul.f32 %v999, 0.35355338
      %v1005 = vadd.f32 %v1004, %v685
      %v1006 = vsel %vm789, %v1005, -inf
      %1007 = vmax.xlane.f32.xlu0 %v1006
      %v1008 = vpop.xlane.xlu0 %1007
      %v1009 = vsub.f32 %v1005, %v1008
      %v1010 = vmul.f32 %v1009, 1.442695
      %v1011 = vpow.pop %v1010
      %v1012 = vsel %vm789, %v1011, 0.0
      %1013 = vadd.xlane.f32.xlu0 %v1012
      %v1014 = vpop.xlane.xlu0 %1013
      %v1015 = vrcp.pop %v1014
      %v1016 = vmul.f32 %v1011, %v1015
      %v1017 = vpack.c.bf16 %v1016, %v1016
      %1018 = vrot.lane.b32.xlu0 %v785, 56
      %v1019 = vpop.permute.xlu0 %1018
      %v1021 = vsel %vm789, %v1017, 0
      %v1024 = vsel %vm855, %v1019, 0
      %1026 = vmatprep.subr.bf16.mxu0 0
      %1027 = vmatpush1.bf16.msra.mxu0 %v1024
      %1028 = vmatprep.subr.bf16.mxu0 0
      %1029 = vmatpush1.bf16.msra.mxu0 0
      %1030 = vmatprep.subr.bf16.mxu0 0
      %1031 = vmatpush1.bf16.msra.mxu0 0
      %1032 = vmatprep.subr.bf16.mxu0 0
      %1033 = vmatpush1.bf16.msra.mxu0 0
      %1034 = vmatprep.subr.bf16.mxu0 0
      %1035 = vmatpush1.bf16.msra.mxu0 0
      %1036 = vmatprep.subr.bf16.mxu0 0
      %1037 = vmatpush1.bf16.msra.mxu0 0
      %1038 = vmatprep.subr.bf16.mxu0 0
      %1039 = vmatpush1.bf16.msra.mxu0 0
      %1040 = vmatprep.subr.bf16.mxu0 0
      %1041 = vmatpush1.bf16.msra.mxu0 0
      %1042 = vmatprep.subr.bf16.mxu0 0
      %1043 = vmatpush1.bf16.msra.mxu0 0
      %1044 = vmatprep.subr.bf16.mxu0 0
      %1045 = vmatpush1.bf16.msra.mxu0 0
      %1046 = vmatprep.subr.bf16.mxu0 0
      %1047 = vmatpush1.bf16.msra.mxu0 0
      %1048 = vmatprep.subr.bf16.mxu0 0
      %1049 = vmatpush1.bf16.msra.mxu0 0
      %1050 = vmatprep.subr.bf16.mxu0 0
      %1051 = vmatpush1.bf16.msra.mxu0 0
      %1052 = vmatprep.subr.bf16.mxu0 0
      %1053 = vmatpush1.bf16.msra.mxu0 0
      %1054 = vmatprep.subr.bf16.mxu0 0
      %1055 = vmatpush1.bf16.msra.mxu0 0
      %1056 = vmatprep.subr.bf16.mxu0 0
      %1057 = vmatpush1.bf16.msra.mxu0 0
      %1058 = vmatprep.mubr.bf16.mxu0 0
      %1059 = vmatmul.mubr.bf16.gmra.mrb[0].mxu0 %v1021
      %v1060 = vpop.f32.mrb[0].mxu0
      %v1061 = vadd.f32 0.0, %v1060
      %v1062 = vpop.f32.mrb[0].mxu0
      %v1063 = vpop.f32.mrb[0].mxu0
      %v1064 = vpop.f32.mrb[0].mxu0
      %1065 = vdwg.mxu0
      %v1066 = vpack.c.bf16 %v1061, %v1061
      %s1067 = scalar_lea.vmem %s6, 4
      %v1068 = vld [vmem:[%s1067] sm:$0xf]
      %v1070 = vsel %vm789, %v1066, 0
      %v1073 = vsel %vm855, %v1068, 0
      %1075 = vmatprep.subr.bf16.mxu0 0
      %1076 = vmatpush1.bf16.msra.mxu0 %v1073
      %1077 = vmatprep.subr.bf16.mxu0 0
      %1078 = vmatpush1.bf16.msra.mxu0 0
      %1079 = vmatprep.subr.bf16.mxu0 0
      %1080 = vmatpush1.bf16.msra.mxu0 0
      %1081 = vmatprep.subr.bf16.mxu0 0
      %1082 = vmatpush1.bf16.msra.mxu0 0
      %1083 = vmatprep.subr.bf16.mxu0 0
      %1084 = vmatpush1.bf16.msra.mxu0 0
      %1085 = vmatprep.subr.bf16.mxu0 0
      %1086 = vmatpush1.bf16.msra.mxu0 0
      %1087 = vmatprep.subr.bf16.mxu0 0
      %1088 = vmatpush1.bf16.msra.mxu0 0
      %1089 = vmatprep.subr.bf16.mxu0 0
      %1090 = vmatpush1.bf16.msra.mxu0 0
      %1091 = vmatprep.subr.bf16.mxu0 0
      %1092 = vmatpush1.bf16.msra.mxu0 0
      %1093 = vmatprep.subr.bf16.mxu0 0
      %1094 = vmatpush1.bf16.msra.mxu0 0
      %1095 = vmatprep.subr.bf16.mxu0 0
      %1096 = vmatpush1.bf16.msra.mxu0 0
      %1097 = vmatprep.subr.bf16.mxu0 0
      %1098 = vmatpush1.bf16.msra.mxu0 0
      %1099 = vmatprep.subr.bf16.mxu0 0
      %1100 = vmatpush1.bf16.msra.mxu0 0
      %1101 = vmatprep.subr.bf16.mxu0 0
      %1102 = vmatpush1.bf16.msra.mxu0 0
      %1103 = vmatprep.subr.bf16.mxu0 0
      %1104 = vmatpush1.bf16.msra.mxu0 0
      %1105 = vmatprep.subr.bf16.mxu0 0
      %1106 = vmatpush1.bf16.msra.mxu0 0
      %1107 = vmatprep.mubr.bf16.mxu0 0
      %1108 = vmatmul.mubr.bf16.gmra.mrb[0].mxu0 %v1070
      %v1109 = vpop.f32.mrb[0].mxu0
      %v1110 = vadd.f32 0.0, %v1109
      %v1111 = vpop.f32.mrb[0].mxu0
      %v1112 = vpop.f32.mrb[0].mxu0
      %v1113 = vpop.f32.mrb[0].mxu0
      %1114 = vdwg.mxu0
      %v1115 = vadd.f32 %v953, %v1110
      %1116 = vrot.lane.b32.xlu0 %v785, 112
      %v1117 = vpop.permute.xlu0 %1116
      %1118 = vrot.lane.b32.xlu0 %v785, 80
      %v1119 = vpop.permute.xlu0 %1118
      %v1121 = vsel %vm789, %v1117, 0
      %v1124 = vsel %vm789, %v1119, 0
      %1126 = vmatprep.subr.bf16.mxu0 0
      %1127 = vmatpush1.bf16.xpose.msra.mxu0 %v1124
      %1128 = vmatprep.subr.bf16.mxu0 0
      %1129 = vmatpush1.bf16.xpose.msra.mxu0 0
      %1130 = vmatprep.subr.bf16.mxu0 0
      %1131 = vmatpush1.bf16.xpose.msra.mxu0 0
      %1132 = vmatprep.subr.bf16.mxu0 0
      %1133 = vmatpush1.bf16.xpose.msra.mxu0 0
      %1134 = vmatprep.subr.bf16.mxu0 0
      %1135 = vmatpush1.bf16.xpose.msra.mxu0 0
      %1136 = vmatprep.subr.bf16.mxu0 0
      %1137 = vmatpush1.bf16.xpose.msra.mxu0 0
      %1138 = vmatprep.subr.bf16.mxu0 0
      %1139 = vmatpush1.bf16.xpose.msra.mxu0 0
      %1140 = vmatprep.subr.bf16.mxu0 0
      %1141 = vmatpush1.bf16.xpose.msra.mxu0 0
      %1142 = vmatprep.subr.bf16.mxu0 0
      %1143 = vmatpush1.bf16.xpose.msra.mxu0 0
      %1144 = vmatprep.subr.bf16.mxu0 0
      %1145 = vmatpush1.bf16.xpose.msra.mxu0 0
      %1146 = vmatprep.subr.bf16.mxu0 0
      %1147 = vmatpush1.bf16.xpose.msra.mxu0 0
      %1148 = vmatprep.subr.bf16.mxu0 0
      %1149 = vmatpush1.bf16.xpose.msra.mxu0 0
      %1150 = vmatprep.subr.bf16.mxu0 0
      %1151 = vmatpush1.bf16.xpose.msra.mxu0 0
      %1152 = vmatprep.subr.bf16.mxu0 0
      %1153 = vmatpush1.bf16.xpose.msra.mxu0 0
      %1154 = vmatprep.subr.bf16.mxu0 0
      %1155 = vmatpush1.bf16.xpose.msra.mxu0 0
      %1156 = vmatprep.subr.bf16.mxu0 0
      %1157 = vmatpush1.bf16.xpose.msra.mxu0 0
      %1158 = vmatprep.mubr.bf16.mxu0 0
      %1159 = vmatmul.mubr.bf16.gmra.mrb[0].mxu0 %v1121
      %v1160 = vpop.f32.mrb[0].mxu0
      %v1161 = vadd.f32 0.0, %v1160
      %v1162 = vpop.f32.mrb[0].mxu0
      %v1163 = vpop.f32.mrb[0].mxu0
      %v1164 = vpop.f32.mrb[0].mxu0
      %1165 = vdwg.mxu0
      %v1166 = vmul.f32 %v1161, 0.35355338
      %v1167 = vadd.f32 %v1166, %v685
      %v1168 = vsel %vm789, %v1167, -inf
      %1169 = vmax.xlane.f32.xlu0 %v1168
      %v1170 = vpop.xlane.xlu0 %1169
      %v1171 = vsub.f32 %v1167, %v1170
      %v1172 = vmul.f32 %v1171, 1.442695
      %v1173 = vpow.pop %v1172
      %v1174 = vsel %vm789, %v1173, 0.0
      %1175 = vadd.xlane.f32.xlu0 %v1174
      %v1176 = vpop.xlane.xlu0 %1175
      %v1177 = vrcp.pop %v1176
      %v1178 = vmul.f32 %v1173, %v1177
      %v1179 = vpack.c.bf16 %v1178, %v1178
      %1180 = vrot.lane.b32.xlu0 %v785, 48
      %v1181 = vpop.permute.xlu0 %1180
      %v1183 = vsel %vm789, %v1179, 0
      %v1186 = vsel %vm855, %v1181, 0
      %1188 = vmatprep.subr.bf16.mxu0 0
      %1189 = vmatpush1.bf16.msra.mxu0 %v1186
      %1190 = vmatprep.subr.bf16.mxu0 0
      %1191 = vmatpush1.bf16.msra.mxu0 0
      %1192 = vmatprep.subr.bf16.mxu0 0
      %1193 = vmatpush1.bf16.msra.mxu0 0
      %1194 = vmatprep.subr.bf16.mxu0 0
      %1195 = vmatpush1.bf16.msra.mxu0 0
      %1196 = vmatprep.subr.bf16.mxu0 0
      %1197 = vmatpush1.bf16.msra.mxu0 0
      %1198 = vmatprep.subr.bf16.mxu0 0
      %1199 = vmatpush1.bf16.msra.mxu0 0
      %1200 = vmatprep.subr.bf16.mxu0 0
      %1201 = vmatpush1.bf16.msra.mxu0 0
      %1202 = vmatprep.subr.bf16.mxu0 0
      %1203 = vmatpush1.bf16.msra.mxu0 0
      %1204 = vmatprep.subr.bf16.mxu0 0
      %1205 = vmatpush1.bf16.msra.mxu0 0
      %1206 = vmatprep.subr.bf16.mxu0 0
      %1207 = vmatpush1.bf16.msra.mxu0 0
      %1208 = vmatprep.subr.bf16.mxu0 0
      %1209 = vmatpush1.bf16.msra.mxu0 0
      %1210 = vmatprep.subr.bf16.mxu0 0
      %1211 = vmatpush1.bf16.msra.mxu0 0
      %1212 = vmatprep.subr.bf16.mxu0 0
      %1213 = vmatpush1.bf16.msra.mxu0 0
      %1214 = vmatprep.subr.bf16.mxu0 0
      %1215 = vmatpush1.bf16.msra.mxu0 0
      %1216 = vmatprep.subr.bf16.mxu0 0
      %1217 = vmatpush1.bf16.msra.mxu0 0
      %1218 = vmatprep.subr.bf16.mxu0 0
      %1219 = vmatpush1.bf16.msra.mxu0 0
      %1220 = vmatprep.mubr.bf16.mxu0 0
      %1221 = vmatmul.mubr.bf16.gmra.mrb[0].mxu0 %v1183
      %v1222 = vpop.f32.mrb[0].mxu0
      %v1223 = vadd.f32 0.0, %v1222
      %v1224 = vpop.f32.mrb[0].mxu0
      %v1225 = vpop.f32.mrb[0].mxu0
      %v1226 = vpop.f32.mrb[0].mxu0
      %1227 = vdwg.mxu0
      %v1228 = vpack.c.bf16 %v1223, %v1223
      %s1229 = scalar_lea.vmem %s6, 8
      %v1230 = vld [vmem:[%s1229] sm:$0xf]
      %v1232 = vsel %vm789, %v1228, 0
      %v1235 = vsel %vm855, %v1230, 0
      %1237 = vmatprep.subr.bf16.mxu0 0
      %1238 = vmatpush1.bf16.msra.mxu0 %v1235
      %1239 = vmatprep.subr.bf16.mxu0 0
      %1240 = vmatpush1.bf16.msra.mxu0 0
      %1241 = vmatprep.subr.bf16.mxu0 0
      %1242 = vmatpush1.bf16.msra.mxu0 0
      %1243 = vmatprep.subr.bf16.mxu0 0
      %1244 = vmatpush1.bf16.msra.mxu0 0
      %1245 = vmatprep.subr.bf16.mxu0 0
      %1246 = vmatpush1.bf16.msra.mxu0 0
      %1247 = vmatprep.subr.bf16.mxu0 0
      %1248 = vmatpush1.bf16.msra.mxu0 0
      %1249 = vmatprep.subr.bf16.mxu0 0
      %1250 = vmatpush1.bf16.msra.mxu0 0
      %1251 = vmatprep.subr.bf16.mxu0 0
      %1252 = vmatpush1.bf16.msra.mxu0 0
      %1253 = vmatprep.subr.bf16.mxu0 0
      %1254 = vmatpush1.bf16.msra.mxu0 0
      %1255 = vmatprep.subr.bf16.mxu0 0
      %1256 = vmatpush1.bf16.msra.mxu0 0
      %1257 = vmatprep.subr.bf16.mxu0 0
      %1258 = vmatpush1.bf16.msra.mxu0 0
      %1259 = vmatprep.subr.bf16.mxu0 0
      %1260 = vmatpush1.bf16.msra.mxu0 0
      %1261 = vmatprep.subr.bf16.mxu0 0
      %1262 = vmatpush1.bf16.msra.mxu0 0
      %1263 = vmatprep.subr.bf16.mxu0 0
      %1264 = vmatpush1.bf16.msra.mxu0 0
      %1265 = vmatprep.subr.bf16.mxu0 0
      %1266 = vmatpush1.bf16.msra.mxu0 0
      %1267 = vmatprep.subr.bf16.mxu0 0
      %1268 = vmatpush1.bf16.msra.mxu0 0
      %1269 = vmatprep.mubr.bf16.mxu0 0
      %1270 = vmatmul.mubr.bf16.gmra.mrb[0].mxu0 %v1232
      %v1271 = vpop.f32.mrb[0].mxu0
      %v1272 = vadd.f32 0.0, %v1271
      %v1273 = vpop.f32.mrb[0].mxu0
      %v1274 = vpop.f32.mrb[0].mxu0
      %v1275 = vpop.f32.mrb[0].mxu0
      %1276 = vdwg.mxu0
      %v1277 = vadd.f32 %v1115, %v1272
      %1278 = vrot.lane.b32.xlu0 %v785, 104
      %v1279 = vpop.permute.xlu0 %1278
      %1280 = vrot.lane.b32.xlu0 %v785, 72
      %v1281 = vpop.permute.xlu0 %1280
      %v1283 = vsel %vm789, %v1279, 0
      %v1286 = vsel %vm789, %v1281, 0
      %1288 = vmatprep.subr.bf16.mxu0 0
      %1289 = vmatpush1.bf16.xpose.msra.mxu0 %v1286
      %1290 = vmatprep.subr.bf16.mxu0 0
      %1291 = vmatpush1.bf16.xpose.msra.mxu0 0
      %1292 = vmatprep.subr.bf16.mxu0 0
      %1293 = vmatpush1.bf16.xpose.msra.mxu0 0
      %1294 = vmatprep.subr.bf16.mxu0 0
      %1295 = vmatpush1.bf16.xpose.msra.mxu0 0
      %1296 = vmatprep.subr.bf16.mxu0 0
      %1297 = vmatpush1.bf16.xpose.msra.mxu0 0
      %1298 = vmatprep.subr.bf16.mxu0 0
      %1299 = vmatpush1.bf16.xpose.msra.mxu0 0
      %1300 = vmatprep.subr.bf16.mxu0 0
      %1301 = vmatpush1.bf16.xpose.msra.mxu0 0
      %1302 = vmatprep.subr.bf16.mxu0 0
      %1303 = vmatpush1.bf16.xpose.msra.mxu0 0
      %1304 = vmatprep.subr.bf16.mxu0 0
      %1305 = vmatpush1.bf16.xpose.msra.mxu0 0
      %1306 = vmatprep.subr.bf16.mxu0 0
      %1307 = vmatpush1.bf16.xpose.msra.mxu0 0
      %1308 = vmatprep.subr.bf16.mxu0 0
      %1309 = vmatpush1.bf16.xpose.msra.mxu0 0
      %1310 = vmatprep.subr.bf16.mxu0 0
      %1311 = vmatpush1.bf16.xpose.msra.mxu0 0
      %1312 = vmatprep.subr.bf16.mxu0 0
      %1313 = vmatpush1.bf16.xpose.msra.mxu0 0
      %1314 = vmatprep.subr.bf16.mxu0 0
      %1315 = vmatpush1.bf16.xpose.msra.mxu0 0
      %1316 = vmatprep.subr.bf16.mxu0 0
      %1317 = vmatpush1.bf16.xpose.msra.mxu0 0
      %1318 = vmatprep.subr.bf16.mxu0 0
      %1319 = vmatpush1.bf16.xpose.msra.mxu0 0
      %1320 = vmatprep.mubr.bf16.mxu0 0
      %1321 = vmatmul.mubr.bf16.gmra.mrb[0].mxu0 %v1283
      %v1322 = vpop.f32.mrb[0].mxu0
      %v1323 = vadd.f32 0.0, %v1322
      %v1324 = vpop.f32.mrb[0].mxu0
      %v1325 = vpop.f32.mrb[0].mxu0
      %v1326 = vpop.f32.mrb[0].mxu0
      %1327 = vdwg.mxu0
      %v1328 = vmul.f32 %v1323, 0.35355338
      %v1329 = vadd.f32 %v1328, %v685
      %v1330 = vsel %vm789, %v1329, -inf
      %1331 = vmax.xlane.f32.xlu0 %v1330
      %v1332 = vpop.xlane.xlu0 %1331
      %v1333 = vsub.f32 %v1329, %v1332
      %v1334 = vmul.f32 %v1333, 1.442695
      %v1335 = vpow.pop %v1334
      %v1336 = vsel %vm789, %v1335, 0.0
      %1337 = vadd.xlane.f32.xlu0 %v1336
      %v1338 = vpop.xlane.xlu0 %1337
      %v1339 = vrcp.pop %v1338
      %v1340 = vmul.f32 %v1335, %v1339
      %v1341 = vpack.c.bf16 %v1340, %v1340
      %1342 = vrot.lane.b32.xlu0 %v785, 40
      %v1343 = vpop.permute.xlu0 %1342
      %v1345 = vsel %vm789, %v1341, 0
      %v1348 = vsel %vm855, %v1343, 0
      %1350 = vmatprep.subr.bf16.mxu0 0
      %1351 = vmatpush1.bf16.msra.mxu0 %v1348
      %1352 = vmatprep.subr.bf16.mxu0 0
      %1353 = vmatpush1.bf16.msra.mxu0 0
      %1354 = vmatprep.subr.bf16.mxu0 0
      %1355 = vmatpush1.bf16.msra.mxu0 0
      %1356 = vmatprep.subr.bf16.mxu0 0
      %1357 = vmatpush1.bf16.msra.mxu0 0
      %1358 = vmatprep.subr.bf16.mxu0 0
      %1359 = vmatpush1.bf16.msra.mxu0 0
      %1360 = vmatprep.subr.bf16.mxu0 0
      %1361 = vmatpush1.bf16.msra.mxu0 0
      %1362 = vmatprep.subr.bf16.mxu0 0
      %1363 = vmatpush1.bf16.msra.mxu0 0
      %1364 = vmatprep.subr.bf16.mxu0 0
      %1365 = vmatpush1.bf16.msra.mxu0 0
      %1366 = vmatprep.subr.bf16.mxu0 0
      %1367 = vmatpush1.bf16.msra.mxu0 0
      %1368 = vmatprep.subr.bf16.mxu0 0
      %1369 = vmatpush1.bf16.msra.mxu0 0
      %1370 = vmatprep.subr.bf16.mxu0 0
      %1371 = vmatpush1.bf16.msra.mxu0 0
      %1372 = vmatprep.subr.bf16.mxu0 0
      %1373 = vmatpush1.bf16.msra.mxu0 0
      %1374 = vmatprep.subr.bf16.mxu0 0
      %1375 = vmatpush1.bf16.msra.mxu0 0
      %1376 = vmatprep.subr.bf16.mxu0 0
      %1377 = vmatpush1.bf16.msra.mxu0 0
      %1378 = vmatprep.subr.bf16.mxu0 0
      %1379 = vmatpush1.bf16.msra.mxu0 0
      %1380 = vmatprep.subr.bf16.mxu0 0
      %1381 = vmatpush1.bf16.msra.mxu0 0
      %1382 = vmatprep.mubr.bf16.mxu0 0
      %1383 = vmatmul.mubr.bf16.gmra.mrb[0].mxu0 %v1345
      %v1384 = vpop.f32.mrb[0].mxu0
      %v1385 = vadd.f32 0.0, %v1384
      %v1386 = vpop.f32.mrb[0].mxu0
      %v1387 = vpop.f32.mrb[0].mxu0
      %v1388 = vpop.f32.mrb[0].mxu0
      %1389 = vdwg.mxu0
      %v1390 = vpack.c.bf16 %v1385, %v1385
      %s1391 = scalar_lea.vmem %s6, 12
      %v1392 = vld [vmem:[%s1391] sm:$0xf]
      %v1394 = vsel %vm789, %v1390, 0
      %v1397 = vsel %vm855, %v1392, 0
      %1399 = vmatprep.subr.bf16.mxu0 0
      %1400 = vmatpush1.bf16.msra.mxu0 %v1397
      %1401 = vmatprep.subr.bf16.mxu0 0
      %1402 = vmatpush1.bf16.msra.mxu0 0
      %1403 = vmatprep.subr.bf16.mxu0 0
      %1404 = vmatpush1.bf16.msra.mxu0 0
      %1405 = vmatprep.subr.bf16.mxu0 0
      %1406 = vmatpush1.bf16.msra.mxu0 0
      %1407 = vmatprep.subr.bf16.mxu0 0
      %1408 = vmatpush1.bf16.msra.mxu0 0
      %1409 = vmatprep.subr.bf16.mxu0 0
      %1410 = vmatpush1.bf16.msra.mxu0 0
      %1411 = vmatprep.subr.bf16.mxu0 0
      %1412 = vmatpush1.bf16.msra.mxu0 0
      %1413 = vmatprep.subr.bf16.mxu0 0
      %1414 = vmatpush1.bf16.msra.mxu0 0
      %1415 = vmatprep.subr.bf16.mxu0 0
      %1416 = vmatpush1.bf16.msra.mxu0 0
      %1417 = vmatprep.subr.bf16.mxu0 0
      %1418 = vmatpush1.bf16.msra.mxu0 0
      %1419 = vmatprep.subr.bf16.mxu0 0
      %1420 = vmatpush1.bf16.msra.mxu0 0
      %1421 = vmatprep.subr.bf16.mxu0 0
      %1422 = vmatpush1.bf16.msra.mxu0 0
      %1423 = vmatprep.subr.bf16.mxu0 0
      %1424 = vmatpush1.bf16.msra.mxu0 0
      %1425 = vmatprep.subr.bf16.mxu0 0
      %1426 = vmatpush1.bf16.msra.mxu0 0
      %1427 = vmatprep.subr.bf16.mxu0 0
      %1428 = vmatpush1.bf16.msra.mxu0 0
      %1429 = vmatprep.subr.bf16.mxu0 0
      %1430 = vmatpush1.bf16.msra.mxu0 0
      %1431 = vmatprep.mubr.bf16.mxu0 0
      %1432 = vmatmul.mubr.bf16.gmra.mrb[0].mxu0 %v1394
      %v1433 = vpop.f32.mrb[0].mxu0
      %v1434 = vadd.f32 0.0, %v1433
      %v1435 = vpop.f32.mrb[0].mxu0
      %v1436 = vpop.f32.mrb[0].mxu0
      %v1437 = vpop.f32.mrb[0].mxu0
      %1438 = vdwg.mxu0
      %v1439 = vadd.f32 %v1277, %v1434
      %v1440 = vadd.f32 %v681, %v1439
      %v1441 = vld [vmem:[%s8] sm:$0x1]
      %v1442 = vld [vmem:[%s9] sm:$0x1]
      %v1443 = vsel %vm688, %v1440, 0.0
      %1444 = vadd.xlane.f32.xlu0 %v1443
      %v1445 = vpop.xlane.xlu0 %1444
      %v1446 = vmul.f32 %v1445, %v692
      %v1447 = vsub.f32 %v1440, %v1446
      %v1448 = vmul.f32 %v1447, %v1447
      %v1449 = vsel %vm688, %v1448, 0.0
      %1450 = vadd.xlane.f32.xlu0 %v1449
      %v1451 = vpop.xlane.xlu0 %1450
      %v1452 = vmul.f32 %v1451, %v692
      %v1453 = vadd.f32 %v1452, 1e-05
      %v1454 = vrsqrt.pop %v1453
      %v1455 = vmul.f32 %v1447, %v1454
      %v1457 = vlaneseq
      %v1458 = vshrl.u32 %v1457, 7
      %v1459 = vsub.s32 0, %v1458
      %v1460 = vrot.slane %v1441, %v1459
      %v1462 = vmul.f32 %v1455, %v1460
      %v1464 = vlaneseq
      %v1465 = vshrl.u32 %v1464, 7
      %v1466 = vsub.s32 0, %v1465
      %v1467 = vrot.slane %v1442, %v1466
      %v1469 = vadd.f32 %v1462, %v1467
      %v1470 = vpack.c.bf16 %v1469, %v1469
      %v1471 = vld [vmem:[%s10] sm:$0xf]
      %v1472 = vld [vmem:[%s10 + $0x4] sm:$0xf]
      %v1473 = vld [vmem:[%s10 + $0x8] sm:$0xf]
      %v1474 = vld [vmem:[%s10 + $0xc] sm:$0xf]
      %v1475 = vld [vmem:[%s11] sm:$0x1]
      %v1477 = vlaneseq
      %v1478 = vshrl.u32 %v1477, 7
      %v1479 = vsub.s32 0, %v1478
      %v1480 = vrot.slane %v1475, %v1479
      %v1486 = vunpack.c.l.b16 %v1471
      %v1487 = vunpack.c.l.b16 %v1472
      %v1488 = vunpack.c.l.b16 %v1473
      %v1489 = vunpack.c.l.b16 %v1474
      %v1490 = vpack.c.b16 %v1487, %v1486
      %v1491 = vpack.c.b16 %v1489, %v1488
      %v1495 = vsel %vm688, %v1470, 0
      %1497 = vmatprep.subr.bf16.mxu0 0
      %1498 = vmatpush1.bf16.msra.mxu0 %v1490
      %1499 = vmatprep.subr.bf16.mxu0 0
      %1500 = vmatpush1.bf16.msra.mxu0 %v1491
      %1501 = vmatprep.subr.bf16.mxu0 0
      %1502 = vmatpush1.bf16.msra.mxu0 0
      %1503 = vmatprep.subr.bf16.mxu0 0
      %1504 = vmatpush1.bf16.msra.mxu0 0
      %1505 = vmatprep.subr.bf16.mxu0 0
      %1506 = vmatpush1.bf16.msra.mxu0 0
      %1507 = vmatprep.subr.bf16.mxu0 0
      %1508 = vmatpush1.bf16.msra.mxu0 0
      %1509 = vmatprep.subr.bf16.mxu0 0
      %1510 = vmatpush1.bf16.msra.mxu0 0
      %1511 = vmatprep.subr.bf16.mxu0 0
      %1512 = vmatpush1.bf16.msra.mxu0 0
      %1513 = vmatprep.subr.bf16.mxu0 0
      %1514 = vmatpush1.bf16.msra.mxu0 0
      %1515 = vmatprep.subr.bf16.mxu0 0
      %1516 = vmatpush1.bf16.msra.mxu0 0
      %1517 = vmatprep.subr.bf16.mxu0 0
      %1518 = vmatpush1.bf16.msra.mxu0 0
      %1519 = vmatprep.subr.bf16.mxu0 0
      %1520 = vmatpush1.bf16.msra.mxu0 0
      %1521 = vmatprep.subr.bf16.mxu0 0
      %1522 = vmatpush1.bf16.msra.mxu0 0
      %1523 = vmatprep.subr.bf16.mxu0 0
      %1524 = vmatpush1.bf16.msra.mxu0 0
      %1525 = vmatprep.subr.bf16.mxu0 0
      %1526 = vmatpush1.bf16.msra.mxu0 0
      %1527 = vmatprep.subr.bf16.mxu0 0
      %1528 = vmatpush1.bf16.msra.mxu0 0
      %1529 = vmatprep.mubr.bf16.mxu0 0
      %1530 = vmatmul.mubr.bf16.gmra.mrb[0].mxu0 %v1495
      %v1531 = vpop.f32.mrb[0].mxu0
      %v1532 = vadd.f32 %v1480, %v1531
      %v1533 = vpop.f32.mrb[0].mxu0
      %v1534 = vpop.f32.mrb[0].mxu0
      %v1535 = vpop.f32.mrb[0].mxu0
      %1536 = vdwg.mxu0
      %v1537 = vmul.f32 %v1532, 0.5
      %v1538 = vmul.f32 %v1532, 0.044715
      %v1539 = vmul.f32 %v1538, %v1532
      %v1540 = vmul.f32 %v1539, %v1532
      %v1541 = vadd.f32 %v1532, %v1540
      %v1542 = vmul.f32 %v1541, 0.7978846
      %v1543 = vtanh.pop %v1542
      %v1544 = vadd.f32 %v1543, 1.0
      %v1545 = vmul.f32 %v1537, %v1544
      %v1546 = vpack.c.bf16 %v1545, %v1545
      %v1547 = vld [vmem:[%s12] sm:$0xf]
      %v1548 = vld [vmem:[%s12 + $0x4] sm:$0xf]
      %v1549 = vld [vmem:[%s12 + $0x8] sm:$0xf]
      %v1550 = vld [vmem:[%s12 + $0xc] sm:$0xf]
      %v1551 = vld [vmem:[%s12 + $0x10] sm:$0xf]
      %v1552 = vld [vmem:[%s12 + $0x14] sm:$0xf]
      %v1553 = vld [vmem:[%s12 + $0x18] sm:$0xf]
      %v1554 = vld [vmem:[%s12 + $0x1c] sm:$0xf]
      %v1555 = vld [vmem:[%s12 + $0x20] sm:$0xf]
      %v1556 = vld [vmem:[%s12 + $0x24] sm:$0xf]
      %v1557 = vld [vmem:[%s12 + $0x28] sm:$0xf]
      %v1558 = vld [vmem:[%s12 + $0x2c] sm:$0xf]
      %v1559 = vld [vmem:[%s12 + $0x30] sm:$0xf]
      %v1560 = vld [vmem:[%s12 + $0x34] sm:$0xf]
      %v1561 = vld [vmem:[%s12 + $0x38] sm:$0xf]
      %v1562 = vld [vmem:[%s12 + $0x3c] sm:$0xf]
      %v1579 = vunpack.c.l.b16 %v1547
      %v1580 = vunpack.c.l.b16 %v1548
      %v1581 = vunpack.c.l.b16 %v1549
      %v1582 = vunpack.c.l.b16 %v1550
      %v1583 = vunpack.c.l.b16 %v1551
      %v1584 = vunpack.c.l.b16 %v1552
      %v1585 = vunpack.c.l.b16 %v1553
      %v1586 = vunpack.c.l.b16 %v1554
      %v1587 = vunpack.c.l.b16 %v1555
      %v1588 = vunpack.c.l.b16 %v1556
      %v1589 = vunpack.c.l.b16 %v1557
      %v1590 = vunpack.c.l.b16 %v1558
      %v1591 = vunpack.c.l.b16 %v1559
      %v1592 = vunpack.c.l.b16 %v1560
      %v1593 = vunpack.c.l.b16 %v1561
      %v1594 = vunpack.c.l.b16 %v1562
      %v1595 = vpack.c.b16 %v1580, %v1579
      %v1596 = vpack.c.b16 %v1582, %v1581
      %v1597 = vpack.c.b16 %v1584, %v1583
      %v1598 = vpack.c.b16 %v1586, %v1585
      %v1599 = vpack.c.b16 %v1588, %v1587
      %v1600 = vpack.c.b16 %v1590, %v1589
      %v1601 = vpack.c.b16 %v1592, %v1591
      %v1602 = vpack.c.b16 %v1594, %v1593
      %1611 = vmatprep.subr.bf16.mxu0 0
      %1612 = vmatpush1.bf16.msra.mxu0 %v1595
      %1613 = vmatprep.subr.bf16.mxu0 0
      %1614 = vmatpush1.bf16.msra.mxu0 %v1596
      %1615 = vmatprep.subr.bf16.mxu0 0
      %1616 = vmatpush1.bf16.msra.mxu0 %v1597
      %1617 = vmatprep.subr.bf16.mxu0 0
      %1618 = vmatpush1.bf16.msra.mxu0 %v1598
      %1619 = vmatprep.subr.bf16.mxu0 0
      %1620 = vmatpush1.bf16.msra.mxu0 %v1599
      %1621 = vmatprep.subr.bf16.mxu0 0
      %1622 = vmatpush1.bf16.msra.mxu0 %v1600
      %1623 = vmatprep.subr.bf16.mxu0 0
      %1624 = vmatpush1.bf16.msra.mxu0 %v1601
      %1625 = vmatprep.subr.bf16.mxu0 0
      %1626 = vmatpush1.bf16.msra.mxu0 %v1602
      %1627 = vmatprep.subr.bf16.mxu0 0
      %1628 = vmatpush1.bf16.msra.mxu0 0
      %1629 = vmatprep.subr.bf16.mxu0 0
      %1630 = vmatpush1.bf16.msra.mxu0 0
      %1631 = vmatprep.subr.bf16.mxu0 0
      %1632 = vmatpush1.bf16.msra.mxu0 0
      %1633 = vmatprep.subr.bf16.mxu0 0
      %1634 = vmatpush1.bf16.msra.mxu0 0
      %1635 = vmatprep.subr.bf16.mxu0 0
      %1636 = vmatpush1.bf16.msra.mxu0 0
      %1637 = vmatprep.subr.bf16.mxu0 0
      %1638 = vmatpush1.bf16.msra.mxu0 0
      %1639 = vmatprep.subr.bf16.mxu0 0
      %1640 = vmatpush1.bf16.msra.mxu0 0
      %1641 = vmatprep.subr.bf16.mxu0 0
      %1642 = vmatpush1.bf16.msra.mxu0 0
      %1643 = vmatprep.mubr.bf16.mxu0 0
      %1644 = vmatmul.mubr.bf16.gmra.mrb[0].mxu0 %v1546
      %v1645 = vpop.f32.mrb[0].mxu0
      %v1646 = vadd.f32 0.0, %v1645
      %v1647 = vpop.f32.mrb[0].mxu0
      %v1648 = vpop.f32.mrb[0].mxu0
      %v1649 = vpop.f32.mrb[0].mxu0
      %1650 = vdwg.mxu0
      %v1651 = vadd.f32 %v1440, %v1646
      %v1652 = vld [vmem:[%s13] sm:$0x1]
      %v1654 = vlaneseq
      %v1655 = vshrl.u32 %v1654, 7
      %v1656 = vsub.s32 0, %v1655
      %v1657 = vrot.slane %v1652, %v1656
      %v1659 = vadd.f32 %v1651, %v1657
      %s1660 = scalar_lea.vmem %s2, 1
      %v1661 = vld [vmem:[%s1660] sm:$0x1]
      %s1662 = scalar_lea.vmem %s3, 1
      %v1663 = vld [vmem:[%s1662] sm:$0x1]
      %v1664 = vsel %vm688, %v1659, 0.0
      %1665 = vadd.xlane.f32.xlu0 %v1664
      %v1666 = vpop.xlane.xlu0 %1665
      %v1667 = vmul.f32 %v1666, %v692
      %v1668 = vsub.f32 %v1659, %v1667
      %v1669 = vmul.f32 %v1668, %v1668
      %v1670 = vsel %vm688, %v1669, 0.0
      %1671 = vadd.xlane.f32.xlu0 %v1670
      %v1672 = vpop.xlane.xlu0 %1671
      %v1673 = vmul.f32 %v1672, %v692
      %v1674 = vadd.f32 %v1673, 1e-05
      %v1675 = vrsqrt.pop %v1674
      %v1676 = vmul.f32 %v1668, %v1675
      %v1678 = vlaneseq
      %v1679 = vshrl.u32 %v1678, 7
      %v1680 = vsub.s32 0, %v1679
      %v1681 = vrot.slane %v1661, %v1680
      %v1683 = vmul.f32 %v1676, %v1681
      %v1685 = vlaneseq
      %v1686 = vshrl.u32 %v1685, 7
      %v1687 = vsub.s32 0, %v1686
      %v1688 = vrot.slane %v1663, %v1687
      %v1690 = vadd.f32 %v1683, %v1688
      %v1691 = vpack.c.bf16 %v1690, %v1690
      %s1692 = scalar_lea.vmem %s4, 16
      %v1693 = vld [vmem:[%s1692] sm:$0xf]
      %v1694 = vld [vmem:[%s1692 + $0x4] sm:$0xf]
      %v1695 = vld [vmem:[%s1692 + $0x8] sm:$0xf]
      %v1696 = vld [vmem:[%s1692 + $0xc] sm:$0xf]
      %s1697 = scalar_lea.vmem %s5, 1
      %v1698 = vld [vmem:[%s1697] sm:$0x1]
      %v1700 = vlaneseq
      %v1701 = vshrl.u32 %v1700, 7
      %v1702 = vsub.s32 0, %v1701
      %v1703 = vrot.slane %v1698, %v1702
      %v1709 = vunpack.c.l.b16 %v1693
      %v1710 = vunpack.c.l.b16 %v1694
      %v1711 = vunpack.c.l.b16 %v1695
      %v1712 = vunpack.c.l.b16 %v1696
      %v1713 = vpack.c.b16 %v1710, %v1709
      %v1714 = vpack.c.b16 %v1712, %v1711
      %v1718 = vsel %vm688, %v1691, 0
      %1720 = vmatprep.subr.bf16.mxu0 0
      %1721 = vmatpush1.bf16.msra.mxu0 %v1713
      %1722 = vmatprep.subr.bf16.mxu0 0
      %1723 = vmatpush1.bf16.msra.mxu0 %v1714
      %1724 = vmatprep.subr.bf16.mxu0 0
      %1725 = vmatpush1.bf16.msra.mxu0 0
      %1726 = vmatprep.subr.bf16.mxu0 0
      %1727 = vmatpush1.bf16.msra.mxu0 0
      %1728 = vmatprep.subr.bf16.mxu0 0
      %1729 = vmatpush1.bf16.msra.mxu0 0
      %1730 = vmatprep.subr.bf16.mxu0 0
      %1731 = vmatpush1.bf16.msra.mxu0 0
      %1732 = vmatprep.subr.bf16.mxu0 0
      %1733 = vmatpush1.bf16.msra.mxu0 0
      %1734 = vmatprep.subr.bf16.mxu0 0
      %1735 = vmatpush1.bf16.msra.mxu0 0
      %1736 = vmatprep.subr.bf16.mxu0 0
      %1737 = vmatpush1.bf16.msra.mxu0 0
      %1738 = vmatprep.subr.bf16.mxu0 0
      %1739 = vmatpush1.bf16.msra.mxu0 0
      %1740 = vmatprep.subr.bf16.mxu0 0
      %1741 = vmatpush1.bf16.msra.mxu0 0
      %1742 = vmatprep.subr.bf16.mxu0 0
      %1743 = vmatpush1.bf16.msra.mxu0 0
      %1744 = vmatprep.subr.bf16.mxu0 0
      %1745 = vmatpush1.bf16.msra.mxu0 0
      %1746 = vmatprep.subr.bf16.mxu0 0
      %1747 = vmatpush1.bf16.msra.mxu0 0
      %1748 = vmatprep.subr.bf16.mxu0 0
      %1749 = vmatpush1.bf16.msra.mxu0 0
      %1750 = vmatprep.subr.bf16.mxu0 0
      %1751 = vmatpush1.bf16.msra.mxu0 0
      %1752 = vmatprep.mubr.bf16.mxu0 0
      %1753 = vmatmul.mubr.bf16.gmra.mrb[0].mxu0 %v1718
      %v1754 = vpop.f32.mrb[0].mxu0
      %v1755 = vadd.f32 %v1703, %v1754
      %v1756 = vpop.f32.mrb[0].mxu0
      %v1757 = vpop.f32.mrb[0].mxu0
      %v1758 = vpop.f32.mrb[0].mxu0
      %1759 = vdwg.mxu0
      %s1760 = scalar_lea.vmem %s7, 1
      %v1761 = vld [vmem:[%s1760] sm:$0x1]
      %v1762 = vpack.c.bf16 %v1755, %v1755
      %1764 = vrot.lane.b32.xlu0 %v1762, 96
      %v1765 = vpop.permute.xlu0 %1764
      %v1767 = vsel %vm789, %v1762, 0
      %v1770 = vsel %vm789, %v1765, 0
      %1772 = vmatprep.subr.bf16.mxu0 0
      %1773 = vmatpush1.bf16.xpose.msra.mxu0 %v1770
      %1774 = vmatprep.subr.bf16.mxu0 0
      %1775 = vmatpush1.bf16.xpose.msra.mxu0 0
      %1776 = vmatprep.subr.bf16.mxu0 0
      %1777 = vmatpush1.bf16.xpose.msra.mxu0 0
      %1778 = vmatprep.subr.bf16.mxu0 0
      %1779 = vmatpush1.bf16.xpose.msra.mxu0 0
      %1780 = vmatprep.subr.bf16.mxu0 0
      %1781 = vmatpush1.bf16.xpose.msra.mxu0 0
      %1782 = vmatprep.subr.bf16.mxu0 0
      %1783 = vmatpush1.bf16.xpose.msra.mxu0 0
      %1784 = vmatprep.subr.bf16.mxu0 0
      %1785 = vmatpush1.bf16.xpose.msra.mxu0 0
      %1786 = vmatprep.subr.bf16.mxu0 0
      %1787 = vmatpush1.bf16.xpose.msra.mxu0 0
      %1788 = vmatprep.subr.bf16.mxu0 0
      %1789 = vmatpush1.bf16.xpose.msra.mxu0 0
      %1790 = vmatprep.subr.bf16.mxu0 0
      %1791 = vmatpush1.bf16.xpose.msra.mxu0 0
      %1792 = vmatprep.subr.bf16.mxu0 0
      %1793 = vmatpush1.bf16.xpose.msra.mxu0 0
      %1794 = vmatprep.subr.bf16.mxu0 0
      %1795 = vmatpush1.bf16.xpose.msra.mxu0 0
      %1796 = vmatprep.subr.bf16.mxu0 0
      %1797 = vmatpush1.bf16.xpose.msra.mxu0 0
      %1798 = vmatprep.subr.bf16.mxu0 0
      %1799 = vmatpush1.bf16.xpose.msra.mxu0 0
      %1800 = vmatprep.subr.bf16.mxu0 0
      %1801 = vmatpush1.bf16.xpose.msra.mxu0 0
      %1802 = vmatprep.subr.bf16.mxu0 0
      %1803 = vmatpush1.bf16.xpose.msra.mxu0 0
      %1804 = vmatprep.mubr.bf16.mxu0 0
      %1805 = vmatmul.mubr.bf16.gmra.mrb[0].mxu0 %v1767
      %v1806 = vpop.f32.mrb[0].mxu0
      %v1807 = vadd.f32 0.0, %v1806
      %v1808 = vpop.f32.mrb[0].mxu0
      %v1809 = vpop.f32.mrb[0].mxu0
      %v1810 = vpop.f32.mrb[0].mxu0
      %1811 = vdwg.mxu0
      %v1812 = vmul.f32 %v1807, 0.35355338
      %v1813 = vadd.f32 %v1812, %v685
      %v1814 = vsel %vm789, %v1813, -inf
      %1815 = vmax.xlane.f32.xlu0 %v1814
      %v1816 = vpop.xlane.xlu0 %1815
      %v1817 = vsub.f32 %v1813, %v1816
      %v1818 = vmul.f32 %v1817, 1.442695
      %v1819 = vpow.pop %v1818
      %v1820 = vsel %vm789, %v1819, 0.0
      %1821 = vadd.xlane.f32.xlu0 %v1820
      %v1822 = vpop.xlane.xlu0 %1821
      %v1823 = vrcp.pop %v1822
      %v1824 = vmul.f32 %v1819, %v1823
      %v1825 = vpack.c.bf16 %v1824, %v1824
      %1826 = vrot.lane.b32.xlu0 %v1762, 64
      %v1827 = vpop.permute.xlu0 %1826
      %v1829 = vsel %vm789, %v1825, 0
      %v1832 = vsel %vm855, %v1827, 0
      %1834 = vmatprep.subr.bf16.mxu0 0
      %1835 = vmatpush1.bf16.msra.mxu0 %v1832
      %1836 = vmatprep.subr.bf16.mxu0 0
      %1837 = vmatpush1.bf16.msra.mxu0 0
      %1838 = vmatprep.subr.bf16.mxu0 0
      %1839 = vmatpush1.bf16.msra.mxu0 0
      %1840 = vmatprep.subr.bf16.mxu0 0
      %1841 = vmatpush1.bf16.msra.mxu0 0
      %1842 = vmatprep.subr.bf16.mxu0 0
      %1843 = vmatpush1.bf16.msra.mxu0 0
      %1844 = vmatprep.subr.bf16.mxu0 0
      %1845 = vmatpush1.bf16.msra.mxu0 0
      %1846 = vmatprep.subr.bf16.mxu0 0
      %1847 = vmatpush1.bf16.msra.mxu0 0
      %1848 = vmatprep.subr.bf16.mxu0 0
      %1849 = vmatpush1.bf16.msra.mxu0 0
      %1850 = vmatprep.subr.bf16.mxu0 0
      %1851 = vmatpush1.bf16.msra.mxu0 0
      %1852 = vmatprep.subr.bf16.mxu0 0
      %1853 = vmatpush1.bf16.msra.mxu0 0
      %1854 = vmatprep.subr.bf16.mxu0 0
      %1855 = vmatpush1.bf16.msra.mxu0 0
      %1856 = vmatprep.subr.bf16.mxu0 0
      %1857 = vmatpush1.bf16.msra.mxu0 0
      %1858 = vmatprep.subr.bf16.mxu0 0
      %1859 = vmatpush1.bf16.msra.mxu0 0
      %1860 = vmatprep.subr.bf16.mxu0 0
      %1861 = vmatpush1.bf16.msra.mxu0 0
      %1862 = vmatprep.subr.bf16.mxu0 0
      %1863 = vmatpush1.bf16.msra.mxu0 0
      %1864 = vmatprep.subr.bf16.mxu0 0
      %1865 = vmatpush1.bf16.msra.mxu0 0
      %1866 = vmatprep.mubr.bf16.mxu0 0
      %1867 = vmatmul.mubr.bf16.gmra.mrb[0].mxu0 %v1829
      %v1868 = vpop.f32.mrb[0].mxu0
      %v1869 = vadd.f32 0.0, %v1868
      %v1870 = vpop.f32.mrb[0].mxu0
      %v1871 = vpop.f32.mrb[0].mxu0
      %v1872 = vpop.f32.mrb[0].mxu0
      %1873 = vdwg.mxu0
      %v1874 = vpack.c.bf16 %v1869, %v1869
      %s1875 = scalar_lea.vmem %s6, 16
      %v1876 = vld [vmem:[%s1875] sm:$0xf]
      %v1878 = vsel %vm789, %v1874, 0
      %v1881 = vsel %vm855, %v1876, 0
      %1883 = vmatprep.subr.bf16.mxu0 0
      %1884 = vmatpush1.bf16.msra.mxu0 %v1881
      %1885 = vmatprep.subr.bf16.mxu0 0
      %1886 = vmatpush1.bf16.msra.mxu0 0
      %1887 = vmatprep.subr.bf16.mxu0 0
      %1888 = vmatpush1.bf16.msra.mxu0 0
      %1889 = vmatprep.subr.bf16.mxu0 0
      %1890 = vmatpush1.bf16.msra.mxu0 0
      %1891 = vmatprep.subr.bf16.mxu0 0
      %1892 = vmatpush1.bf16.msra.mxu0 0
      %1893 = vmatprep.subr.bf16.mxu0 0
      %1894 = vmatpush1.bf16.msra.mxu0 0
      %1895 = vmatprep.subr.bf16.mxu0 0
      %1896 = vmatpush1.bf16.msra.mxu0 0
      %1897 = vmatprep.subr.bf16.mxu0 0
      %1898 = vmatpush1.bf16.msra.mxu0 0
      %1899 = vmatprep.subr.bf16.mxu0 0
      %1900 = vmatpush1.bf16.msra.mxu0 0
      %1901 = vmatprep.subr.bf16.mxu0 0
      %1902 = vmatpush1.bf16.msra.mxu0 0
      %1903 = vmatprep.subr.bf16.mxu0 0
      %1904 = vmatpush1.bf16.msra.mxu0 0
      %1905 = vmatprep.subr.bf16.mxu0 0
      %1906 = vmatpush1.bf16.msra.mxu0 0
      %1907 = vmatprep.subr.bf16.mxu0 0
      %1908 = vmatpush1.bf16.msra.mxu0 0
      %1909 = vmatprep.subr.bf16.mxu0 0
      %1910 = vmatpush1.bf16.msra.mxu0 0
      %1911 = vmatprep.subr.bf16.mxu0 0
      %1912 = vmatpush1.bf16.msra.mxu0 0
      %1913 = vmatprep.subr.bf16.mxu0 0
      %1914 = vmatpush1.bf16.msra.mxu0 0
      %1915 = vmatprep.mubr.bf16.mxu0 0
      %1916 = vmatmul.mubr.bf16.gmra.mrb[0].mxu0 %v1878
      %v1917 = vpop.f32.mrb[0].mxu0
      %v1918 = vadd.f32 0.0, %v1917
      %v1919 = vpop.f32.mrb[0].mxu0
      %v1920 = vpop.f32.mrb[0].mxu0
      %v1921 = vpop.f32.mrb[0].mxu0
      %1922 = vdwg.mxu0
      %v1924 = vlaneseq
      %v1925 = vshrl.u32 %v1924, 7
      %v1926 = vsub.s32 0, %v1925
      %v1927 = vrot.slane %v1761, %v1926
      %v1929 = vadd.f32 %v1927, %v1918
      %1930 = vrot.lane.b32.xlu0 %v1762, 120
      %v1931 = vpop.permute.xlu0 %1930
      %1932 = vrot.lane.b32.xlu0 %v1762, 88
      %v1933 = vpop.permute.xlu0 %1932
      %v1935 = vsel %vm789, %v1931, 0
      %v1938 = vsel %vm789, %v1933, 0
      %1940 = vmatprep.subr.bf16.mxu0 0
      %1941 = vmatpush1.bf16.xpose.msra.mxu0 %v1938
      %1942 = vmatprep.subr.bf16.mxu0 0
      %1943 = vmatpush1.bf16.xpose.msra.mxu0 0
      %1944 = vmatprep.subr.bf16.mxu0 0
      %1945 = vmatpush1.bf16.xpose.msra.mxu0 0
      %1946 = vmatprep.subr.bf16.mxu0 0
      %1947 = vmatpush1.bf16.xpose.msra.mxu0 0
      %1948 = vmatprep.subr.bf16.mxu0 0
      %1949 = vmatpush1.bf16.xpose.msra.mxu0 0
      %1950 = vmatprep.subr.bf16.mxu0 0
      %1951 = vmatpush1.bf16.xpose.msra.mxu0 0
      %1952 = vmatprep.subr.bf16.mxu0 0
      %1953 = vmatpush1.bf16.xpose.msra.mxu0 0
      %1954 = vmatprep.subr.bf16.mxu0 0
      %1955 = vmatpush1.bf16.xpose.msra.mxu0 0
      %1956 = vmatprep.subr.bf16.mxu0 0
      %1957 = vmatpush1.bf16.xpose.msra.mxu0 0
      %1958 = vmatprep.subr.bf16.mxu0 0
      %1959 = vmatpush1.bf16.xpose.msra.mxu0 0
      %1960 = vmatprep.subr.bf16.mxu0 0
      %1961 = vmatpush1.bf16.xpose.msra.mxu0 0
      %1962 = vmatprep.subr.bf16.mxu0 0
      %1963 = vmatpush1.bf16.xpose.msra.mxu0 0
      %1964 = vmatprep.subr.bf16.mxu0 0
      %1965 = vmatpush1.bf16.xpose.msra.mxu0 0
      %1966 = vmatprep.subr.bf16.mxu0 0
      %1967 = vmatpush1.bf16.xpose.msra.mxu0 0
      %1968 = vmatprep.subr.bf16.mxu0 0
      %1969 = vmatpush1.bf16.xpose.msra.mxu0 0
      %1970 = vmatprep.subr.bf16.mxu0 0
      %1971 = vmatpush1.bf16.xpose.msra.mxu0 0
      %1972 = vmatprep.mubr.bf16.mxu0 0
      %1973 = vmatmul.mubr.bf16.gmra.mrb[0].mxu0 %v1935
      %v1974 = vpop.f32.mrb[0].mxu0
      %v1975 = vadd.f32 0.0, %v1974
      %v1976 = vpop.f32.mrb[0].mxu0
      %v1977 = vpop.f32.mrb[0].mxu0
      %v1978 = vpop.f32.mrb[0].mxu0
      %1979 = vdwg.mxu0
      %v1980 = vmul.f32 %v1975, 0.35355338
      %v1981 = vadd.f32 %v1980, %v685
      %v1982 = vsel %vm789, %v1981, -inf
      %1983 = vmax.xlane.f32.xlu0 %v1982
      %v1984 = vpop.xlane.xlu0 %1983
      %v1985 = vsub.f32 %v1981, %v1984
      %v1986 = vmul.f32 %v1985, 1.442695
      %v1987 = vpow.pop %v1986
      %v1988 = vsel %vm789, %v1987, 0.0
      %1989 = vadd.xlane.f32.xlu0 %v1988
      %v1990 = vpop.xlane.xlu0 %1989
      %v1991 = vrcp.pop %v1990
      %v1992 = vmul.f32 %v1987, %v1991
      %v1993 = vpack.c.bf16 %v1992, %v1992
      %1994 = vrot.lane.b32.xlu0 %v1762, 56
      %v1995 = vpop.permute.xlu0 %1994
      %v1997 = vsel %vm789, %v1993, 0
      %v2000 = vsel %vm855, %v1995, 0
      %2002 = vmatprep.subr.bf16.mxu0 0
      %2003 = vmatpush1.bf16.msra.mxu0 %v2000
      %2004 = vmatprep.subr.bf16.mxu0 0
      %2005 = vmatpush1.bf16.msra.mxu0 0
      %2006 = vmatprep.subr.bf16.mxu0 0
      %2007 = vmatpush1.bf16.msra.mxu0 0
      %2008 = vmatprep.subr.bf16.mxu0 0
      %2009 = vmatpush1.bf16.msra.mxu0 0
      %2010 = vmatprep.subr.bf16.mxu0 0
      %2011 = vmatpush1.bf16.msra.mxu0 0
      %2012 = vmatprep.subr.bf16.mxu0 0
      %2013 = vmatpush1.bf16.msra.mxu0 0
      %2014 = vmatprep.subr.bf16.mxu0 0
      %2015 = vmatpush1.bf16.msra.mxu0 0
      %2016 = vmatprep.subr.bf16.mxu0 0
      %2017 = vmatpush1.bf16.msra.mxu0 0
      %2018 = vmatprep.subr.bf16.mxu0 0
      %2019 = vmatpush1.bf16.msra.mxu0 0
      %2020 = vmatprep.subr.bf16.mxu0 0
      %2021 = vmatpush1.bf16.msra.mxu0 0
      %2022 = vmatprep.subr.bf16.mxu0 0
      %2023 = vmatpush1.bf16.msra.mxu0 0
      %2024 = vmatprep.subr.bf16.mxu0 0
      %2025 = vmatpush1.bf16.msra.mxu0 0
      %2026 = vmatprep.subr.bf16.mxu0 0
      %2027 = vmatpush1.bf16.msra.mxu0 0
      %2028 = vmatprep.subr.bf16.mxu0 0
      %2029 = vmatpush1.bf16.msra.mxu0 0
      %2030 = vmatprep.subr.bf16.mxu0 0
      %2031 = vmatpush1.bf16.msra.mxu0 0
      %2032 = vmatprep.subr.bf16.mxu0 0
      %2033 = vmatpush1.bf16.msra.mxu0 0
      %2034 = vmatprep.mubr.bf16.mxu0 0
      %2035 = vmatmul.mubr.bf16.gmra.mrb[0].mxu0 %v1997
      %v2036 = vpop.f32.mrb[0].mxu0
      %v2037 = vadd.f32 0.0, %v2036
      %v2038 = vpop.f32.mrb[0].mxu0
      %v2039 = vpop.f32.mrb[0].mxu0
      %v2040 = vpop.f32.mrb[0].mxu0
      %2041 = vdwg.mxu0
      %v2042 = vpack.c.bf16 %v2037, %v2037
      %s2043 = scalar_lea.vmem %s6, 20
      %v2044 = vld [vmem:[%s2043] sm:$0xf]
      %v2046 = vsel %vm789, %v2042, 0
      %v2049 = vsel %vm855, %v2044, 0
      %2051 = vmatprep.subr.bf16.mxu0 0
      %2052 = vmatpush1.bf16.msra.mxu0 %v2049
      %2053 = vmatprep.subr.bf16.mxu0 0
      %2054 = vmatpush1.bf16.msra.mxu0 0
      %2055 = vmatprep.subr.bf16.mxu0 0
      %2056 = vmatpush1.bf16.msra.mxu0 0
      %2057 = vmatprep.subr.bf16.mxu0 0
      %2058 = vmatpush1.bf16.msra.mxu0 0
      %2059 = vmatprep.subr.bf16.mxu0 0
      %2060 = vmatpush1.bf16.msra.mxu0 0
      %2061 = vmatprep.subr.bf16.mxu0 0
      %2062 = vmatpush1.bf16.msra.mxu0 0
      %2063 = vmatprep.subr.bf16.mxu0 0
      %2064 = vmatpush1.bf16.msra.mxu0 0
      %2065 = vmatprep.subr.bf16.mxu0 0
      %2066 = vmatpush1.bf16.msra.mxu0 0
      %2067 = vmatprep.subr.bf16.mxu0 0
      %2068 = vmatpush1.bf16.msra.mxu0 0
      %2069 = vmatprep.subr.bf16.mxu0 0
      %2070 = vmatpush1.bf16.msra.mxu0 0
      %2071 = vmatprep.subr.bf16.mxu0 0
      %2072 = vmatpush1.bf16.msra.mxu0 0
      %2073 = vmatprep.subr.bf16.mxu0 0
      %2074 = vmatpush1.bf16.msra.mxu0 0
      %2075 = vmatprep.subr.bf16.mxu0 0
      %2076 = vmatpush1.bf16.msra.mxu0 0
      %2077 = vmatprep.subr.bf16.mxu0 0
      %2078 = vmatpush1.bf16.msra.mxu0 0
      %2079 = vmatprep.subr.bf16.mxu0 0
      %2080 = vmatpush1.bf16.msra.mxu0 0
      %2081 = vmatprep.subr.bf16.mxu0 0
      %2082 = vmatpush1.bf16.msra.mxu0 0
      %2083 = vmatprep.mubr.bf16.mxu0 0
      %2084 = vmatmul.mubr.bf16.gmra.mrb[0].mxu0 %v2046
      %v2085 = vpop.f32.mrb[0].mxu0
      %v2086 = vadd.f32 0.0, %v2085
      %v2087 = vpop.f32.mrb[0].mxu0
      %v2088 = vpop.f32.mrb[0].mxu0
      %v2089 = vpop.f32.mrb[0].mxu0
      %2090 = vdwg.mxu0
      %v2091 = vadd.f32 %v1929, %v2086
      %2092 = vrot.lane.b32.xlu0 %v1762, 112
      %v2093 = vpop.permute.xlu0 %2092
      %2094 = vrot.lane.b32.xlu0 %v1762, 80
      %v2095 = vpop.permute.xlu0 %2094
      %v2097 = vsel %vm789, %v2093, 0
      %v2100 = vsel %vm789, %v2095, 0
      %2102 = vmatprep.subr.bf16.mxu0 0
      %2103 = vmatpush1.bf16.xpose.msra.mxu0 %v2100
      %2104 = vmatprep.subr.bf16.mxu0 0
      %2105 = vmatpush1.bf16.xpose.msra.mxu0 0
      %2106 = vmatprep.subr.bf16.mxu0 0
      %2107 = vmatpush1.bf16.xpose.msra.mxu0 0
      %2108 = vmatprep.subr.bf16.mxu0 0
      %2109 = vmatpush1.bf16.xpose.msra.mxu0 0
      %2110 = vmatprep.subr.bf16.mxu0 0
      %2111 = vmatpush1.bf16.xpose.msra.mxu0 0
      %2112 = vmatprep.subr.bf16.mxu0 0
      %2113 = vmatpush1.bf16.xpose.msra.mxu0 0
      %2114 = vmatprep.subr.bf16.mxu0 0
      %2115 = vmatpush1.bf16.xpose.msra.mxu0 0
      %2116 = vmatprep.subr.bf16.mxu0 0
      %2117 = vmatpush1.bf16.xpose.msra.mxu0 0
      %2118 = vmatprep.subr.bf16.mxu0 0
      %2119 = vmatpush1.bf16.xpose.msra.mxu0 0
      %2120 = vmatprep.subr.bf16.mxu0 0
      %2121 = vmatpush1.bf16.xpose.msra.mxu0 0
      %2122 = vmatprep.subr.bf16.mxu0 0
      %2123 = vmatpush1.bf16.xpose.msra.mxu0 0
      %2124 = vmatprep.subr.bf16.mxu0 0
      %2125 = vmatpush1.bf16.xpose.msra.mxu0 0
      %2126 = vmatprep.subr.bf16.mxu0 0
      %2127 = vmatpush1.bf16.xpose.msra.mxu0 0
      %2128 = vmatprep.subr.bf16.mxu0 0
      %2129 = vmatpush1.bf16.xpose.msra.mxu0 0
      %2130 = vmatprep.subr.bf16.mxu0 0
      %2131 = vmatpush1.bf16.xpose.msra.mxu0 0
      %2132 = vmatprep.subr.bf16.mxu0 0
      %2133 = vmatpush1.bf16.xpose.msra.mxu0 0
      %2134 = vmatprep.mubr.bf16.mxu0 0
      %2135 = vmatmul.mubr.bf16.gmra.mrb[0].mxu0 %v2097
      %v2136 = vpop.f32.mrb[0].mxu0
      %v2137 = vadd.f32 0.0, %v2136
      %v2138 = vpop.f32.mrb[0].mxu0
      %v2139 = vpop.f32.mrb[0].mxu0
      %v2140 = vpop.f32.mrb[0].mxu0
      %2141 = vdwg.mxu0
      %v2142 = vmul.f32 %v2137, 0.35355338
      %v2143 = vadd.f32 %v2142, %v685
      %v2144 = vsel %vm789, %v2143, -inf
      %2145 = vmax.xlane.f32.xlu0 %v2144
      %v2146 = vpop.xlane.xlu0 %2145
      %v2147 = vsub.f32 %v2143, %v2146
      %v2148 = vmul.f32 %v2147, 1.442695
      %v2149 = vpow.pop %v2148
      %v2150 = vsel %vm789, %v2149, 0.0
      %2151 = vadd.xlane.f32.xlu0 %v2150
      %v2152 = vpop.xlane.xlu0 %2151
      %v2153 = vrcp.pop %v2152
      %v2154 = vmul.f32 %v2149, %v2153
      %v2155 = vpack.c.bf16 %v2154, %v2154
      %2156 = vrot.lane.b32.xlu0 %v1762, 48
      %v2157 = vpop.permute.xlu0 %2156
      %v2159 = vsel %vm789, %v2155, 0
      %v2162 = vsel %vm855, %v2157, 0
      %2164 = vmatprep.subr.bf16.mxu0 0
      %2165 = vmatpush1.bf16.msra.mxu0 %v2162
      %2166 = vmatprep.subr.bf16.mxu0 0
      %2167 = vmatpush1.bf16.msra.mxu0 0
      %2168 = vmatprep.subr.bf16.mxu0 0
      %2169 = vmatpush1.bf16.msra.mxu0 0
      %2170 = vmatprep.subr.bf16.mxu0 0
      %2171 = vmatpush1.bf16.msra.mxu0 0
      %2172 = vmatprep.subr.bf16.mxu0 0
      %2173 = vmatpush1.bf16.msra.mxu0 0
      %2174 = vmatprep.subr.bf16.mxu0 0
      %2175 = vmatpush1.bf16.msra.mxu0 0
      %2176 = vmatprep.subr.bf16.mxu0 0
      %2177 = vmatpush1.bf16.msra.mxu0 0
      %2178 = vmatprep.subr.bf16.mxu0 0
      %2179 = vmatpush1.bf16.msra.mxu0 0
      %2180 = vmatprep.subr.bf16.mxu0 0
      %2181 = vmatpush1.bf16.msra.mxu0 0
      %2182 = vmatprep.subr.bf16.mxu0 0
      %2183 = vmatpush1.bf16.msra.mxu0 0
      %2184 = vmatprep.subr.bf16.mxu0 0
      %2185 = vmatpush1.bf16.msra.mxu0 0
      %2186 = vmatprep.subr.bf16.mxu0 0
      %2187 = vmatpush1.bf16.msra.mxu0 0
      %2188 = vmatprep.subr.bf16.mxu0 0
      %2189 = vmatpush1.bf16.msra.mxu0 0
      %2190 = vmatprep.subr.bf16.mxu0 0
      %2191 = vmatpush1.bf16.msra.mxu0 0
      %2192 = vmatprep.subr.bf16.mxu0 0
      %2193 = vmatpush1.bf16.msra.mxu0 0
      %2194 = vmatprep.subr.bf16.mxu0 0
      %2195 = vmatpush1.bf16.msra.mxu0 0
      %2196 = vmatprep.mubr.bf16.mxu0 0
      %2197 = vmatmul.mubr.bf16.gmra.mrb[0].mxu0 %v2159
      %v2198 = vpop.f32.mrb[0].mxu0
      %v2199 = vadd.f32 0.0, %v2198
      %v2200 = vpop.f32.mrb[0].mxu0
      %v2201 = vpop.f32.mrb[0].mxu0
      %v2202 = vpop.f32.mrb[0].mxu0
      %2203 = vdwg.mxu0
      %v2204 = vpack.c.bf16 %v2199, %v2199
      %s2205 = scalar_lea.vmem %s6, 24
      %v2206 = vld [vmem:[%s2205] sm:$0xf]
      %v2208 = vsel %vm789, %v2204, 0
      %v2211 = vsel %vm855, %v2206, 0
      %2213 = vmatprep.subr.bf16.mxu0 0
      %2214 = vmatpush1.bf16.msra.mxu0 %v2211
      %2215 = vmatprep.subr.bf16.mxu0 0
      %2216 = vmatpush1.bf16.msra.mxu0 0
      %2217 = vmatprep.subr.bf16.mxu0 0
      %2218 = vmatpush1.bf16.msra.mxu0 0
      %2219 = vmatprep.subr.bf16.mxu0 0
      %2220 = vmatpush1.bf16.msra.mxu0 0
      %2221 = vmatprep.subr.bf16.mxu0 0
      %2222 = vmatpush1.bf16.msra.mxu0 0
      %2223 = vmatprep.subr.bf16.mxu0 0
      %2224 = vmatpush1.bf16.msra.mxu0 0
      %2225 = vmatprep.subr.bf16.mxu0 0
      %2226 = vmatpush1.bf16.msra.mxu0 0
      %2227 = vmatprep.subr.bf16.mxu0 0
      %2228 = vmatpush1.bf16.msra.mxu0 0
      %2229 = vmatprep.subr.bf16.mxu0 0
      %2230 = vmatpush1.bf16.msra.mxu0 0
      %2231 = vmatprep.subr.bf16.mxu0 0
      %2232 = vmatpush1.bf16.msra.mxu0 0
      %2233 = vmatprep.subr.bf16.mxu0 0
      %2234 = vmatpush1.bf16.msra.mxu0 0
      %2235 = vmatprep.subr.bf16.mxu0 0
      %2236 = vmatpush1.bf16.msra.mxu0 0
      %2237 = vmatprep.subr.bf16.mxu0 0
      %2238 = vmatpush1.bf16.msra.mxu0 0
      %2239 = vmatprep.subr.bf16.mxu0 0
      %2240 = vmatpush1.bf16.msra.mxu0 0
      %2241 = vmatprep.subr.bf16.mxu0 0
      %2242 = vmatpush1.bf16.msra.mxu0 0
      %2243 = vmatprep.subr.bf16.mxu0 0
      %2244 = vmatpush1.bf16.msra.mxu0 0
      %2245 = vmatprep.mubr.bf16.mxu0 0
      %2246 = vmatmul.mubr.bf16.gmra.mrb[0].mxu0 %v2208
      %v2247 = vpop.f32.mrb[0].mxu0
      %v2248 = vadd.f32 0.0, %v2247
      %v2249 = vpop.f32.mrb[0].mxu0
      %v2250 = vpop.f32.mrb[0].mxu0
      %v2251 = vpop.f32.mrb[0].mxu0
      %2252 = vdwg.mxu0
      %v2253 = vadd.f32 %v2091, %v2248
      %2254 = vrot.lane.b32.xlu0 %v1762, 104
      %v2255 = vpop.permute.xlu0 %2254
      %2256 = vrot.lane.b32.xlu0 %v1762, 72
      %v2257 = vpop.permute.xlu0 %2256
      %v2259 = vsel %vm789, %v2255, 0
      %v2262 = vsel %vm789, %v2257, 0
      %2264 = vmatprep.subr.bf16.mxu0 0
      %2265 = vmatpush1.bf16.xpose.msra.mxu0 %v2262
      %2266 = vmatprep.subr.bf16.mxu0 0
      %2267 = vmatpush1.bf16.xpose.msra.mxu0 0
      %2268 = vmatprep.subr.bf16.mxu0 0
      %2269 = vmatpush1.bf16.xpose.msra.mxu0 0
      %2270 = vmatprep.subr.bf16.mxu0 0
      %2271 = vmatpush1.bf16.xpose.msra.mxu0 0
      %2272 = vmatprep.subr.bf16.mxu0 0
      %2273 = vmatpush1.bf16.xpose.msra.mxu0 0
      %2274 = vmatprep.subr.bf16.mxu0 0
      %2275 = vmatpush1.bf16.xpose.msra.mxu0 0
      %2276 = vmatprep.subr.bf16.mxu0 0
      %2277 = vmatpush1.bf16.xpose.msra.mxu0 0
      %2278 = vmatprep.subr.bf16.mxu0 0
      %2279 = vmatpush1.bf16.xpose.msra.mxu0 0
      %2280 = vmatprep.subr.bf16.mxu0 0
      %2281 = vmatpush1.bf16.xpose.msra.mxu0 0
      %2282 = vmatprep.subr.bf16.mxu0 0
      %2283 = vmatpush1.bf16.xpose.msra.mxu0 0
      %2284 = vmatprep.subr.bf16.mxu0 0
      %2285 = vmatpush1.bf16.xpose.msra.mxu0 0
      %2286 = vmatprep.subr.bf16.mxu0 0
      %2287 = vmatpush1.bf16.xpose.msra.mxu0 0
      %2288 = vmatprep.subr.bf16.mxu0 0
      %2289 = vmatpush1.bf16.xpose.msra.mxu0 0
      %2290 = vmatprep.subr.bf16.mxu0 0
      %2291 = vmatpush1.bf16.xpose.msra.mxu0 0
      %2292 = vmatprep.subr.bf16.mxu0 0
      %2293 = vmatpush1.bf16.xpose.msra.mxu0 0
      %2294 = vmatprep.subr.bf16.mxu0 0
      %2295 = vmatpush1.bf16.xpose.msra.mxu0 0
      %2296 = vmatprep.mubr.bf16.mxu0 0
      %2297 = vmatmul.mubr.bf16.gmra.mrb[0].mxu0 %v2259
      %v2298 = vpop.f32.mrb[0].mxu0
      %v2299 = vadd.f32 0.0, %v2298
      %v2300 = vpop.f32.mrb[0].mxu0
      %v2301 = vpop.f32.mrb[0].mxu0
      %v2302 = vpop.f32.mrb[0].mxu0
      %2303 = vdwg.mxu0
      %v2304 = vmul.f32 %v2299, 0.35355338
      %v2305 = vadd.f32 %v2304, %v685
      %v2306 = vsel %vm789, %v2305, -inf
      %2307 = vmax.xlane.f32.xlu0 %v2306
      %v2308 = vpop.xlane.xlu0 %2307
      %v2309 = vsub.f32 %v2305, %v2308
      %v2310 = vmul.f32 %v2309, 1.442695
      %v2311 = vpow.pop %v2310
      %v2312 = vsel %vm789, %v2311, 0.0
      %2313 = vadd.xlane.f32.xlu0 %v2312
      %v2314 = vpop.xlane.xlu0 %2313
      %v2315 = vrcp.pop %v2314
      %v2316 = vmul.f32 %v2311, %v2315
      %v2317 = vpack.c.bf16 %v2316, %v2316
      %2318 = vrot.lane.b32.xlu0 %v1762, 40
      %v2319 = vpop.permute.xlu0 %2318
      %v2321 = vsel %vm789, %v2317, 0
      %v2324 = vsel %vm855, %v2319, 0
      %2326 = vmatprep.subr.bf16.mxu0 0
      %2327 = vmatpush1.bf16.msra.mxu0 %v2324
      %2328 = vmatprep.subr.bf16.mxu0 0
      %2329 = vmatpush1.bf16.msra.mxu0 0
      %2330 = vmatprep.subr.bf16.mxu0 0
      %2331 = vmatpush1.bf16.msra.mxu0 0
      %2332 = vmatprep.subr.bf16.mxu0 0
      %2333 = vmatpush1.bf16.msra.mxu0 0
      %2334 = vmatprep.subr.bf16.mxu0 0
      %2335 = vmatpush1.bf16.msra.mxu0 0
      %2336 = vmatprep.subr.bf16.mxu0 0
      %2337 = vmatpush1.bf16.msra.mxu0 0
      %2338 = vmatprep.subr.bf16.mxu0 0
      %2339 = vmatpush1.bf16.msra.mxu0 0
      %2340 = vmatprep.subr.bf16.mxu0 0
      %2341 = vmatpush1.bf16.msra.mxu0 0
      %2342 = vmatprep.subr.bf16.mxu0 0
      %2343 = vmatpush1.bf16.msra.mxu0 0
      %2344 = vmatprep.subr.bf16.mxu0 0
      %2345 = vmatpush1.bf16.msra.mxu0 0
      %2346 = vmatprep.subr.bf16.mxu0 0
      %2347 = vmatpush1.bf16.msra.mxu0 0
      %2348 = vmatprep.subr.bf16.mxu0 0
      %2349 = vmatpush1.bf16.msra.mxu0 0
      %2350 = vmatprep.subr.bf16.mxu0 0
      %2351 = vmatpush1.bf16.msra.mxu0 0
      %2352 = vmatprep.subr.bf16.mxu0 0
      %2353 = vmatpush1.bf16.msra.mxu0 0
      %2354 = vmatprep.subr.bf16.mxu0 0
      %2355 = vmatpush1.bf16.msra.mxu0 0
      %2356 = vmatprep.subr.bf16.mxu0 0
      %2357 = vmatpush1.bf16.msra.mxu0 0
      %2358 = vmatprep.mubr.bf16.mxu0 0
      %2359 = vmatmul.mubr.bf16.gmra.mrb[0].mxu0 %v2321
      %v2360 = vpop.f32.mrb[0].mxu0
      %v2361 = vadd.f32 0.0, %v2360
      %v2362 = vpop.f32.mrb[0].mxu0
      %v2363 = vpop.f32.mrb[0].mxu0
      %v2364 = vpop.f32.mrb[0].mxu0
      %2365 = vdwg.mxu0
      %v2366 = vpack.c.bf16 %v2361, %v2361
      %s2367 = scalar_lea.vmem %s6, 28
      %v2368 = vld [vmem:[%s2367] sm:$0xf]
      %v2370 = vsel %vm789, %v2366, 0
      %v2373 = vsel %vm855, %v2368, 0
      %2375 = vmatprep.subr.bf16.mxu0 0
      %2376 = vmatpush1.bf16.msra.mxu0 %v2373
      %2377 = vmatprep.subr.bf16.mxu0 0
      %2378 = vmatpush1.bf16.msra.mxu0 0
      %2379 = vmatprep.subr.bf16.mxu0 0
      %2380 = vmatpush1.bf16.msra.mxu0 0
      %2381 = vmatprep.subr.bf16.mxu0 0
      %2382 = vmatpush1.bf16.msra.mxu0 0
      %2383 = vmatprep.subr.bf16.mxu0 0
      %2384 = vmatpush1.bf16.msra.mxu0 0
      %2385 = vmatprep.subr.bf16.mxu0 0
      %2386 = vmatpush1.bf16.msra.mxu0 0
      %2387 = vmatprep.subr.bf16.mxu0 0
      %2388 = vmatpush1.bf16.msra.mxu0 0
      %2389 = vmatprep.subr.bf16.mxu0 0
      %2390 = vmatpush1.bf16.msra.mxu0 0
      %2391 = vmatprep.subr.bf16.mxu0 0
      %2392 = vmatpush1.bf16.msra.mxu0 0
      %2393 = vmatprep.subr.bf16.mxu0 0
      %2394 = vmatpush1.bf16.msra.mxu0 0
      %2395 = vmatprep.subr.bf16.mxu0 0
      %2396 = vmatpush1.bf16.msra.mxu0 0
      %2397 = vmatprep.subr.bf16.mxu0 0
      %2398 = vmatpush1.bf16.msra.mxu0 0
      %2399 = vmatprep.subr.bf16.mxu0 0
      %2400 = vmatpush1.bf16.msra.mxu0 0
      %2401 = vmatprep.subr.bf16.mxu0 0
      %2402 = vmatpush1.bf16.msra.mxu0 0
      %2403 = vmatprep.subr.bf16.mxu0 0
      %2404 = vmatpush1.bf16.msra.mxu0 0
      %2405 = vmatprep.subr.bf16.mxu0 0
      %2406 = vmatpush1.bf16.msra.mxu0 0
      %2407 = vmatprep.mubr.bf16.mxu0 0
      %2408 = vmatmul.mubr.bf16.gmra.mrb[0].mxu0 %v2370
      %v2409 = vpop.f32.mrb[0].mxu0
      %v2410 = vadd.f32 0.0, %v2409
      %v2411 = vpop.f32.mrb[0].mxu0
      %v2412 = vpop.f32.mrb[0].mxu0
      %v2413 = vpop.f32.mrb[0].mxu0
      %2414 = vdwg.mxu0
      %v2415 = vadd.f32 %v2253, %v2410
      %v2416 = vadd.f32 %v1659, %v2415
      %s2417 = scalar_lea.vmem %s8, 1
      %v2418 = vld [vmem:[%s2417] sm:$0x1]
      %s2419 = scalar_lea.vmem %s9, 1
      %v2420 = vld [vmem:[%s2419] sm:$0x1]
      %v2421 = vsel %vm688, %v2416, 0.0
      %2422 = vadd.xlane.f32.xlu0 %v2421
      %v2423 = vpop.xlane.xlu0 %2422
      %v2424 = vmul.f32 %v2423, %v692
      %v2425 = vsub.f32 %v2416, %v2424
      %v2426 = vmul.f32 %v2425, %v2425
      %v2427 = vsel %vm688, %v2426, 0.0
      %2428 = vadd.xlane.f32.xlu0 %v2427
      %v2429 = vpop.xlane.xlu0 %2428
      %v2430 = vmul.f32 %v2429, %v692
      %v2431 = vadd.f32 %v2430, 1e-05
      %v2432 = vrsqrt.pop %v2431
      %v2433 = vmul.f32 %v2425, %v2432
      %v2435 = vlaneseq
      %v2436 = vshrl.u32 %v2435, 7
      %v2437 = vsub.s32 0, %v2436
      %v2438 = vrot.slane %v2418, %v2437
      %v2440 = vmul.f32 %v2433, %v2438
      %v2442 = vlaneseq
      %v2443 = vshrl.u32 %v2442, 7
      %v2444 = vsub.s32 0, %v2443
      %v2445 = vrot.slane %v2420, %v2444
      %v2447 = vadd.f32 %v2440, %v2445
      %v2448 = vpack.c.bf16 %v2447, %v2447
      %s2449 = scalar_lea.vmem %s10, 16
      %v2450 = vld [vmem:[%s2449] sm:$0xf]
      %v2451 = vld [vmem:[%s2449 + $0x4] sm:$0xf]
      %v2452 = vld [vmem:[%s2449 + $0x8] sm:$0xf]
      %v2453 = vld [vmem:[%s2449 + $0xc] sm:$0xf]
      %s2454 = scalar_lea.vmem %s11, 1
      %v2455 = vld [vmem:[%s2454] sm:$0x1]
      %v2457 = vlaneseq
      %v2458 = vshrl.u32 %v2457, 7
      %v2459 = vsub.s32 0, %v2458
      %v2460 = vrot.slane %v2455, %v2459
      %v2466 = vunpack.c.l.b16 %v2450
      %v2467 = vunpack.c.l.b16 %v2451
      %v2468 = vunpack.c.l.b16 %v2452
      %v2469 = vunpack.c.l.b16 %v2453
      %v2470 = vpack.c.b16 %v2467, %v2466
      %v2471 = vpack.c.b16 %v2469, %v2468
      %v2475 = vsel %vm688, %v2448, 0
      %2477 = vmatprep.subr.bf16.mxu0 0
      %2478 = vmatpush1.bf16.msra.mxu0 %v2470
      %2479 = vmatprep.subr.bf16.mxu0 0
      %2480 = vmatpush1.bf16.msra.mxu0 %v2471
      %2481 = vmatprep.subr.bf16.mxu0 0
      %2482 = vmatpush1.bf16.msra.mxu0 0
      %2483 = vmatprep.subr.bf16.mxu0 0
      %2484 = vmatpush1.bf16.msra.mxu0 0
      %2485 = vmatprep.subr.bf16.mxu0 0
      %2486 = vmatpush1.bf16.msra.mxu0 0
      %2487 = vmatprep.subr.bf16.mxu0 0
      %2488 = vmatpush1.bf16.msra.mxu0 0
      %2489 = vmatprep.subr.bf16.mxu0 0
      %2490 = vmatpush1.bf16.msra.mxu0 0
      %2491 = vmatprep.subr.bf16.mxu0 0
      %2492 = vmatpush1.bf16.msra.mxu0 0
      %2493 = vmatprep.subr.bf16.mxu0 0
      %2494 = vmatpush1.bf16.msra.mxu0 0
      %2495 = vmatprep.subr.bf16.mxu0 0
      %2496 = vmatpush1.bf16.msra.mxu0 0
      %2497 = vmatprep.subr.bf16.mxu0 0
      %2498 = vmatpush1.bf16.msra.mxu0 0
      %2499 = vmatprep.subr.bf16.mxu0 0
      %2500 = vmatpush1.bf16.msra.mxu0 0
      %2501 = vmatprep.subr.bf16.mxu0 0
      %2502 = vmatpush1.bf16.msra.mxu0 0
      %2503 = vmatprep.subr.bf16.mxu0 0
      %2504 = vmatpush1.bf16.msra.mxu0 0
      %2505 = vmatprep.subr.bf16.mxu0 0
      %2506 = vmatpush1.bf16.msra.mxu0 0
      %2507 = vmatprep.subr.bf16.mxu0 0
      %2508 = vmatpush1.bf16.msra.mxu0 0
      %2509 = vmatprep.mubr.bf16.mxu0 0
      %2510 = vmatmul.mubr.bf16.gmra.mrb[0].mxu0 %v2475
      %v2511 = vpop.f32.mrb[0].mxu0
      %v2512 = vadd.f32 %v2460, %v2511
      %v2513 = vpop.f32.mrb[0].mxu0
      %v2514 = vpop.f32.mrb[0].mxu0
      %v2515 = vpop.f32.mrb[0].mxu0
      %2516 = vdwg.mxu0
      %v2517 = vmul.f32 %v2512, 0.5
      %v2518 = vmul.f32 %v2512, 0.044715
      %v2519 = vmul.f32 %v2518, %v2512
      %v2520 = vmul.f32 %v2519, %v2512
      %v2521 = vadd.f32 %v2512, %v2520
      %v2522 = vmul.f32 %v2521, 0.7978846
      %v2523 = vtanh.pop %v2522
      %v2524 = vadd.f32 %v2523, 1.0
      %v2525 = vmul.f32 %v2517, %v2524
      %v2526 = vpack.c.bf16 %v2525, %v2525
      %s2527 = scalar_lea.vmem %s12, 64
      %v2528 = vld [vmem:[%s2527] sm:$0xf]
      %v2529 = vld [vmem:[%s2527 + $0x4] sm:$0xf]
      %v2530 = vld [vmem:[%s2527 + $0x8] sm:$0xf]
      %v2531 = vld [vmem:[%s2527 + $0xc] sm:$0xf]
      %v2532 = vld [vmem:[%s2527 + $0x10] sm:$0xf]
      %v2533 = vld [vmem:[%s2527 + $0x14] sm:$0xf]
      %v2534 = vld [vmem:[%s2527 + $0x18] sm:$0xf]
      %v2535 = vld [vmem:[%s2527 + $0x1c] sm:$0xf]
      %v2536 = vld [vmem:[%s2527 + $0x20] sm:$0xf]
      %v2537 = vld [vmem:[%s2527 + $0x24] sm:$0xf]
      %v2538 = vld [vmem:[%s2527 + $0x28] sm:$0xf]
      %v2539 = vld [vmem:[%s2527 + $0x2c] sm:$0xf]
      %v2540 = vld [vmem:[%s2527 + $0x30] sm:$0xf]
      %v2541 = vld [vmem:[%s2527 + $0x34] sm:$0xf]
      %v2542 = vld [vmem:[%s2527 + $0x38] sm:$0xf]
      %v2543 = vld [vmem:[%s2527 + $0x3c] sm:$0xf]
      %v2560 = vunpack.c.l.b16 %v2528
      %v2561 = vunpack.c.l.b16 %v2529
      %v2562 = vunpack.c.l.b16 %v2530
      %v2563 = vunpack.c.l.b16 %v2531
      %v2564 = vunpack.c.l.b16 %v2532
      %v2565 = vunpack.c.l.b16 %v2533
      %v2566 = vunpack.c.l.b16 %v2534
      %v2567 = vunpack.c.l.b16 %v2535
      %v2568 = vunpack.c.l.b16 %v2536
      %v2569 = vunpack.c.l.b16 %v2537
      %v2570 = vunpack.c.l.b16 %v2538
      %v2571 = vunpack.c.l.b16 %v2539
      %v2572 = vunpack.c.l.b16 %v2540
      %v2573 = vunpack.c.l.b16 %v2541
      %v2574 = vunpack.c.l.b16 %v2542
      %v2575 = vunpack.c.l.b16 %v2543
      %v2576 = vpack.c.b16 %v2561, %v2560
      %v2577 = vpack.c.b16 %v2563, %v2562
      %v2578 = vpack.c.b16 %v2565, %v2564
      %v2579 = vpack.c.b16 %v2567, %v2566
      %v2580 = vpack.c.b16 %v2569, %v2568
      %v2581 = vpack.c.b16 %v2571, %v2570
      %v2582 = vpack.c.b16 %v2573, %v2572
      %v2583 = vpack.c.b16 %v2575, %v2574
      %2592 = vmatprep.subr.bf16.mxu0 0
      %2593 = vmatpush1.bf16.msra.mxu0 %v2576
      %2594 = vmatprep.subr.bf16.mxu0 0
      %2595 = vmatpush1.bf16.msra.mxu0 %v2577
      %2596 = vmatprep.subr.bf16.mxu0 0
      %2597 = vmatpush1.bf16.msra.mxu0 %v2578
      %2598 = vmatprep.subr.bf16.mxu0 0
      %2599 = vmatpush1.bf16.msra.mxu0 %v2579
      %2600 = vmatprep.subr.bf16.mxu0 0
      %2601 = vmatpush1.bf16.msra.mxu0 %v2580
      %2602 = vmatprep.subr.bf16.mxu0 0
      %2603 = vmatpush1.bf16.msra.mxu0 %v2581
      %2604 = vmatprep.subr.bf16.mxu0 0
      %2605 = vmatpush1.bf16.msra.mxu0 %v2582
      %2606 = vmatprep.subr.bf16.mxu0 0
      %2607 = vmatpush1.bf16.msra.mxu0 %v2583
      %2608 = vmatprep.subr.bf16.mxu0 0
      %2609 = vmatpush1.bf16.msra.mxu0 0
      %2610 = vmatprep.subr.bf16.mxu0 0
      %2611 = vmatpush1.bf16.msra.mxu0 0
      %2612 = vmatprep.subr.bf16.mxu0 0
      %2613 = vmatpush1.bf16.msra.mxu0 0
      %2614 = vmatprep.subr.bf16.mxu0 0
      %2615 = vmatpush1.bf16.msra.mxu0 0
      %2616 = vmatprep.subr.bf16.mxu0 0
      %2617 = vmatpush1.bf16.msra.mxu0 0
      %2618 = vmatprep.subr.bf16.mxu0 0
      %2619 = vmatpush1.bf16.msra.mxu0 0
      %2620 = vmatprep.subr.bf16.mxu0 0
      %2621 = vmatpush1.bf16.msra.mxu0 0
      %2622 = vmatprep.subr.bf16.mxu0 0
      %2623 = vmatpush1.bf16.msra.mxu0 0
      %2624 = vmatprep.mubr.bf16.mxu0 0
      %2625 = vmatmul.mubr.bf16.gmra.mrb[0].mxu0 %v2526
      %v2626 = vpop.f32.mrb[0].mxu0
      %v2627 = vadd.f32 0.0, %v2626
      %v2628 = vpop.f32.mrb[0].mxu0
      %v2629 = vpop.f32.mrb[0].mxu0
      %v2630 = vpop.f32.mrb[0].mxu0
      %2631 = vdwg.mxu0
      %v2632 = vadd.f32 %v2416, %v2627
      %s2633 = scalar_lea.vmem %s13, 1
      %v2634 = vld [vmem:[%s2633] sm:$0x1]
      %v2636 = vlaneseq
      %v2637 = vshrl.u32 %v2636, 7
      %v2638 = vsub.s32 0, %v2637
      %v2639 = vrot.slane %v2634, %v2638
      %v2641 = vadd.f32 %v2632, %v2639
      %v2642 = vld [vmem:[%s14] sm:$0x1]
      %v2643 = vld [vmem:[%s15] sm:$0x1]
      %v2644 = vsel %vm688, %v2641, 0.0
      %2645 = vadd.xlane.f32.xlu0 %v2644
      %v2646 = vpop.xlane.xlu0 %2645
      %v2647 = vmul.f32 %v2646, %v692
      %v2648 = vsub.f32 %v2641, %v2647
      %v2649 = vmul.f32 %v2648, %v2648
      %v2650 = vsel %vm688, %v2649, 0.0
      %2651 = vadd.xlane.f32.xlu0 %v2650
      %v2652 = vpop.xlane.xlu0 %2651
      %v2653 = vmul.f32 %v2652, %v692
      %v2654 = vadd.f32 %v2653, 1e-05
      %v2655 = vrsqrt.pop %v2654
      %v2656 = vmul.f32 %v2648, %v2655
      %v2658 = vlaneseq
      %v2659 = vshrl.u32 %v2658, 7
      %v2660 = vsub.s32 0, %v2659
      %v2661 = vrot.slane %v2642, %v2660
      %v2663 = vmul.f32 %v2656, %v2661
      %v2665 = vlaneseq
      %v2666 = vshrl.u32 %v2665, 7
      %v2667 = vsub.s32 0, %v2666
      %v2668 = vrot.slane %v2643, %v2667
      %v2670 = vadd.f32 %v2663, %v2668
      %v2671 = vpack.c.bf16 %v2670, %v2670
      %v2672 = vld [vmem:[%s16] sm:$0xf]
      %v2673 = vld [vmem:[%s16 + $0x4] sm:$0xf]
      %v2674 = vld [vmem:[%s16 + $0x8] sm:$0xf]
      %v2675 = vld [vmem:[%s16 + $0xc] sm:$0xf]
      %v2676 = vld [vmem:[%s17] sm:$0x1]
      %v2678 = vlaneseq
      %v2679 = vshrl.u32 %v2678, 7
      %v2680 = vsub.s32 0, %v2679
      %v2681 = vrot.slane %v2676, %v2680
      %v2687 = vunpack.c.l.b16 %v2672
      %v2688 = vunpack.c.l.b16 %v2673
      %v2689 = vunpack.c.l.b16 %v2674
      %v2690 = vunpack.c.l.b16 %v2675
      %v2691 = vpack.c.b16 %v2688, %v2687
      %v2692 = vpack.c.b16 %v2690, %v2689
      %v2696 = vsel %vm688, %v2671, 0
      %2698 = vmatprep.subr.bf16.mxu0 0
      %2699 = vmatpush1.bf16.msra.mxu0 %v2691
      %2700 = vmatprep.subr.bf16.mxu0 0
      %2701 = vmatpush1.bf16.msra.mxu0 %v2692
      %2702 = vmatprep.subr.bf16.mxu0 0
      %2703 = vmatpush1.bf16.msra.mxu0 0
      %2704 = vmatprep.subr.bf16.mxu0 0
      %2705 = vmatpush1.bf16.msra.mxu0 0
      %2706 = vmatprep.subr.bf16.mxu0 0
      %2707 = vmatpush1.bf16.msra.mxu0 0
      %2708 = vmatprep.subr.bf16.mxu0 0
      %2709 = vmatpush1.bf16.msra.mxu0 0
      %2710 = vmatprep.subr.bf16.mxu0 0
      %2711 = vmatpush1.bf16.msra.mxu0 0
      %2712 = vmatprep.subr.bf16.mxu0 0
      %2713 = vmatpush1.bf16.msra.mxu0 0
      %2714 = vmatprep.subr.bf16.mxu0 0
      %2715 = vmatpush1.bf16.msra.mxu0 0
      %2716 = vmatprep.subr.bf16.mxu0 0
      %2717 = vmatpush1.bf16.msra.mxu0 0
      %2718 = vmatprep.subr.bf16.mxu0 0
      %2719 = vmatpush1.bf16.msra.mxu0 0
      %2720 = vmatprep.subr.bf16.mxu0 0
      %2721 = vmatpush1.bf16.msra.mxu0 0
      %2722 = vmatprep.subr.bf16.mxu0 0
      %2723 = vmatpush1.bf16.msra.mxu0 0
      %2724 = vmatprep.subr.bf16.mxu0 0
      %2725 = vmatpush1.bf16.msra.mxu0 0
      %2726 = vmatprep.subr.bf16.mxu0 0
      %2727 = vmatpush1.bf16.msra.mxu0 0
      %2728 = vmatprep.subr.bf16.mxu0 0
      %2729 = vmatpush1.bf16.msra.mxu0 0
      %2730 = vmatprep.mubr.bf16.mxu0 0
      %2731 = vmatmul.mubr.bf16.gmra.mrb[0].mxu0 %v2696
      %v2732 = vpop.f32.mrb[0].mxu0
      %v2733 = vadd.f32 %v2681, %v2732
      %v2734 = vpop.f32.mrb[0].mxu0
      %v2735 = vpop.f32.mrb[0].mxu0
      %v2736 = vpop.f32.mrb[0].mxu0
      %2737 = vdwg.mxu0
      %2738 = vst [vmem:[%s570] sm:$0xff] %v2733
      %p2739 = scmp.lt.s32.totalorder %s29, 1
      %s2740 = scalar_select %p2739, %s29, 1
      %s2741 = smul.addr %s2740, 8
      %s2742 = scalar_lea.vmem %s18, %s2741
      // Predicated region
      $region93: #{forward.1} parent=91 // pred_check
        %p2743 = pneg %p430
      $region94: #{forward.1} parent=91 // pred_check_branch
        %2745 = sbr.rel (%p2743) target = $region96
      $region95: #{forward.1} parent=91 // pred_region
        _
      $region96: #{forward.1} parent=91 // pred_fallthru
        _
    $region92: #{forward.1} parent=5 // pred_fallthru
      _
    %p2746 = scmp.le.s32.totalorder 2, %s24
    // Predicated region
    $region97: #{forward.1} parent=5 // pred_check
      %p2747 = pneg %p2746
    $region98: #{forward.1} parent=5 // pred_check_branch
      %2749 = sbr.rel (%p2747) target = $region100
    $region99: #{forward.1} parent=5 // pred_region
      %s2750 = ssub.s32 %s24, 2
      // Predicated region
      $region101: #{forward.1} parent=99 // pred_check
        %p2751 = pneg %p436
      $region102: #{forward.1} parent=99 // pred_check_branch
        %2753 = sbr.rel (%p2751) target = $region104
      $region103: #{forward.1} parent=99 // pred_region
        %p2754 = scmp.lt.s32.totalorder %s30, 1
        %s2755 = scalar_select %p2754, %s30, 1
        %s2756 = smul.addr %s2755, 8
        %s2757 = scalar_lea.vmem %s18, %s2756
      $region104: #{forward.1} parent=99 // pred_fallthru
        _
    $region100: #{forward.1} parent=5 // pred_fallthru
      _
  $region6: #{forward.1} parent=0 // loop_footer
    %s28 = sadd.s32 1, %s24
  $region7: #{forward.1} parent=0 // loop_footer_branch
    %23 = sbr.rel target = $region3
  $region8: #{forward.1} parent=0 // loop_exit
    _

</llo_original>
